<compile_context>
chip_gen: v7x
topology: tpu7x:2x2x1
jax: 0.10.0
libtpu: 0.0.40
codegen_flags: <defaults>
</compile_context>

<pallas_src>
import functools

import jax
import jax.numpy as jnp
from jax.experimental import pallas as pl
from jax.experimental.pallas import tpu as pltpu


# ---------------------------------------------------------------------------
# Pallas kernel: fused window attention for one (batch, window-row) block.
# ---------------------------------------------------------------------------
def _spatial_attn_kernel(q_ref, k_ref, v_ref, bias_ref, o_ref, *,
                         scale, W_sp, num_heads):
    # q_ref/k_ref/v_ref/o_ref : VMEM (1, H_sp, W, C)   (one row of nWw windows)
    # bias_ref                : VMEM (num_heads, N, N) (resident across grid)
    _, H_sp, W_full, C = q_ref.shape
    hd = C // num_heads
    nWw = W_full // W_sp
    N = H_sp * W_sp

    for j in range(nWw):                          # static loop over windows
        wsl = slice(j * W_sp, (j + 1) * W_sp)
        for h in range(num_heads):                # static loop over heads
            csl = slice(h * hd, (h + 1) * hd)

            # (H_sp, W_sp, hd) -> (N, hd); collapsing leading dims only.
            q = q_ref[0, :, wsl, csl].reshape(N, hd) * scale
            k = k_ref[0, :, wsl, csl].reshape(N, hd)
            v = v_ref[0, :, wsl, csl].reshape(N, hd)

            # logits on the MXU, f32 accumulate
            s = jnp.einsum("nd,md->nm", q, k,
                           preferred_element_type=jnp.float32)      # (N, N)
            s = s + bias_ref[h]

            # numerically-stable softmax; exact normalisation AFTER PV so the
            # divide hits the small (N, hd) output, not the (N, N) logits.
            m = jnp.max(s, axis=-1, keepdims=True)
            p = jnp.exp(s - m)
            l = jnp.sum(p, axis=-1, keepdims=True)                  # (N, 1)
            o = jnp.dot(p, v, preferred_element_type=jnp.float32)   # (N, hd)
            o = o / l

            o_ref[0, :, wsl, csl] = o.reshape(H_sp, W_sp, hd).astype(o_ref.dtype)


# ---------------------------------------------------------------------------
# DynamicPosBias (tiny MLP) + relative position bias table (plain JAX)
# ---------------------------------------------------------------------------
def _layer_norm(x, w, b, eps=1e-5):
    mu = jnp.mean(x, axis=-1, keepdims=True)
    var = jnp.mean((x - mu) ** 2, axis=-1, keepdims=True)
    return (x - mu) * jax.lax.rsqrt(var + eps) * w + b


def dynamic_pos_bias(params, biases):
    """biases: (M, 2) -> (M, num_heads); mirrors DynamicPosBias.forward."""
    x = biases @ params["proj_w"].T + params["proj_b"]
    for name in ("pos1", "pos2", "pos3"):
        p = params[name]
        x = _layer_norm(x, p["ln_w"], p["ln_b"])
        x = jax.nn.relu(x)
        x = x @ p["fc_w"].T + p["fc_b"]
    return x


def relative_position_bias(params, H_sp, W_sp, num_heads):
    """-> (num_heads, N, N), N = H_sp * W_sp."""
    pbh = jnp.arange(1 - H_sp, H_sp)
    pbw = jnp.arange(1 - W_sp, W_sp)
    biases = jnp.stack(jnp.meshgrid(pbh, pbw, indexing="ij"))
    biases = biases.reshape(2, -1).T.astype(jnp.float32)             # (M, 2)

    coords = jnp.stack(jnp.meshgrid(jnp.arange(H_sp), jnp.arange(W_sp),
                                    indexing="ij"))
    coords = coords.reshape(2, -1)                                    # (2, N)
    rel = coords[:, :, None] - coords[:, None, :]                     # (2, N, N)
    rel = rel.transpose(1, 2, 0)
    rel = rel.at[:, :, 0].add(H_sp - 1)
    rel = rel.at[:, :, 1].add(W_sp - 1)
    rel = rel.at[:, :, 0].multiply(2 * W_sp - 1)
    rpi = rel.sum(-1)                                                 # (N, N)

    pos = dynamic_pos_bias(params, biases)                            # (M, nh)
    N = H_sp * W_sp
    rpb = pos[rpi.reshape(-1)].reshape(N, N, num_heads)
    return rpb.transpose(2, 0, 1)                                     # (nh, N, N)


def init_dynamic_pos_bias_params(key, dpb_dim, num_heads):
    """Deterministic init; dpb_dim = module_dim // 4, pos_dim = dpb_dim // 4."""
    pos_dim = dpb_dim // 4
    keys = jax.random.split(key, 4)

    def linear(k, out_d, in_d):
        w = 0.02 * jax.random.normal(k, (out_d, in_d), dtype=jnp.float32)
        return w, jnp.zeros((out_d,), jnp.float32)

    def block(k, out_d):
        fc_w, fc_b = linear(k, out_d, pos_dim)
        return dict(ln_w=jnp.ones((pos_dim,), jnp.float32),
                    ln_b=jnp.zeros((pos_dim,), jnp.float32),
                    fc_w=fc_w, fc_b=fc_b)

    proj_w, proj_b = linear(keys[0], pos_dim, 2)
    return dict(proj_w=proj_w, proj_b=proj_b,
                pos1=block(keys[1], pos_dim),
                pos2=block(keys[2], pos_dim),
                pos3=block(keys[3], num_heads))


# ---------------------------------------------------------------------------
# Pallas-backed forward
# ---------------------------------------------------------------------------
def spatial_attention(qkv, H, W, params, *, H_sp, W_sp, num_heads, scale,
                      mask=None):
    """qkv: (3, B, L, C), L = H*W -> (B, H, W, C). attn_drop = 0 (identity)."""
    assert mask is None  # TODO(synk): shifted-window mask path not implemented.
    q, k, v = qkv[0], qkv[1], qkv[2]
    B, L, C = q.shape
    assert L == H * W, "flatten img_tokens has wrong size"
    assert H % H_sp == 0 and W % W_sp == 0 and C % num_heads == 0
    nWh, nWw = H // H_sp, W // W_sp
    N = H_sp * W_sp

    # Free reshapes only: the window partition / head split / head merge /
    # windows2img are all expressed via BlockSpecs + static in-kernel slicing.
    q4 = q.reshape(B, H, W, C)
    k4 = k.reshape(B, H, W, C)
    v4 = v.reshape(B, H, W, C)

    rpb = relative_position_bias(params, H_sp, W_sp, num_heads)      # (nh, N, N)

    kernel = functools.partial(_spatial_attn_kernel, scale=scale,
                               W_sp=W_sp, num_heads=num_heads)

    row_block = (1, H_sp, W, C)
    row_map = lambda b, i: (b, i, 0, 0)

    hd = C // num_heads
    n_windows = B * nWh * nWw
    cost = pl.CostEstimate(
        flops=int(4 * n_windows * num_heads * N * N * hd),
        transcendentals=int(n_windows * num_heads * N * N),
        bytes_accessed=int(4 * B * H * W * C * 4 + num_heads * N * N * 4),
    )

    out = pl.pallas_call(
        kernel,
        out_shape=jax.ShapeDtypeStruct((B, H, W, C), jnp.float32),
        grid_spec=pltpu.PrefetchScalarGridSpec(
            num_scalar_prefetch=0,
            grid=(B, nWh),                            # one row of nWw windows / step
            in_specs=[
                pl.BlockSpec(row_block, row_map),                       # q
                pl.BlockSpec(row_block, row_map),                       # k
                pl.BlockSpec(row_block, row_map),                       # v
                pl.BlockSpec((num_heads, N, N), lambda b, i: (0, 0, 0)),  # bias (resident)
            ],
            out_specs=pl.BlockSpec(row_block, row_map),
        ),
        compiler_params=pltpu.CompilerParams(
            dimension_semantics=("parallel", "parallel")),
        cost_estimate=cost,
    )(q4, k4, v4, rpb)

    return out                                                         # (B, H, W, C)


# ---------------------------------------------------------------------------
# Pure-JAX reference mirroring the PyTorch module (im2win / windows2img path)
# ---------------------------------------------------------------------------
def im2win(x, H, W, H_sp, W_sp, num_heads):
    """(B, L, C) tokens -> (B*nW, num_heads, N, head_dim)."""
    B, L, C = x.shape
    x = jnp.swapaxes(x, -2, -1).reshape(B, C, H, W)
    x = x.reshape(B, C, H // H_sp, H_sp, W // W_sp, W_sp)
    x = x.transpose(0, 2, 4, 3, 5, 1).reshape(-1, H_sp * W_sp, C)
    x = x.reshape(-1, H_sp * W_sp, num_heads, C // num_heads)
    return x.transpose(0, 2, 1, 3)


def windows2img(x_windows, H_sp, W_sp, H, W):
    """(B*nW, N, C) -> (B, H, W, C)."""
    Bp, N, C = x_windows.shape
    B = Bp // ((H // H_sp) * (W // W_sp))
    x = x_windows.reshape(B, H // H_sp, W // W_sp, H_sp, W_sp, C)
    return x.transpose(0, 1, 3, 2, 4, 5).reshape(B, H, W, C)


def spatial_attention_ref(qkv, H, W, params, *, H_sp, W_sp, num_heads, scale,
                          mask=None):
    assert mask is None
    q, k, v = qkv[0], qkv[1], qkv[2]
    B, L, C = q.shape
    qw = im2win(q, H, W, H_sp, W_sp, num_heads) * scale
    kw = im2win(k, H, W, H_sp, W_sp, num_heads)
    vw = im2win(v, H, W, H_sp, W_sp, num_heads)
    attn = jnp.einsum("bhnd,bhmd->bhnm", qw, kw,
                      precision=jax.lax.Precision.HIGHEST)
    rpb = relative_position_bias(params, H_sp, W_sp, num_heads)
    attn = jax.nn.softmax(attn + rpb[None], axis=-1)
    x = jnp.einsum("bhnm,bhmd->bhnd", attn, vw,
                   precision=jax.lax.Precision.HIGHEST)
    x = jnp.swapaxes(x, 1, 2).reshape(-1, H_sp * W_sp, C)
    return windows2img(x, H_sp, W_sp, H, W)


if __name__ == "__main__":
    # Small shapes consistent with the module.
    B, H, W = 2, 16, 16
    dim, num_heads = 32, 4
    split_size = (8, 8)
    idx = 0
    if idx == 0:
        H_sp, W_sp = split_size[0], split_size[1]
    else:
        W_sp, H_sp = split_size[1], split_size[0]
    head_dim = dim // num_heads
    scale = head_dim ** (-0.5)
    L = H * W

    key = jax.random.PRNGKey(0)
    k_qkv, k_params = jax.random.split(key)
    qkv = jax.random.normal(k_qkv, (3, B, L, dim), dtype=jnp.float32)
    params = init_dynamic_pos_bias_params(k_params, dim // 4, num_heads)

    out = spatial_attention(qkv, H, W, params, H_sp=H_sp, W_sp=W_sp,
                            num_heads=num_heads, scale=scale)
    out = jax.block_until_ready(out)

    ref = spatial_attention_ref(qkv, H, W, params, H_sp=H_sp, W_sp=W_sp,
                                num_heads=num_heads, scale=scale)

    assert out.shape == (B, H, W, dim)
    assert bool(jnp.allclose(out, ref, atol=5e-3, rtol=5e-3)), \
        "mismatch vs reference"

    print("KERNEL_OK")
</pallas_src>

<mosaic_0001>
module attributes {stable_mosaic.version = 11 : i64} {
  func.func @_spatial_attn_kernel(%arg0: i32, %arg1: i32, %arg2: memref<1x8x16x32xf32, #tpu.memory_space<vmem>>, %arg3: memref<1x8x16x32xf32, #tpu.memory_space<vmem>>, %arg4: memref<1x8x16x32xf32, #tpu.memory_space<vmem>>, %arg5: memref<4x64x64xf32, #tpu.memory_space<vmem>>, %arg6: memref<1x8x16x32xf32, #tpu.memory_space<vmem>>) attributes {dimension_semantics = [#tpu.dimension_semantics<parallel>, #tpu.dimension_semantics<parallel>], iteration_bounds = array<i64: 2, 2>, scalar_prefetch = 0 : i64, scratch_operands = 0 : i64, tpu.core_type = #tpu.core_type<tc>, window_params = [{transform_indices = @transform_0, window_bounds = array<i64: 1, 8, 16, 32>}, {transform_indices = @transform_1, window_bounds = array<i64: 1, 8, 16, 32>}, {transform_indices = @transform_2, window_bounds = array<i64: 1, 8, 16, 32>}, {pipeline_mode = #tpu.pipeline_mode<synchronous>, transform_indices = @transform_3, window_bounds = array<i64: 4, 64, 64>}, {transform_indices = @transform_4, window_bounds = array<i64: 1, 8, 16, 32>}]} {
    %c0 = arith.constant 0 : index
    %c0_0 = arith.constant 0 : index
    %c0_1 = arith.constant 0 : index
    %c0_2 = arith.constant 0 : index
    %0 = vector.load %arg2[%c0, %c0_0, %c0_1, %c0_2] : memref<1x8x16x32xf32, #tpu.memory_space<vmem>>, vector<1x8x8x8xf32>
    %1 = vector.shape_cast %0 : vector<1x8x8x8xf32> to vector<8x8x8xf32>
    %2 = vector.shape_cast %1 : vector<8x8x8xf32> to vector<64x8xf32>
    %cst = arith.constant 0.353553385 : f32
    %3 = vector.broadcast %cst : f32 to vector<64x8xf32>
    %4 = arith.mulf %2, %3 : vector<64x8xf32>
    %c0_3 = arith.constant 0 : index
    %c0_4 = arith.constant 0 : index
    %c0_5 = arith.constant 0 : index
    %c0_6 = arith.constant 0 : index
    %5 = vector.load %arg3[%c0_3, %c0_4, %c0_5, %c0_6] : memref<1x8x16x32xf32, #tpu.memory_space<vmem>>, vector<1x8x8x8xf32>
    %6 = vector.shape_cast %5 : vector<1x8x8x8xf32> to vector<8x8x8xf32>
    %7 = vector.shape_cast %6 : vector<8x8x8xf32> to vector<64x8xf32>
    %c0_7 = arith.constant 0 : index
    %c0_8 = arith.constant 0 : index
    %c0_9 = arith.constant 0 : index
    %c0_10 = arith.constant 0 : index
    %8 = vector.load %arg4[%c0_7, %c0_8, %c0_9, %c0_10] : memref<1x8x16x32xf32, #tpu.memory_space<vmem>>, vector<1x8x8x8xf32>
    %9 = vector.shape_cast %8 : vector<1x8x8x8xf32> to vector<8x8x8xf32>
    %10 = vector.shape_cast %9 : vector<8x8x8xf32> to vector<64x8xf32>
    "tpu.trace_start"() <{level = 10 : i32, message = "nd,md->nm"}> : () -> ()
    %cst_11 = arith.constant dense<0.000000e+00> : vector<64x64xf32>
    %11 = tpu.matmul %4, %7, %cst_11 {dimension_numbers = #tpu.dot_dimension_numbers<[1], [1], [0], [0], [0, 0, 1, 0], [], []>} : vector<64x8xf32>, vector<64x8xf32>, vector<64x64xf32> -> vector<64x64xf32>
    "tpu.trace_stop"() : () -> ()
    %c0_12 = arith.constant 0 : index
    %c0_13 = arith.constant 0 : index
    %c0_14 = arith.constant 0 : index
    %12 = vector.load %arg5[%c0_12, %c0_13, %c0_14] : memref<4x64x64xf32, #tpu.memory_space<vmem>>, vector<1x64x64xf32>
    %13 = vector.shape_cast %12 : vector<1x64x64xf32> to vector<64x64xf32>
    %14 = arith.addf %11, %13 : vector<64x64xf32>
    %cst_15 = arith.constant dense<0xFF800000> : vector<64xf32>
    %15 = vector.multi_reduction <maximumf>, %14, %cst_15 [1] : vector<64x64xf32> to vector<64xf32>
    %16 = vector.shape_cast %15 : vector<64xf32> to vector<64x1xf32>
    %17 = vector.broadcast %16 : vector<64x1xf32> to vector<64x64xf32>
    %18 = arith.subf %14, %17 : vector<64x64xf32>
    %19 = math.exp %18 : vector<64x64xf32>
    %cst_16 = arith.constant dense<0.000000e+00> : vector<64xf32>
    %20 = vector.multi_reduction <add>, %19, %cst_16 [1] : vector<64x64xf32> to vector<64xf32>
    %21 = vector.shape_cast %20 : vector<64xf32> to vector<64x1xf32>
    %cst_17 = arith.constant dense<0.000000e+00> : vector<64x8xf32>
    %22 = tpu.matmul %19, %10, %cst_17 {dimension_numbers = #tpu.dot_dimension_numbers<[1], [0], [0], [1], [0, 0, 1, 1], [], []>} : vector<64x64xf32>, vector<64x8xf32>, vector<64x8xf32> -> vector<64x8xf32>
    %23 = vector.broadcast %21 : vector<64x1xf32> to vector<64x8xf32>
    %24 = arith.divf %22, %23 : vector<64x8xf32>
    %25 = vector.shape_cast %24 : vector<64x8xf32> to vector<8x8x8xf32>
    %c0_18 = arith.constant 0 : index
    %c0_19 = arith.constant 0 : index
    %c0_20 = arith.constant 0 : index
    %c0_21 = arith.constant 0 : index
    %26 = vector.load %arg6[%c0_18, %c0_19, %c0_20, %c0_21] : memref<1x8x16x32xf32, #tpu.memory_space<vmem>>, vector<1x8x8x8xf32>
    %27 = vector.shape_cast %26 : vector<1x8x8x8xf32> to vector<8x8x8xf32>
    %28 = vector.shape_cast %25 : vector<8x8x8xf32> to vector<1x8x8x8xf32>
    tpu.vector_store %arg6[%c0_18, %c0_19, %c0_20, %c0_21], %28 {strides = array<i32>} : memref<1x8x16x32xf32, #tpu.memory_space<vmem>>, vector<1x8x8x8xf32>,
    %c0_22 = arith.constant 0 : index
    %c0_23 = arith.constant 0 : index
    %c0_24 = arith.constant 0 : index
    %c8 = arith.constant 8 : index
    %29 = vector.load %arg2[%c0_22, %c0_23, %c0_24, %c8] : memref<1x8x16x32xf32, #tpu.memory_space<vmem>>, vector<1x8x8x8xf32>
    %30 = vector.shape_cast %29 : vector<1x8x8x8xf32> to vector<8x8x8xf32>
    %31 = vector.shape_cast %30 : vector<8x8x8xf32> to vector<64x8xf32>
    %cst_25 = arith.constant 0.353553385 : f32
    %32 = vector.broadcast %cst_25 : f32 to vector<64x8xf32>
    %33 = arith.mulf %31, %32 : vector<64x8xf32>
    %c0_26 = arith.constant 0 : index
    %c0_27 = arith.constant 0 : index
    %c0_28 = arith.constant 0 : index
    %c8_29 = arith.constant 8 : index
    %34 = vector.load %arg3[%c0_26, %c0_27, %c0_28, %c8_29] : memref<1x8x16x32xf32, #tpu.memory_space<vmem>>, vector<1x8x8x8xf32>
    %35 = vector.shape_cast %34 : vector<1x8x8x8xf32> to vector<8x8x8xf32>
    %36 = vector.shape_cast %35 : vector<8x8x8xf32> to vector<64x8xf32>
    %c0_30 = arith.constant 0 : index
    %c0_31 = arith.constant 0 : index
    %c0_32 = arith.constant 0 : index
    %c8_33 = arith.constant 8 : index
    %37 = vector.load %arg4[%c0_30, %c0_31, %c0_32, %c8_33] : memref<1x8x16x32xf32, #tpu.memory_space<vmem>>, vector<1x8x8x8xf32>
    %38 = vector.shape_cast %37 : vector<1x8x8x8xf32> to vector<8x8x8xf32>
    %39 = vector.shape_cast %38 : vector<8x8x8xf32> to vector<64x8xf32>
    "tpu.trace_start"() <{level = 10 : i32, message = "nd,md->nm"}> : () -> ()
    %cst_34 = arith.constant dense<0.000000e+00> : vector<64x64xf32>
    %40 = tpu.matmul %33, %36, %cst_34 {dimension_numbers = #tpu.dot_dimension_numbers<[1], [1], [0], [0], [0, 0, 1, 0], [], []>} : vector<64x8xf32>, vector<64x8xf32>, vector<64x64xf32> -> vector<64x64xf32>
    "tpu.trace_stop"() : () -> ()
    %c1 = arith.constant 1 : index
    %c0_35 = arith.constant 0 : index
    %c0_36 = arith.constant 0 : index
    %41 = vector.load %arg5[%c1, %c0_35, %c0_36] : memref<4x64x64xf32, #tpu.memory_space<vmem>>, vector<1x64x64xf32>
    %42 = vector.shape_cast %41 : vector<1x64x64xf32> to vector<64x64xf32>
    %43 = arith.addf %40, %42 : vector<64x64xf32>
    %cst_37 = arith.constant dense<0xFF800000> : vector<64xf32>
    %44 = vector.multi_reduction <maximumf>, %43, %cst_37 [1] : vector<64x64xf32> to vector<64xf32>
    %45 = vector.shape_cast %44 : vector<64xf32> to vector<64x1xf32>
    %46 = vector.broadcast %45 : vector<64x1xf32> to vector<64x64xf32>
    %47 = arith.subf %43, %46 : vector<64x64xf32>
    %48 = math.exp %47 : vector<64x64xf32>
    %cst_38 = arith.constant dense<0.000000e+00> : vector<64xf32>
    %49 = vector.multi_reduction <add>, %48, %cst_38 [1] : vector<64x64xf32> to vector<64xf32>
    %50 = vector.shape_cast %49 : vector<64xf32> to vector<64x1xf32>
    %cst_39 = arith.constant dense<0.000000e+00> : vector<64x8xf32>
    %51 = tpu.matmul %48, %39, %cst_39 {dimension_numbers = #tpu.dot_dimension_numbers<[1], [0], [0], [1], [0, 0, 1, 1], [], []>} : vector<64x64xf32>, vector<64x8xf32>, vector<64x8xf32> -> vector<64x8xf32>
    %52 = vector.broadcast %50 : vector<64x1xf32> to vector<64x8xf32>
    %53 = arith.divf %51, %52 : vector<64x8xf32>
    %54 = vector.shape_cast %53 : vector<64x8xf32> to vector<8x8x8xf32>
    %c0_40 = arith.constant 0 : index
    %c0_41 = arith.constant 0 : index
    %c0_42 = arith.constant 0 : index
    %c8_43 = arith.constant 8 : index
    %55 = vector.load %arg6[%c0_40, %c0_41, %c0_42, %c8_43] : memref<1x8x16x32xf32, #tpu.memory_space<vmem>>, vector<1x8x8x8xf32>
    %56 = vector.shape_cast %55 : vector<1x8x8x8xf32> to vector<8x8x8xf32>
    %57 = vector.shape_cast %54 : vector<8x8x8xf32> to vector<1x8x8x8xf32>
    tpu.vector_store %arg6[%c0_40, %c0_41, %c0_42, %c8_43], %57 {strides = array<i32>} : memref<1x8x16x32xf32, #tpu.memory_space<vmem>>, vector<1x8x8x8xf32>,
    %c0_44 = arith.constant 0 : index
    %c0_45 = arith.constant 0 : index
    %c0_46 = arith.constant 0 : index
    %c16 = arith.constant 16 : index
    %58 = vector.load %arg2[%c0_44, %c0_45, %c0_46, %c16] : memref<1x8x16x32xf32, #tpu.memory_space<vmem>>, vector<1x8x8x8xf32>
    %59 = vector.shape_cast %58 : vector<1x8x8x8xf32> to vector<8x8x8xf32>
    %60 = vector.shape_cast %59 : vector<8x8x8xf32> to vector<64x8xf32>
    %cst_47 = arith.constant 0.353553385 : f32
    %61 = vector.broadcast %cst_47 : f32 to vector<64x8xf32>
    %62 = arith.mulf %60, %61 : vector<64x8xf32>
    %c0_48 = arith.constant 0 : index
    %c0_49 = arith.constant 0 : index
    %c0_50 = arith.constant 0 : index
    %c16_51 = arith.constant 16 : index
    %63 = vector.load %arg3[%c0_48, %c0_49, %c0_50, %c16_51] : memref<1x8x16x32xf32, #tpu.memory_space<vmem>>, vector<1x8x8x8xf32>
    %64 = vector.shape_cast %63 : vector<1x8x8x8xf32> to vector<8x8x8xf32>
    %65 = vector.shape_cast %64 : vector<8x8x8xf32> to vector<64x8xf32>
    %c0_52 = arith.constant 0 : index
    %c0_53 = arith.constant 0 : index
    %c0_54 = arith.constant 0 : index
    %c16_55 = arith.constant 16 : index
    %66 = vector.load %arg4[%c0_52, %c0_53, %c0_54, %c16_55] : memref<1x8x16x32xf32, #tpu.memory_space<vmem>>, vector<1x8x8x8xf32>
    %67 = vector.shape_cast %66 : vector<1x8x8x8xf32> to vector<8x8x8xf32>
    %68 = vector.shape_cast %67 : vector<8x8x8xf32> to vector<64x8xf32>
    "tpu.trace_start"() <{level = 10 : i32, message = "nd,md->nm"}> : () -> ()
    %cst_56 = arith.constant dense<0.000000e+00> : vector<64x64xf32>
    %69 = tpu.matmul %62, %65, %cst_56 {dimension_numbers = #tpu.dot_dimension_numbers<[1], [1], [0], [0], [0, 0, 1, 0], [], []>} : vector<64x8xf32>, vector<64x8xf32>, vector<64x64xf32> -> vector<64x64xf32>
    "tpu.trace_stop"() : () -> ()
    %c2 = arith.constant 2 : index
    %c0_57 = arith.constant 0 : index
    %c0_58 = arith.constant 0 : index
    %70 = vector.load %arg5[%c2, %c0_57, %c0_58] : memref<4x64x64xf32, #tpu.memory_space<vmem>>, vector<1x64x64xf32>
    %71 = vector.shape_cast %70 : vector<1x64x64xf32> to vector<64x64xf32>
    %72 = arith.addf %69, %71 : vector<64x64xf32>
    %cst_59 = arith.constant dense<0xFF800000> : vector<64xf32>
    %73 = vector.multi_reduction <maximumf>, %72, %cst_59 [1] : vector<64x64xf32> to vector<64xf32>
    %74 = vector.shape_cast %73 : vector<64xf32> to vector<64x1xf32>
    %75 = vector.broadcast %74 : vector<64x1xf32> to vector<64x64xf32>
    %76 = arith.subf %72, %75 : vector<64x64xf32>
    %77 = math.exp %76 : vector<64x64xf32>
    %cst_60 = arith.constant dense<0.000000e+00> : vector<64xf32>
    %78 = vector.multi_reduction <add>, %77, %cst_60 [1] : vector<64x64xf32> to vector<64xf32>
    %79 = vector.shape_cast %78 : vector<64xf32> to vector<64x1xf32>
    %cst_61 = arith.constant dense<0.000000e+00> : vector<64x8xf32>
    %80 = tpu.matmul %77, %68, %cst_61 {dimension_numbers = #tpu.dot_dimension_numbers<[1], [0], [0], [1], [0, 0, 1, 1], [], []>} : vector<64x64xf32>, vector<64x8xf32>, vector<64x8xf32> -> vector<64x8xf32>
    %81 = vector.broadcast %79 : vector<64x1xf32> to vector<64x8xf32>
    %82 = arith.divf %80, %81 : vector<64x8xf32>
    %83 = vector.shape_cast %82 : vector<64x8xf32> to vector<8x8x8xf32>
    %c0_62 = arith.constant 0 : index
    %c0_63 = arith.constant 0 : index
    %c0_64 = arith.constant 0 : index
    %c16_65 = arith.constant 16 : index
    %84 = vector.load %arg6[%c0_62, %c0_63, %c0_64, %c16_65] : memref<1x8x16x32xf32, #tpu.memory_space<vmem>>, vector<1x8x8x8xf32>
    %85 = vector.shape_cast %84 : vector<1x8x8x8xf32> to vector<8x8x8xf32>
    %86 = vector.shape_cast %83 : vector<8x8x8xf32> to vector<1x8x8x8xf32>
    tpu.vector_store %arg6[%c0_62, %c0_63, %c0_64, %c16_65], %86 {strides = array<i32>} : memref<1x8x16x32xf32, #tpu.memory_space<vmem>>, vector<1x8x8x8xf32>,
    %c0_66 = arith.constant 0 : index
    %c0_67 = arith.constant 0 : index
    %c0_68 = arith.constant 0 : index
    %c24 = arith.constant 24 : index
    %87 = vector.load %arg2[%c0_66, %c0_67, %c0_68, %c24] : memref<1x8x16x32xf32, #tpu.memory_space<vmem>>, vector<1x8x8x8xf32>
    %88 = vector.shape_cast %87 : vector<1x8x8x8xf32> to vector<8x8x8xf32>
    %89 = vector.shape_cast %88 : vector<8x8x8xf32> to vector<64x8xf32>
    %cst_69 = arith.constant 0.353553385 : f32
    %90 = vector.broadcast %cst_69 : f32 to vector<64x8xf32>
    %91 = arith.mulf %89, %90 : vector<64x8xf32>
    %c0_70 = arith.constant 0 : index
    %c0_71 = arith.constant 0 : index
    %c0_72 = arith.constant 0 : index
    %c24_73 = arith.constant 24 : index
    %92 = vector.load %arg3[%c0_70, %c0_71, %c0_72, %c24_73] : memref<1x8x16x32xf32, #tpu.memory_space<vmem>>, vector<1x8x8x8xf32>
    %93 = vector.shape_cast %92 : vector<1x8x8x8xf32> to vector<8x8x8xf32>
    %94 = vector.shape_cast %93 : vector<8x8x8xf32> to vector<64x8xf32>
    %c0_74 = arith.constant 0 : index
    %c0_75 = arith.constant 0 : index
    %c0_76 = arith.constant 0 : index
    %c24_77 = arith.constant 24 : index
    %95 = vector.load %arg4[%c0_74, %c0_75, %c0_76, %c24_77] : memref<1x8x16x32xf32, #tpu.memory_space<vmem>>, vector<1x8x8x8xf32>
    %96 = vector.shape_cast %95 : vector<1x8x8x8xf32> to vector<8x8x8xf32>
    %97 = vector.shape_cast %96 : vector<8x8x8xf32> to vector<64x8xf32>
    "tpu.trace_start"() <{level = 10 : i32, message = "nd,md->nm"}> : () -> ()
    %cst_78 = arith.constant dense<0.000000e+00> : vector<64x64xf32>
    %98 = tpu.matmul %91, %94, %cst_78 {dimension_numbers = #tpu.dot_dimension_numbers<[1], [1], [0], [0], [0, 0, 1, 0], [], []>} : vector<64x8xf32>, vector<64x8xf32>, vector<64x64xf32> -> vector<64x64xf32>
    "tpu.trace_stop"() : () -> ()
    %c3 = arith.constant 3 : index
    %c0_79 = arith.constant 0 : index
    %c0_80 = arith.constant 0 : index
    %99 = vector.load %arg5[%c3, %c0_79, %c0_80] : memref<4x64x64xf32, #tpu.memory_space<vmem>>, vector<1x64x64xf32>
    %100 = vector.shape_cast %99 : vector<1x64x64xf32> to vector<64x64xf32>
    %101 = arith.addf %98, %100 : vector<64x64xf32>
    %cst_81 = arith.constant dense<0xFF800000> : vector<64xf32>
    %102 = vector.multi_reduction <maximumf>, %101, %cst_81 [1] : vector<64x64xf32> to vector<64xf32>
    %103 = vector.shape_cast %102 : vector<64xf32> to vector<64x1xf32>
    %104 = vector.broadcast %103 : vector<64x1xf32> to vector<64x64xf32>
    %105 = arith.subf %101, %104 : vector<64x64xf32>
    %106 = math.exp %105 : vector<64x64xf32>
    %cst_82 = arith.constant dense<0.000000e+00> : vector<64xf32>
    %107 = vector.multi_reduction <add>, %106, %cst_82 [1] : vector<64x64xf32> to vector<64xf32>
    %108 = vector.shape_cast %107 : vector<64xf32> to vector<64x1xf32>
    %cst_83 = arith.constant dense<0.000000e+00> : vector<64x8xf32>
    %109 = tpu.matmul %106, %97, %cst_83 {dimension_numbers = #tpu.dot_dimension_numbers<[1], [0], [0], [1], [0, 0, 1, 1], [], []>} : vector<64x64xf32>, vector<64x8xf32>, vector<64x8xf32> -> vector<64x8xf32>
    %110 = vector.broadcast %108 : vector<64x1xf32> to vector<64x8xf32>
    %111 = arith.divf %109, %110 : vector<64x8xf32>
    %112 = vector.shape_cast %111 : vector<64x8xf32> to vector<8x8x8xf32>
    %c0_84 = arith.constant 0 : index
    %c0_85 = arith.constant 0 : index
    %c0_86 = arith.constant 0 : index
    %c24_87 = arith.constant 24 : index
    %113 = vector.load %arg6[%c0_84, %c0_85, %c0_86, %c24_87] : memref<1x8x16x32xf32, #tpu.memory_space<vmem>>, vector<1x8x8x8xf32>
    %114 = vector.shape_cast %113 : vector<1x8x8x8xf32> to vector<8x8x8xf32>
    %115 = vector.shape_cast %112 : vector<8x8x8xf32> to vector<1x8x8x8xf32>
    tpu.vector_store %arg6[%c0_84, %c0_85, %c0_86, %c24_87], %115 {strides = array<i32>} : memref<1x8x16x32xf32, #tpu.memory_space<vmem>>, vector<1x8x8x8xf32>,
    %c0_88 = arith.constant 0 : index
    %c0_89 = arith.constant 0 : index
    %c8_90 = arith.constant 8 : index
    %c0_91 = arith.constant 0 : index
    %116 = vector.load %arg2[%c0_88, %c0_89, %c8_90, %c0_91] : memref<1x8x16x32xf32, #tpu.memory_space<vmem>>, vector<1x8x8x8xf32>
    %117 = vector.shape_cast %116 : vector<1x8x8x8xf32> to vector<8x8x8xf32>
    %118 = vector.shape_cast %117 : vector<8x8x8xf32> to vector<64x8xf32>
    %cst_92 = arith.constant 0.353553385 : f32
    %119 = vector.broadcast %cst_92 : f32 to vector<64x8xf32>
    %120 = arith.mulf %118, %119 : vector<64x8xf32>
    %c0_93 = arith.constant 0 : index
    %c0_94 = arith.constant 0 : index
    %c8_95 = arith.constant 8 : index
    %c0_96 = arith.constant 0 : index
    %121 = vector.load %arg3[%c0_93, %c0_94, %c8_95, %c0_96] : memref<1x8x16x32xf32, #tpu.memory_space<vmem>>, vector<1x8x8x8xf32>
    %122 = vector.shape_cast %121 : vector<1x8x8x8xf32> to vector<8x8x8xf32>
    %123 = vector.shape_cast %122 : vector<8x8x8xf32> to vector<64x8xf32>
    %c0_97 = arith.constant 0 : index
    %c0_98 = arith.constant 0 : index
    %c8_99 = arith.constant 8 : index
    %c0_100 = arith.constant 0 : index
    %124 = vector.load %arg4[%c0_97, %c0_98, %c8_99, %c0_100] : memref<1x8x16x32xf32, #tpu.memory_space<vmem>>, vector<1x8x8x8xf32>
    %125 = vector.shape_cast %124 : vector<1x8x8x8xf32> to vector<8x8x8xf32>
    %126 = vector.shape_cast %125 : vector<8x8x8xf32> to vector<64x8xf32>
    "tpu.trace_start"() <{level = 10 : i32, message = "nd,md->nm"}> : () -> ()
    %cst_101 = arith.constant dense<0.000000e+00> : vector<64x64xf32>
    %127 = tpu.matmul %120, %123, %cst_101 {dimension_numbers = #tpu.dot_dimension_numbers<[1], [1], [0], [0], [0, 0, 1, 0], [], []>} : vector<64x8xf32>, vector<64x8xf32>, vector<64x64xf32> -> vector<64x64xf32>
    "tpu.trace_stop"() : () -> ()
    %c0_102 = arith.constant 0 : index
    %c0_103 = arith.constant 0 : index
    %c0_104 = arith.constant 0 : index
    %128 = vector.load %arg5[%c0_102, %c0_103, %c0_104] : memref<4x64x64xf32, #tpu.memory_space<vmem>>, vector<1x64x64xf32>
    %129 = vector.shape_cast %128 : vector<1x64x64xf32> to vector<64x64xf32>
    %130 = arith.addf %127, %129 : vector<64x64xf32>
    %cst_105 = arith.constant dense<0xFF800000> : vector<64xf32>
    %131 = vector.multi_reduction <maximumf>, %130, %cst_105 [1] : vector<64x64xf32> to vector<64xf32>
    %132 = vector.shape_cast %131 : vector<64xf32> to vector<64x1xf32>
    %133 = vector.broadcast %132 : vector<64x1xf32> to vector<64x64xf32>
    %134 = arith.subf %130, %133 : vector<64x64xf32>
    %135 = math.exp %134 : vector<64x64xf32>
    %cst_106 = arith.constant dense<0.000000e+00> : vector<64xf32>
    %136 = vector.multi_reduction <add>, %135, %cst_106 [1] : vector<64x64xf32> to vector<64xf32>
    %137 = vector.shape_cast %136 : vector<64xf32> to vector<64x1xf32>
    %cst_107 = arith.constant dense<0.000000e+00> : vector<64x8xf32>
    %138 = tpu.matmul %135, %126, %cst_107 {dimension_numbers = #tpu.dot_dimension_numbers<[1], [0], [0], [1], [0, 0, 1, 1], [], []>} : vector<64x64xf32>, vector<64x8xf32>, vector<64x8xf32> -> vector<64x8xf32>
    %139 = vector.broadcast %137 : vector<64x1xf32> to vector<64x8xf32>
    %140 = arith.divf %138, %139 : vector<64x8xf32>
    %141 = vector.shape_cast %140 : vector<64x8xf32> to vector<8x8x8xf32>
    %c0_108 = arith.constant 0 : index
    %c0_109 = arith.constant 0 : index
    %c8_110 = arith.constant 8 : index
    %c0_111 = arith.constant 0 : index
    %142 = vector.load %arg6[%c0_108, %c0_109, %c8_110, %c0_111] : memref<1x8x16x32xf32, #tpu.memory_space<vmem>>, vector<1x8x8x8xf32>
    %143 = vector.shape_cast %142 : vector<1x8x8x8xf32> to vector<8x8x8xf32>
    %144 = vector.shape_cast %141 : vector<8x8x8xf32> to vector<1x8x8x8xf32>
    tpu.vector_store %arg6[%c0_108, %c0_109, %c8_110, %c0_111], %144 {strides = array<i32>} : memref<1x8x16x32xf32, #tpu.memory_space<vmem>>, vector<1x8x8x8xf32>,
    %c0_112 = arith.constant 0 : index
    %c0_113 = arith.constant 0 : index
    %c8_114 = arith.constant 8 : index
    %c8_115 = arith.constant 8 : index
    %145 = vector.load %arg2[%c0_112, %c0_113, %c8_114, %c8_115] : memref<1x8x16x32xf32, #tpu.memory_space<vmem>>, vector<1x8x8x8xf32>
    %146 = vector.shape_cast %145 : vector<1x8x8x8xf32> to vector<8x8x8xf32>
    %147 = vector.shape_cast %146 : vector<8x8x8xf32> to vector<64x8xf32>
    %cst_116 = arith.constant 0.353553385 : f32
    %148 = vector.broadcast %cst_116 : f32 to vector<64x8xf32>
    %149 = arith.mulf %147, %148 : vector<64x8xf32>
    %c0_117 = arith.constant 0 : index
    %c0_118 = arith.constant 0 : index
    %c8_119 = arith.constant 8 : index
    %c8_120 = arith.constant 8 : index
    %150 = vector.load %arg3[%c0_117, %c0_118, %c8_119, %c8_120] : memref<1x8x16x32xf32, #tpu.memory_space<vmem>>, vector<1x8x8x8xf32>
    %151 = vector.shape_cast %150 : vector<1x8x8x8xf32> to vector<8x8x8xf32>
    %152 = vector.shape_cast %151 : vector<8x8x8xf32> to vector<64x8xf32>
    %c0_121 = arith.constant 0 : index
    %c0_122 = arith.constant 0 : index
    %c8_123 = arith.constant 8 : index
    %c8_124 = arith.constant 8 : index
    %153 = vector.load %arg4[%c0_121, %c0_122, %c8_123, %c8_124] : memref<1x8x16x32xf32, #tpu.memory_space<vmem>>, vector<1x8x8x8xf32>
    %154 = vector.shape_cast %153 : vector<1x8x8x8xf32> to vector<8x8x8xf32>
    %155 = vector.shape_cast %154 : vector<8x8x8xf32> to vector<64x8xf32>
    "tpu.trace_start"() <{level = 10 : i32, message = "nd,md->nm"}> : () -> ()
    %cst_125 = arith.constant dense<0.000000e+00> : vector<64x64xf32>
    %156 = tpu.matmul %149, %152, %cst_125 {dimension_numbers = #tpu.dot_dimension_numbers<[1], [1], [0], [0], [0, 0, 1, 0], [], []>} : vector<64x8xf32>, vector<64x8xf32>, vector<64x64xf32> -> vector<64x64xf32>
    "tpu.trace_stop"() : () -> ()
    %c1_126 = arith.constant 1 : index
    %c0_127 = arith.constant 0 : index
    %c0_128 = arith.constant 0 : index
    %157 = vector.load %arg5[%c1_126, %c0_127, %c0_128] : memref<4x64x64xf32, #tpu.memory_space<vmem>>, vector<1x64x64xf32>
    %158 = vector.shape_cast %157 : vector<1x64x64xf32> to vector<64x64xf32>
    %159 = arith.addf %156, %158 : vector<64x64xf32>
    %cst_129 = arith.constant dense<0xFF800000> : vector<64xf32>
    %160 = vector.multi_reduction <maximumf>, %159, %cst_129 [1] : vector<64x64xf32> to vector<64xf32>
    %161 = vector.shape_cast %160 : vector<64xf32> to vector<64x1xf32>
    %162 = vector.broadcast %161 : vector<64x1xf32> to vector<64x64xf32>
    %163 = arith.subf %159, %162 : vector<64x64xf32>
    %164 = math.exp %163 : vector<64x64xf32>
    %cst_130 = arith.constant dense<0.000000e+00> : vector<64xf32>
    %165 = vector.multi_reduction <add>, %164, %cst_130 [1] : vector<64x64xf32> to vector<64xf32>
    %166 = vector.shape_cast %165 : vector<64xf32> to vector<64x1xf32>
    %cst_131 = arith.constant dense<0.000000e+00> : vector<64x8xf32>
    %167 = tpu.matmul %164, %155, %cst_131 {dimension_numbers = #tpu.dot_dimension_numbers<[1], [0], [0], [1], [0, 0, 1, 1], [], []>} : vector<64x64xf32>, vector<64x8xf32>, vector<64x8xf32> -> vector<64x8xf32>
    %168 = vector.broadcast %166 : vector<64x1xf32> to vector<64x8xf32>
    %169 = arith.divf %167, %168 : vector<64x8xf32>
    %170 = vector.shape_cast %169 : vector<64x8xf32> to vector<8x8x8xf32>
    %c0_132 = arith.constant 0 : index
    %c0_133 = arith.constant 0 : index
    %c8_134 = arith.constant 8 : index
    %c8_135 = arith.constant 8 : index
    %171 = vector.load %arg6[%c0_132, %c0_133, %c8_134, %c8_135] : memref<1x8x16x32xf32, #tpu.memory_space<vmem>>, vector<1x8x8x8xf32>
    %172 = vector.shape_cast %171 : vector<1x8x8x8xf32> to vector<8x8x8xf32>
    %173 = vector.shape_cast %170 : vector<8x8x8xf32> to vector<1x8x8x8xf32>
    tpu.vector_store %arg6[%c0_132, %c0_133, %c8_134, %c8_135], %173 {strides = array<i32>} : memref<1x8x16x32xf32, #tpu.memory_space<vmem>>, vector<1x8x8x8xf32>,
    %c0_136 = arith.constant 0 : index
    %c0_137 = arith.constant 0 : index
    %c8_138 = arith.constant 8 : index
    %c16_139 = arith.constant 16 : index
    %174 = vector.load %arg2[%c0_136, %c0_137, %c8_138, %c16_139] : memref<1x8x16x32xf32, #tpu.memory_space<vmem>>, vector<1x8x8x8xf32>
    %175 = vector.shape_cast %174 : vector<1x8x8x8xf32> to vector<8x8x8xf32>
    %176 = vector.shape_cast %175 : vector<8x8x8xf32> to vector<64x8xf32>
    %cst_140 = arith.constant 0.353553385 : f32
    %177 = vector.broadcast %cst_140 : f32 to vector<64x8xf32>
    %178 = arith.mulf %176, %177 : vector<64x8xf32>
    %c0_141 = arith.constant 0 : index
    %c0_142 = arith.constant 0 : index
    %c8_143 = arith.constant 8 : index
    %c16_144 = arith.constant 16 : index
    %179 = vector.load %arg3[%c0_141, %c0_142, %c8_143, %c16_144] : memref<1x8x16x32xf32, #tpu.memory_space<vmem>>, vector<1x8x8x8xf32>
    %180 = vector.shape_cast %179 : vector<1x8x8x8xf32> to vector<8x8x8xf32>
    %181 = vector.shape_cast %180 : vector<8x8x8xf32> to vector<64x8xf32>
    %c0_145 = arith.constant 0 : index
    %c0_146 = arith.constant 0 : index
    %c8_147 = arith.constant 8 : index
    %c16_148 = arith.constant 16 : index
    %182 = vector.load %arg4[%c0_145, %c0_146, %c8_147, %c16_148] : memref<1x8x16x32xf32, #tpu.memory_space<vmem>>, vector<1x8x8x8xf32>
    %183 = vector.shape_cast %182 : vector<1x8x8x8xf32> to vector<8x8x8xf32>
    %184 = vector.shape_cast %183 : vector<8x8x8xf32> to vector<64x8xf32>
    "tpu.trace_start"() <{level = 10 : i32, message = "nd,md->nm"}> : () -> ()
    %cst_149 = arith.constant dense<0.000000e+00> : vector<64x64xf32>
    %185 = tpu.matmul %178, %181, %cst_149 {dimension_numbers = #tpu.dot_dimension_numbers<[1], [1], [0], [0], [0, 0, 1, 0], [], []>} : vector<64x8xf32>, vector<64x8xf32>, vector<64x64xf32> -> vector<64x64xf32>
    "tpu.trace_stop"() : () -> ()
    %c2_150 = arith.constant 2 : index
    %c0_151 = arith.constant 0 : index
    %c0_152 = arith.constant 0 : index
    %186 = vector.load %arg5[%c2_150, %c0_151, %c0_152] : memref<4x64x64xf32, #tpu.memory_space<vmem>>, vector<1x64x64xf32>
    %187 = vector.shape_cast %186 : vector<1x64x64xf32> to vector<64x64xf32>
    %188 = arith.addf %185, %187 : vector<64x64xf32>
    %cst_153 = arith.constant dense<0xFF800000> : vector<64xf32>
    %189 = vector.multi_reduction <maximumf>, %188, %cst_153 [1] : vector<64x64xf32> to vector<64xf32>
    %190 = vector.shape_cast %189 : vector<64xf32> to vector<64x1xf32>
    %191 = vector.broadcast %190 : vector<64x1xf32> to vector<64x64xf32>
    %192 = arith.subf %188, %191 : vector<64x64xf32>
    %193 = math.exp %192 : vector<64x64xf32>
    %cst_154 = arith.constant dense<0.000000e+00> : vector<64xf32>
    %194 = vector.multi_reduction <add>, %193, %cst_154 [1] : vector<64x64xf32> to vector<64xf32>
    %195 = vector.shape_cast %194 : vector<64xf32> to vector<64x1xf32>
    %cst_155 = arith.constant dense<0.000000e+00> : vector<64x8xf32>
    %196 = tpu.matmul %193, %184, %cst_155 {dimension_numbers = #tpu.dot_dimension_numbers<[1], [0], [0], [1], [0, 0, 1, 1], [], []>} : vector<64x64xf32>, vector<64x8xf32>, vector<64x8xf32> -> vector<64x8xf32>
    %197 = vector.broadcast %195 : vector<64x1xf32> to vector<64x8xf32>
    %198 = arith.divf %196, %197 : vector<64x8xf32>
    %199 = vector.shape_cast %198 : vector<64x8xf32> to vector<8x8x8xf32>
    %c0_156 = arith.constant 0 : index
    %c0_157 = arith.constant 0 : index
    %c8_158 = arith.constant 8 : index
    %c16_159 = arith.constant 16 : index
    %200 = vector.load %arg6[%c0_156, %c0_157, %c8_158, %c16_159] : memref<1x8x16x32xf32, #tpu.memory_space<vmem>>, vector<1x8x8x8xf32>
    %201 = vector.shape_cast %200 : vector<1x8x8x8xf32> to vector<8x8x8xf32>
    %202 = vector.shape_cast %199 : vector<8x8x8xf32> to vector<1x8x8x8xf32>
    tpu.vector_store %arg6[%c0_156, %c0_157, %c8_158, %c16_159], %202 {strides = array<i32>} : memref<1x8x16x32xf32, #tpu.memory_space<vmem>>, vector<1x8x8x8xf32>,
    %c0_160 = arith.constant 0 : index
    %c0_161 = arith.constant 0 : index
    %c8_162 = arith.constant 8 : index
    %c24_163 = arith.constant 24 : index
    %203 = vector.load %arg2[%c0_160, %c0_161, %c8_162, %c24_163] : memref<1x8x16x32xf32, #tpu.memory_space<vmem>>, vector<1x8x8x8xf32>
    %204 = vector.shape_cast %203 : vector<1x8x8x8xf32> to vector<8x8x8xf32>
    %205 = vector.shape_cast %204 : vector<8x8x8xf32> to vector<64x8xf32>
    %cst_164 = arith.constant 0.353553385 : f32
    %206 = vector.broadcast %cst_164 : f32 to vector<64x8xf32>
    %207 = arith.mulf %205, %206 : vector<64x8xf32>
    %c0_165 = arith.constant 0 : index
    %c0_166 = arith.constant 0 : index
    %c8_167 = arith.constant 8 : index
    %c24_168 = arith.constant 24 : index
    %208 = vector.load %arg3[%c0_165, %c0_166, %c8_167, %c24_168] : memref<1x8x16x32xf32, #tpu.memory_space<vmem>>, vector<1x8x8x8xf32>
    %209 = vector.shape_cast %208 : vector<1x8x8x8xf32> to vector<8x8x8xf32>
    %210 = vector.shape_cast %209 : vector<8x8x8xf32> to vector<64x8xf32>
    %c0_169 = arith.constant 0 : index
    %c0_170 = arith.constant 0 : index
    %c8_171 = arith.constant 8 : index
    %c24_172 = arith.constant 24 : index
    %211 = vector.load %arg4[%c0_169, %c0_170, %c8_171, %c24_172] : memref<1x8x16x32xf32, #tpu.memory_space<vmem>>, vector<1x8x8x8xf32>
    %212 = vector.shape_cast %211 : vector<1x8x8x8xf32> to vector<8x8x8xf32>
    %213 = vector.shape_cast %212 : vector<8x8x8xf32> to vector<64x8xf32>
    "tpu.trace_start"() <{level = 10 : i32, message = "nd,md->nm"}> : () -> ()
    %cst_173 = arith.constant dense<0.000000e+00> : vector<64x64xf32>
    %214 = tpu.matmul %207, %210, %cst_173 {dimension_numbers = #tpu.dot_dimension_numbers<[1], [1], [0], [0], [0, 0, 1, 0], [], []>} : vector<64x8xf32>, vector<64x8xf32>, vector<64x64xf32> -> vector<64x64xf32>
    "tpu.trace_stop"() : () -> ()
    %c3_174 = arith.constant 3 : index
    %c0_175 = arith.constant 0 : index
    %c0_176 = arith.constant 0 : index
    %215 = vector.load %arg5[%c3_174, %c0_175, %c0_176] : memref<4x64x64xf32, #tpu.memory_space<vmem>>, vector<1x64x64xf32>
    %216 = vector.shape_cast %215 : vector<1x64x64xf32> to vector<64x64xf32>
    %217 = arith.addf %214, %216 : vector<64x64xf32>
    %cst_177 = arith.constant dense<0xFF800000> : vector<64xf32>
    %218 = vector.multi_reduction <maximumf>, %217, %cst_177 [1] : vector<64x64xf32> to vector<64xf32>
    %219 = vector.shape_cast %218 : vector<64xf32> to vector<64x1xf32>
    %220 = vector.broadcast %219 : vector<64x1xf32> to vector<64x64xf32>
    %221 = arith.subf %217, %220 : vector<64x64xf32>
    %222 = math.exp %221 : vector<64x64xf32>
    %cst_178 = arith.constant dense<0.000000e+00> : vector<64xf32>
    %223 = vector.multi_reduction <add>, %222, %cst_178 [1] : vector<64x64xf32> to vector<64xf32>
    %224 = vector.shape_cast %223 : vector<64xf32> to vector<64x1xf32>
    %cst_179 = arith.constant dense<0.000000e+00> : vector<64x8xf32>
    %225 = tpu.matmul %222, %213, %cst_179 {dimension_numbers = #tpu.dot_dimension_numbers<[1], [0], [0], [1], [0, 0, 1, 1], [], []>} : vector<64x64xf32>, vector<64x8xf32>, vector<64x8xf32> -> vector<64x8xf32>
    %226 = vector.broadcast %224 : vector<64x1xf32> to vector<64x8xf32>
    %227 = arith.divf %225, %226 : vector<64x8xf32>
    %228 = vector.shape_cast %227 : vector<64x8xf32> to vector<8x8x8xf32>
    %c0_180 = arith.constant 0 : index
    %c0_181 = arith.constant 0 : index
    %c8_182 = arith.constant 8 : index
    %c24_183 = arith.constant 24 : index
    %229 = vector.load %arg6[%c0_180, %c0_181, %c8_182, %c24_183] : memref<1x8x16x32xf32, #tpu.memory_space<vmem>>, vector<1x8x8x8xf32>
    %230 = vector.shape_cast %229 : vector<1x8x8x8xf32> to vector<8x8x8xf32>
    %231 = vector.shape_cast %228 : vector<8x8x8xf32> to vector<1x8x8x8xf32>
    tpu.vector_store %arg6[%c0_180, %c0_181, %c8_182, %c24_183], %231 {strides = array<i32>} : memref<1x8x16x32xf32, #tpu.memory_space<vmem>>, vector<1x8x8x8xf32>,
    return
  }
  func.func @transform_0(%arg0: i32, %arg1: i32) -> (i32, i32, i32, i32) {
    %c0_i32 = arith.constant 0 : i32
    %c0_i32_0 = arith.constant 0 : i32
    %c0_i32_1 = arith.constant 0 : i32
    return %arg0, %arg1, %c0_i32, %c0_i32_0 : i32, i32, i32, i32
  }
  func.func @transform_1(%arg0: i32, %arg1: i32) -> (i32, i32, i32, i32) {
    %c0_i32 = arith.constant 0 : i32
    %c0_i32_0 = arith.constant 0 : i32
    %c0_i32_1 = arith.constant 0 : i32
    return %arg0, %arg1, %c0_i32, %c0_i32_0 : i32, i32, i32, i32
  }
  func.func @transform_2(%arg0: i32, %arg1: i32) -> (i32, i32, i32, i32) {
    %c0_i32 = arith.constant 0 : i32
    %c0_i32_0 = arith.constant 0 : i32
    %c0_i32_1 = arith.constant 0 : i32
    return %arg0, %arg1, %c0_i32, %c0_i32_0 : i32, i32, i32, i32
  }
  func.func @transform_3(%arg0: i32, %arg1: i32) -> (i32, i32, i32) {
    %c0_i32 = arith.constant 0 : i32
    %c0_i32_0 = arith.constant 0 : i32
    %c0_i32_1 = arith.constant 0 : i32
    %c0_i32_2 = arith.constant 0 : i32
    return %c0_i32, %c0_i32_0, %c0_i32_1 : i32, i32, i32
  }
  func.func @transform_4(%arg0: i32, %arg1: i32) -> (i32, i32, i32, i32) {
    %c0_i32 = arith.constant 0 : i32
    %c0_i32_0 = arith.constant 0 : i32
    %c0_i32_1 = arith.constant 0 : i32
    return %arg0, %arg1, %c0_i32, %c0_i32_0 : i32, i32, i32, i32
  }
}

</mosaic_0001>

<llo_original>
// kernel: tpu_custom_call.1
$region0: #{tpu_custom_call.1}
  #allocation0 [shape = 'u32[]', space=smem, size = 0x4, offset = 0x4, fixed_abs, tag = 'smem constant byte address 0x4 - core index']
  #allocation1 [shape = 'u32[144,128]{1,0:T(1,128)}', space=vmem, size = 0x12000, scoped, tag = 'internal scratch']
  %s0 = inlined_call_operand.hbm [shape: f32[2,16,16,32], index: 0, kind: input, shape index: {}]
  %s1 = inlined_call_operand.hbm [shape: f32[2,16,16,32], index: 1, kind: input, shape index: {}]
  %s2 = inlined_call_operand.hbm [shape: f32[2,16,16,32], index: 2, kind: input, shape index: {}]
  %s3 = inlined_call_operand.hbm [shape: f32[4,64,64], index: 3, kind: input, shape index: {}]
  %s4 = inlined_call_operand.hbm [shape: f32[2,16,16,32], index: 4, kind: output, shape index: {}]
  %s5 = sld [smem:[#allocation0]]
  $region65: #{tpu_custom_call.1} parent=0
    _
  %s7 = ssub.s32 1, %s5
  %s8 = scalar_select 0, %s7, %s5
  $region1: #{tpu_custom_call.1} parent=0
    #allocation2 [shape = 'u8[131072]{0}', space=vmem, size = 0x20000, scoped, tag = 'input window, operand 0']
    #allocation3 [shape = 's32[2]{0}', space=sflag, size = 0x8, scoped, tag = 'scoped memory for tpu_custom_call.1']
    #allocation4 [shape = 's32[2]{0}', space=sflag, size = 0x8, scoped, tag = 'scoped memory for tpu_custom_call.1']
    #allocation5 [shape = 'u8[131072]{0}', space=vmem, size = 0x20000, scoped, tag = 'input window, operand 1']
    #allocation6 [shape = 's32[2]{0}', space=sflag, size = 0x8, scoped, tag = 'scoped memory for tpu_custom_call.1']
    #allocation7 [shape = 'u8[131072]{0}', space=vmem, size = 0x20000, scoped, tag = 'input window, operand 2']
    #allocation8 [shape = 'u8[131072]{0}', space=vmem, size = 0x20000, scoped, tag = 'input window, operand 3, single buffered']
    #allocation9 [shape = 's32[1]{0}', space=sflag, size = 0x4, scoped, tag = 'scoped memory for tpu_custom_call.1']
    #allocation10 [shape = 'u8[131072]{0}', space=vmem, size = 0x20000, scoped, tag = 'output window, operand 0']
    %9 = vsyncpa [#allocation3], 0
    %s10 = scalar_lea.sflag [#allocation3], 1
    %11 = vsyncpa %s10, 0
    %12 = vsyncpa [#allocation6], 0
    %s13 = scalar_lea.sflag [#allocation6], 1
    %14 = vsyncpa %s13, 0
    %15 = vsyncpa [#allocation9], 0
    %16 = vsyncpa [#allocation4], 0
    %s17 = scalar_lea.sflag [#allocation4], 1
    %18 = vsyncpa %s17, 0
    loop: start=0, step=1, limit=6
    $region2: #{tpu_custom_call.1} parent=1 // loop_pre_header
      _
    $region3: #{tpu_custom_call.1} parent=1 // loop_header
      %s20 = sphi 0, %s24
      %p21 = scmp.ge.s32.totalorder %s20, 6
      %s27 = sphi 0, %s39
      %s28 = sphi 0, %s35
      %s29 = sphi 0, %s27
      %s30 = sphi 0, %s28
      %s31 = sphi 0, %s29
      %s32 = sphi 0, %s30
      %s44 = sphi 0, %s46
      %s47 = sphi 0, %s44
      %s48 = sphi 0, %s47
      %s64 = sphi 0, %s48
      %s72 = sphi 0, %s74
      %s75 = sphi 0, %s72
      %s76 = sphi 0, %s75
      %s92 = sphi 0, %s76
      %s100 = sphi 0, %s102
      %s103 = sphi 0, %s100
      %s104 = sphi 0, %s103
      %s120 = sphi 0, %s104
      %s124 = sphi 0, %s124
      %s126 = sphi 0, %s124
      %s127 = sphi 0, %s126
      %s141 = sphi 0, %s127
      %s149 = sphi 0, %s151
      %s152 = sphi 0, %s149
      %s153 = sphi 0, %s152
      %s169 = sphi 0, %s153
    $region4: #{tpu_custom_call.1} parent=1 // loop_header_branch
      %23 = sbr.rel (%p21) target = $region8
    $region5: #{tpu_custom_call.1} parent=1 // loop_body
      %s25 = ssub.s32 %s20, 1
      %s26 = ssub.s32 %s20, 2
      %s33 = sadd.s32 1, %s28
      %p34 = scmp.ge.s32.totalorder %s33, 2
      %s35 = scalar_select %p34, 0, %s33
      %s36 = sadd.s32 1, %s27
      %s37 = scalar_select %p34, %s36, %s27
      %p38 = scmp.ge.s32.totalorder %s37, 2
      %s39 = scalar_select %p38, 0, %s37
      %s40 = ssub.s32 %s27, %s39
      %s41 = ssub.s32 %s28, %s35
      %s42 = sor.u32 %s40, %s41
      %p43 = scmp.eq.s32.totalorder %s42, 0
      %s45 = sadd.s32 %s44, 1
      %s46 = scalar_select %p43, %s44, %s45
      %p49 = pneg %p43
      %p50 = scmp.eq.s32.totalorder %s20, 3
      %p51 = por %p49, %p50
      %p52 = scmp.ne.s32.totalorder %s44, %s47
      %p53 = scmp.eq.s32.totalorder %s20, 0
      %p54 = por %p52, %p53
      %p55 = scmp.ne.s32.totalorder %s44, %s47
      %p56 = scmp.eq.s32.totalorder %s25, 3
      %p57 = por %p55, %p56
      %p58 = scmp.ne.s32.totalorder %s47, %s48
      %p59 = scmp.eq.s32.totalorder %s25, 0
      %p60 = por %p58, %p59
      %p61 = scmp.ne.s32.totalorder %s47, %s48
      %p62 = scmp.eq.s32.totalorder %s26, 3
      %p63 = por %p61, %p62
      %p65 = scmp.ne.s32.totalorder %s48, %s64
      %p66 = scmp.eq.s32.totalorder %s26, 0
      %p67 = por %p65, %p66
      %s68 = ssub.s32 %s27, %s39
      %s69 = ssub.s32 %s28, %s35
      %s70 = sor.u32 %s68, %s69
      %p71 = scmp.eq.s32.totalorder %s70, 0
      %s73 = sadd.s32 %s72, 1
      %s74 = scalar_select %p71, %s72, %s73
      %p77 = pneg %p71
      %p78 = scmp.eq.s32.totalorder %s20, 3
      %p79 = por %p77, %p78
      %p80 = scmp.ne.s32.totalorder %s72, %s75
      %p81 = scmp.eq.s32.totalorder %s20, 0
      %p82 = por %p80, %p81
      %p83 = scmp.ne.s32.totalorder %s72, %s75
      %p84 = scmp.eq.s32.totalorder %s25, 3
      %p85 = por %p83, %p84
      %p86 = scmp.ne.s32.totalorder %s75, %s76
      %p87 = scmp.eq.s32.totalorder %s25, 0
      %p88 = por %p86, %p87
      %p89 = scmp.ne.s32.totalorder %s75, %s76
      %p90 = scmp.eq.s32.totalorder %s26, 3
      %p91 = por %p89, %p90
      %p93 = scmp.ne.s32.totalorder %s76, %s92
      %p94 = scmp.eq.s32.totalorder %s26, 0
      %p95 = por %p93, %p94
      %s96 = ssub.s32 %s27, %s39
      %s97 = ssub.s32 %s28, %s35
      %s98 = sor.u32 %s96, %s97
      %p99 = scmp.eq.s32.totalorder %s98, 0
      %s101 = sadd.s32 %s100, 1
      %s102 = scalar_select %p99, %s100, %s101
      %p105 = pneg %p99
      %p106 = scmp.eq.s32.totalorder %s20, 3
      %p107 = por %p105, %p106
      %p108 = scmp.ne.s32.totalorder %s100, %s103
      %p109 = scmp.eq.s32.totalorder %s20, 0
      %p110 = por %p108, %p109
      %p111 = scmp.ne.s32.totalorder %s100, %s103
      %p112 = scmp.eq.s32.totalorder %s25, 3
      %p113 = por %p111, %p112
      %p114 = scmp.ne.s32.totalorder %s103, %s104
      %p115 = scmp.eq.s32.totalorder %s25, 0
      %p116 = por %p114, %p115
      %p117 = scmp.ne.s32.totalorder %s103, %s104
      %p118 = scmp.eq.s32.totalorder %s26, 3
      %p119 = por %p117, %p118
      %p121 = scmp.ne.s32.totalorder %s104, %s120
      %p122 = scmp.eq.s32.totalorder %s26, 0
      %p123 = por %p121, %p122
      %s125 = sadd.s32 %s124, 1
      %p128 = scmp.eq.s32.totalorder %s20, 3
      %p129 = scmp.ne.s32.totalorder %s124, %s126
      %p130 = scmp.eq.s32.totalorder %s20, 0
      %p131 = por %p129, %p130
      %p132 = scmp.ne.s32.totalorder %s124, %s126
      %p133 = scmp.eq.s32.totalorder %s25, 3
      %p134 = por %p132, %p133
      %p135 = scmp.ne.s32.totalorder %s126, %s127
      %p136 = scmp.eq.s32.totalorder %s25, 0
      %p137 = por %p135, %p136
      %p138 = scmp.ne.s32.totalorder %s126, %s127
      %p139 = scmp.eq.s32.totalorder %s26, 3
      %p140 = por %p138, %p139
      %p142 = scmp.ne.s32.totalorder %s127, %s141
      %p143 = scmp.eq.s32.totalorder %s26, 0
      %p144 = por %p142, %p143
      %s145 = ssub.s32 %s27, %s39
      %s146 = ssub.s32 %s28, %s35
      %s147 = sor.u32 %s145, %s146
      %p148 = scmp.eq.s32.totalorder %s147, 0
      %s150 = sadd.s32 %s149, 1
      %s151 = scalar_select %p148, %s149, %s150
      %p154 = pneg %p148
      %p155 = scmp.eq.s32.totalorder %s20, 3
      %p156 = por %p154, %p155
      %p157 = scmp.ne.s32.totalorder %s149, %s152
      %p158 = scmp.eq.s32.totalorder %s20, 0
      %p159 = por %p157, %p158
      %p160 = scmp.ne.s32.totalorder %s149, %s152
      %p161 = scmp.eq.s32.totalorder %s25, 3
      %p162 = por %p160, %p161
      %p163 = scmp.ne.s32.totalorder %s152, %s153
      %p164 = scmp.eq.s32.totalorder %s25, 0
      %p165 = por %p163, %p164
      %p166 = scmp.ne.s32.totalorder %s152, %s153
      %p167 = scmp.eq.s32.totalorder %s26, 3
      %p168 = por %p166, %p167
      %p170 = scmp.ne.s32.totalorder %s153, %s169
      %p171 = scmp.eq.s32.totalorder %s26, 0
      %p172 = por %p170, %p171
      %p173 = scmp.le.s32.totalorder 1, %s20
      %p174 = scmp.lt.s32.totalorder %s20, 5
      %p175 = pnand %p173, %p174
      %p176 = pneg %p175
      // Predicated region
      $region9: #{tpu_custom_call.1} parent=5 // pred_check
        _
      $region10: #{tpu_custom_call.1} parent=5 // pred_check_branch
        %178 = sbr.rel (%p175) target = $region12
      $region11: #{tpu_custom_call.1} parent=5 // pred_region
        %s179 = ssub.s32 %s20, 1
        // Predicated region
        $region13: #{tpu_custom_call.1} parent=11 // pred_check
          %p180 = pneg %p137
        $region14: #{tpu_custom_call.1} parent=11 // pred_check_branch
          %182 = sbr.rel (%p180) target = $region16
        $region15: #{tpu_custom_call.1} parent=11 // pred_region
          %s184 = ssub.s32 4096, 4096
          %185 = vsyncadd [#allocation9], %s184
          %s186 = sshll.u32 [#allocation8], 4
          %s187 = int_to_ptr.vmem [resolvable:$true] %s186
          %192 = dma.hbm_to_vmem [thread:$0]  %s3, 4096, %s187, [#allocation9], 128, 128, 8
        $region16: #{tpu_custom_call.1} parent=11 // pred_fallthru
          _
      $region12: #{tpu_custom_call.1} parent=5 // pred_fallthru
        _
      %p193 = scmp.lt.s32.totalorder %s20, 4
      // Predicated region
      $region17: #{tpu_custom_call.1} parent=5 // pred_check
        %p194 = pneg %p193
      $region18: #{tpu_custom_call.1} parent=5 // pred_check_branch
        %196 = sbr.rel (%p194) target = $region20
      $region19: #{tpu_custom_call.1} parent=5 // pred_region
        // Predicated region
        $region21: #{tpu_custom_call.1} parent=19 // pred_check
          %p197 = pneg %p54
        $region22: #{tpu_custom_call.1} parent=19 // pred_check_branch
          %199 = sbr.rel (%p197) target = $region24
        $region23: #{tpu_custom_call.1} parent=19 // pred_region
          %s200 = sand.u32 %s44, 1
          %s201 = scalar_lea.sflag [#allocation3], %s200
          %s202 = sand.u32 %s44, 1
          %s203 = smul.addr %s202, 128
          %s204 = scalar_lea.vmem [#allocation2], %s203
          %s205 = smul.u32 8, %s28
          %s207 = ssub.s32 2048, 2048
          %208 = vsyncadd %s201, %s207
          %s209 = smul.addr %s205, 2
          %s210 = smul.addr %s27, 32
          %s211 = sadd.s32 %s209, %s210
          %s212 = smul.addr %s211, 128
          %s213 = scalar_lea.hbm %s0, %s212
          %s214 = sshll.u32 %s204, 4
          %s215 = int_to_ptr.vmem [resolvable:$true] %s214
          %220 = dma.hbm_to_vmem [thread:$0]  %s213, 2048, %s215, %s201, 128, 128, 8
        $region24: #{tpu_custom_call.1} parent=19 // pred_fallthru
          _
        // Predicated region
        $region25: #{tpu_custom_call.1} parent=19 // pred_check
          %p221 = pneg %p82
        $region26: #{tpu_custom_call.1} parent=19 // pred_check_branch
          %223 = sbr.rel (%p221) target = $region28
        $region27: #{tpu_custom_call.1} parent=19 // pred_region
          %s224 = sand.u32 %s20, 1
          %s225 = scalar_lea.sflag [#allocation6], %s224
          %s226 = sand.u32 %s72, 1
          %s227 = smul.addr %s226, 128
          %s228 = scalar_lea.vmem [#allocation5], %s227
          %s229 = smul.u32 8, %s28
          %s231 = ssub.s32 2048, 2048
          %232 = vsyncadd %s225, %s231
          %s233 = smul.addr %s229, 2
          %s234 = smul.addr %s27, 32
          %s235 = sadd.s32 %s233, %s234
          %s236 = smul.addr %s235, 128
          %s237 = scalar_lea.hbm %s1, %s236
          %s238 = sshll.u32 %s228, 4
          %s239 = int_to_ptr.vmem [resolvable:$true] %s238
          %244 = dma.hbm_to_vmem [thread:$0]  %s237, 2048, %s239, %s225, 128, 128, 8
        $region28: #{tpu_custom_call.1} parent=19 // pred_fallthru
          _
        // Predicated region
        $region29: #{tpu_custom_call.1} parent=19 // pred_check
          %p245 = pneg %p110
        $region30: #{tpu_custom_call.1} parent=19 // pred_check_branch
          %247 = sbr.rel (%p245) target = $region32
        $region31: #{tpu_custom_call.1} parent=19 // pred_region
          %s248 = sand.u32 %s20, 1
          %s249 = scalar_lea.sflag [#allocation6], %s248
          %s250 = sand.u32 %s100, 1
          %s251 = smul.addr %s250, 128
          %s252 = scalar_lea.vmem [#allocation7], %s251
          %s253 = smul.u32 8, %s28
          %s255 = ssub.s32 2048, 2048
          %256 = vsyncadd %s249, %s255
          %s257 = smul.addr %s253, 2
          %s258 = smul.addr %s27, 32
          %s259 = sadd.s32 %s257, %s258
          %s260 = smul.addr %s259, 128
          %s261 = scalar_lea.hbm %s2, %s260
          %s262 = sshll.u32 %s252, 4
          %s263 = int_to_ptr.vmem [resolvable:$true] %s262
          %268 = dma.hbm_to_vmem [thread:$0]  %s261, 2048, %s263, %s249, 128, 128, 8
        $region32: #{tpu_custom_call.1} parent=19 // pred_fallthru
          _
      $region20: #{tpu_custom_call.1} parent=5 // pred_fallthru
        _
      %p269 = scmp.le.s32.totalorder 1, %s20
      %p270 = scmp.lt.s32.totalorder %s20, 5
      %p271 = pnand %p269, %p270
      %p272 = pneg %p271
      // Predicated region
      $region33: #{tpu_custom_call.1} parent=5 // pred_check
        _
      $region34: #{tpu_custom_call.1} parent=5 // pred_check_branch
        %274 = sbr.rel (%p271) target = $region36
      $region35: #{tpu_custom_call.1} parent=5 // pred_region
        %s275 = ssub.s32 %s20, 1
        %s276 = sand.u32 %s47, 1
        %s277 = scalar_lea.sflag [#allocation3], %s276
        %s278 = sand.u32 %s47, 1
        %s279 = smul.addr %s278, 128
        %s280 = scalar_lea.vmem [#allocation2], %s279
        // Predicated region
        $region37: #{tpu_custom_call.1} parent=35 // pred_check
          %p281 = pneg %p60
        $region38: #{tpu_custom_call.1} parent=35 // pred_check_branch
          %283 = sbr.rel (%p281) target = $region40
        $region39: #{tpu_custom_call.1} parent=35 // pred_region
          %284 = dma.done %s277, 2048
        $region40: #{tpu_custom_call.1} parent=35 // pred_fallthru
          _
        %s285 = sand.u32 %s25, 1
        %s286 = scalar_lea.sflag [#allocation6], %s285
        %s287 = sand.u32 %s75, 1
        %s288 = smul.addr %s287, 128
        %s289 = scalar_lea.vmem [#allocation5], %s288
        // Predicated region
        $region41: #{tpu_custom_call.1} parent=35 // pred_check
          %p290 = pneg %p88
        $region42: #{tpu_custom_call.1} parent=35 // pred_check_branch
          %292 = sbr.rel (%p290) target = $region44
        $region43: #{tpu_custom_call.1} parent=35 // pred_region
          %293 = dma.done %s286, 2048
        $region44: #{tpu_custom_call.1} parent=35 // pred_fallthru
          _
        %s294 = sand.u32 %s25, 1
        %s295 = scalar_lea.sflag [#allocation6], %s294
        %s296 = sand.u32 %s103, 1
        %s297 = smul.addr %s296, 128
        %s298 = scalar_lea.vmem [#allocation7], %s297
        // Predicated region
        $region45: #{tpu_custom_call.1} parent=35 // pred_check
          %p299 = pneg %p116
        $region46: #{tpu_custom_call.1} parent=35 // pred_check_branch
          %301 = sbr.rel (%p299) target = $region48
        $region47: #{tpu_custom_call.1} parent=35 // pred_region
          %302 = dma.done %s295, 2048
        $region48: #{tpu_custom_call.1} parent=35 // pred_fallthru
          _
        // Predicated region
        $region49: #{tpu_custom_call.1} parent=35 // pred_check
          %p303 = pneg %p137
        $region50: #{tpu_custom_call.1} parent=35 // pred_check_branch
          %305 = sbr.rel (%p303) target = $region52
        $region51: #{tpu_custom_call.1} parent=35 // pred_region
          %306 = dma.done [#allocation9], 4096
        $region52: #{tpu_custom_call.1} parent=35 // pred_fallthru
          _
        %s307 = sand.u32 %s47, 1
        %s308 = scalar_lea.sflag [#allocation3], %s307
        %s309 = sand.u32 %s47, 1
        %s310 = smul.addr %s309, 128
        %s311 = scalar_lea.vmem [#allocation2], %s310
        %p312 = pneg %p60
        %p313 = pneg %p57
        %s314 = sand.u32 %s25, 1
        %s315 = scalar_lea.sflag [#allocation6], %s314
        %s316 = sand.u32 %s75, 1
        %s317 = smul.addr %s316, 128
        %s318 = scalar_lea.vmem [#allocation5], %s317
        %p319 = pneg %p88
        %p320 = pneg %p85
        %s321 = sand.u32 %s25, 1
        %s322 = scalar_lea.sflag [#allocation6], %s321
        %s323 = sand.u32 %s103, 1
        %s324 = smul.addr %s323, 128
        %s325 = scalar_lea.vmem [#allocation7], %s324
        %p326 = pneg %p116
        %p327 = pneg %p113
        %p328 = pneg %p137
        %p329 = pneg %p134
        %p330 = pneg %p165
        %p331 = pneg %p162
        %s332 = sand.u32 %s152, 1
        %s333 = scalar_lea.sflag [#allocation4], %s332
        %s334 = sand.u32 %s152, 1
        %s335 = smul.addr %s334, 128
        %s336 = scalar_lea.vmem [#allocation10], %s335
        %s337 = smul.u32 8, %s30
        %s338 = smul.u32 8, %s30
        %s339 = smul.u32 8, %s30
        %s340 = smul.u32 8, %s30
        %v341 = vld [vmem:[%s280] sm:$0xff]
        %v342 = vld [vmem:[%s280 + $0x10] sm:$0xff]
        %v343 = vld [vmem:[%s280 + $0x20] sm:$0xff]
        %v344 = vld [vmem:[%s280 + $0x30] sm:$0xff]
        %v345 = vld [vmem:[%s280 + $0x40] sm:$0xff]
        %v346 = vld [vmem:[%s280 + $0x50] sm:$0xff]
        %v347 = vld [vmem:[%s280 + $0x60] sm:$0xff]
        %v348 = vld [vmem:[%s280 + $0x70] sm:$0xff]
        %v349 = vmul.f32 %v341, 0.35355338
        %v350 = vmul.f32 %v342, 0.35355338
        %v351 = vmul.f32 %v343, 0.35355338
        %v352 = vmul.f32 %v344, 0.35355338
        %v353 = vmul.f32 %v345, 0.35355338
        %v354 = vmul.f32 %v346, 0.35355338
        %v355 = vmul.f32 %v347, 0.35355338
        %v356 = vmul.f32 %v348, 0.35355338
        %v357 = vld [vmem:[%s289] sm:$0xff]
        %v358 = vld [vmem:[%s289 + $0x10] sm:$0xff]
        %v359 = vld [vmem:[%s289 + $0x20] sm:$0xff]
        %v360 = vld [vmem:[%s289 + $0x30] sm:$0xff]
        %v361 = vld [vmem:[%s289 + $0x40] sm:$0xff]
        %v362 = vld [vmem:[%s289 + $0x50] sm:$0xff]
        %v363 = vld [vmem:[%s289 + $0x60] sm:$0xff]
        %v364 = vld [vmem:[%s289 + $0x70] sm:$0xff]
        %v365 = vld [vmem:[%s298] sm:$0xff]
        %v366 = vld [vmem:[%s298 + $0x10] sm:$0xff]
        %v367 = vld [vmem:[%s298 + $0x20] sm:$0xff]
        %v368 = vld [vmem:[%s298 + $0x30] sm:$0xff]
        %v369 = vld [vmem:[%s298 + $0x40] sm:$0xff]
        %v370 = vld [vmem:[%s298 + $0x50] sm:$0xff]
        %v371 = vld [vmem:[%s298 + $0x60] sm:$0xff]
        %v372 = vld [vmem:[%s298 + $0x70] sm:$0xff]
        %v373 = vld [vmem:[#allocation8] sm:$0xff]
        %v374 = vld [vmem:[#allocation8 + $0x8] sm:$0xff]
        %v375 = vld [vmem:[#allocation8 + $0x10] sm:$0xff]
        %v376 = vld [vmem:[#allocation8 + $0x18] sm:$0xff]
        %v377 = vld [vmem:[#allocation8 + $0x20] sm:$0xff]
        %v378 = vld [vmem:[#allocation8 + $0x28] sm:$0xff]
        %v379 = vld [vmem:[#allocation8 + $0x30] sm:$0xff]
        %v380 = vld [vmem:[#allocation8 + $0x38] sm:$0xff]
        %vm381 = vcmask 64512
        %v383 = vsel %vm381, %v349, 0
        %v386 = vsel %vm381, %v350, 0
        %v389 = vsel %vm381, %v351, 0
        %v392 = vsel %vm381, %v352, 0
        %v395 = vsel %vm381, %v353, 0
        %v398 = vsel %vm381, %v354, 0
        %v401 = vsel %vm381, %v355, 0
        %v404 = vsel %vm381, %v356, 0
        %v407 = vsel %vm381, %v357, 0
        %v410 = vsel %vm381, %v358, 0
        %v413 = vsel %vm381, %v359, 0
        %v416 = vsel %vm381, %v360, 0
        %v419 = vsel %vm381, %v361, 0
        %v422 = vsel %vm381, %v362, 0
        %v425 = vsel %vm381, %v363, 0
        %v428 = vsel %vm381, %v364, 0
        %430 = vmatprep.subr.mxu0 0.0
        %431 = vmatpush1.xpose.msra.mxu0 %v407
        %432 = vmatprep.subr.mxu0 0.0
        %433 = vmatpush1.xpose.msra.mxu0 %v410
        %434 = vmatprep.subr.mxu0 0.0
        %435 = vmatpush1.xpose.msra.mxu0 %v413
        %436 = vmatprep.subr.mxu0 0.0
        %437 = vmatpush1.xpose.msra.mxu0 %v416
        %438 = vmatprep.subr.mxu0 0.0
        %439 = vmatpush1.xpose.msra.mxu0 %v419
        %440 = vmatprep.subr.mxu0 0.0
        %441 = vmatpush1.xpose.msra.mxu0 %v422
        %442 = vmatprep.subr.mxu0 0.0
        %443 = vmatpush1.xpose.msra.mxu0 %v425
        %444 = vmatprep.subr.mxu0 0.0
        %445 = vmatpush1.xpose.msra.mxu0 %v428
        %446 = vmatprep.subr.mxu0 0.0
        %447 = vmatpush1.xpose.msra.mxu0 0.0
        %448 = vmatprep.subr.mxu0 0.0
        %449 = vmatpush1.xpose.msra.mxu0 0.0
        %450 = vmatprep.subr.mxu0 0.0
        %451 = vmatpush1.xpose.msra.mxu0 0.0
        %452 = vmatprep.subr.mxu0 0.0
        %453 = vmatpush1.xpose.msra.mxu0 0.0
        %454 = vmatprep.subr.mxu0 0.0
        %455 = vmatpush1.xpose.msra.mxu0 0.0
        %456 = vmatprep.subr.mxu0 0.0
        %457 = vmatpush1.xpose.msra.mxu0 0.0
        %458 = vmatprep.subr.mxu0 0.0
        %459 = vmatpush1.xpose.msra.mxu0 0.0
        %460 = vmatprep.subr.mxu0 0.0
        %461 = vmatpush1.xpose.msra.mxu0 0.0
        %462 = vmatprep.subr.mxu0 0.0
        %463 = vmatpush1.xpose.msra.mxu0 0.0
        %464 = vmatprep.subr.mxu0 0.0
        %465 = vmatpush1.xpose.msra.mxu0 0.0
        %466 = vmatprep.subr.mxu0 0.0
        %467 = vmatpush1.xpose.msra.mxu0 0.0
        %468 = vmatprep.subr.mxu0 0.0
        %469 = vmatpush1.xpose.msra.mxu0 0.0
        %470 = vmatprep.subr.mxu0 0.0
        %471 = vmatpush1.xpose.msra.mxu0 0.0
        %472 = vmatprep.subr.mxu0 0.0
        %473 = vmatpush1.xpose.msra.mxu0 0.0
        %474 = vmatprep.subr.mxu0 0.0
        %475 = vmatpush1.xpose.msra.mxu0 0.0
        %476 = vmatprep.subr.mxu0 0.0
        %477 = vmatpush1.xpose.msra.mxu0 0.0
        %478 = vmatprep.subr.mxu0 0.0
        %479 = vmatpush1.xpose.msra.mxu0 0.0
        %480 = vmatprep.subr.mxu0 0.0
        %481 = vmatpush1.xpose.msra.mxu0 0.0
        %482 = vmatprep.subr.mxu0 0.0
        %483 = vmatpush1.xpose.msra.mxu0 0.0
        %484 = vmatprep.subr.mxu0 0.0
        %485 = vmatpush1.xpose.msra.mxu0 0.0
        %486 = vmatprep.subr.mxu0 0.0
        %487 = vmatpush1.xpose.msra.mxu0 0.0
        %488 = vmatprep.subr.mxu0 0.0
        %489 = vmatpush1.xpose.msra.mxu0 0.0
        %490 = vmatprep.subr.mxu0 0.0
        %491 = vmatpush1.xpose.msra.mxu0 0.0
        %492 = vmatprep.subr.mxu0 0.0
        %493 = vmatpush1.xpose.msra.mxu0 0.0
        %494 = vmatprep.mubr.f32.mxu0 0.0
        %495 = vmatmul.mubr.f32.gmra.mrb[0].mxu0 %v383
        %v496 = vpop.f32.mrb[0].mxu0
        %v497 = vadd.f32 %v373, %v496
        %v498 = vpop.f32.mrb[0].mxu0
        %499 = vmatprep.mubr.f32.mxu0 0.0
        %500 = vmatmul.mubr.f32.gmra.mrb[0].mxu0 %v386
        %v501 = vpop.f32.mrb[0].mxu0
        %v502 = vadd.f32 %v374, %v501
        %v503 = vpop.f32.mrb[0].mxu0
        %504 = vmatprep.mubr.f32.mxu0 0.0
        %505 = vmatmul.mubr.f32.gmra.mrb[0].mxu0 %v389
        %v506 = vpop.f32.mrb[0].mxu0
        %v507 = vadd.f32 %v375, %v506
        %v508 = vpop.f32.mrb[0].mxu0
        %509 = vmatprep.mubr.f32.mxu0 0.0
        %510 = vmatmul.mubr.f32.gmra.mrb[0].mxu0 %v392
        %v511 = vpop.f32.mrb[0].mxu0
        %v512 = vadd.f32 %v376, %v511
        %v513 = vpop.f32.mrb[0].mxu0
        %514 = vmatprep.mubr.f32.mxu0 0.0
        %515 = vmatmul.mubr.f32.gmra.mrb[0].mxu0 %v395
        %v516 = vpop.f32.mrb[0].mxu0
        %v517 = vadd.f32 %v377, %v516
        %v518 = vpop.f32.mrb[0].mxu0
        %519 = vmatprep.mubr.f32.mxu0 0.0
        %520 = vmatmul.mubr.f32.gmra.mrb[0].mxu0 %v398
        %v521 = vpop.f32.mrb[0].mxu0
        %v522 = vadd.f32 %v378, %v521
        %v523 = vpop.f32.mrb[0].mxu0
        %524 = vmatprep.mubr.f32.mxu0 0.0
        %525 = vmatmul.mubr.f32.gmra.mrb[0].mxu0 %v401
        %v526 = vpop.f32.mrb[0].mxu0
        %v527 = vadd.f32 %v379, %v526
        %v528 = vpop.f32.mrb[0].mxu0
        %529 = vmatprep.mubr.f32.mxu0 0.0
        %530 = vmatmul.mubr.f32.gmra.mrb[0].mxu0 %v404
        %v531 = vpop.f32.mrb[0].mxu0
        %v532 = vadd.f32 %v380, %v531
        %v533 = vpop.f32.mrb[0].mxu0
        %534 = vdwg.mxu0
        %vm535 = vcmask 523264
        %v536 = vsel %vm535, %v497, -inf
        %537 = vmax.xlane.f32.xlu0 %v536
        %v538 = vpop.xlane.xlu0 %537
        %v539 = vsel %vm535, %v502, -inf
        %540 = vmax.xlane.f32.xlu0 %v539
        %v541 = vpop.xlane.xlu0 %540
        %v542 = vsel %vm535, %v507, -inf
        %543 = vmax.xlane.f32.xlu0 %v542
        %v544 = vpop.xlane.xlu0 %543
        %v545 = vsel %vm535, %v512, -inf
        %546 = vmax.xlane.f32.xlu0 %v545
        %v547 = vpop.xlane.xlu0 %546
        %v548 = vsel %vm535, %v517, -inf
        %549 = vmax.xlane.f32.xlu0 %v548
        %v550 = vpop.xlane.xlu0 %549
        %v551 = vsel %vm535, %v522, -inf
        %552 = vmax.xlane.f32.xlu0 %v551
        %v553 = vpop.xlane.xlu0 %552
        %v554 = vsel %vm535, %v527, -inf
        %555 = vmax.xlane.f32.xlu0 %v554
        %v556 = vpop.xlane.xlu0 %555
        %v557 = vsel %vm535, %v532, -inf
        %558 = vmax.xlane.f32.xlu0 %v557
        %v559 = vpop.xlane.xlu0 %558
        %v560 = vsub.f32 %v497, %v538
        %v561 = vsub.f32 %v502, %v541
        %v562 = vsub.f32 %v507, %v544
        %v563 = vsub.f32 %v512, %v547
        %v564 = vsub.f32 %v517, %v550
        %v565 = vsub.f32 %v522, %v553
        %v566 = vsub.f32 %v527, %v556
        %v567 = vsub.f32 %v532, %v559
        %v568 = vmul.f32 %v560, 1.442695
        %v569 = vpow.pop %v568
        %v570 = vmul.f32 %v561, 1.442695
        %v571 = vpow.pop %v570
        %v572 = vmul.f32 %v562, 1.442695
        %v573 = vpow.pop %v572
        %v574 = vmul.f32 %v563, 1.442695
        %v575 = vpow.pop %v574
        %v576 = vmul.f32 %v564, 1.442695
        %v577 = vpow.pop %v576
        %v578 = vmul.f32 %v565, 1.442695
        %v579 = vpow.pop %v578
        %v580 = vmul.f32 %v566, 1.442695
        %v581 = vpow.pop %v580
        %v582 = vmul.f32 %v567, 1.442695
        %v583 = vpow.pop %v582
        %v584 = vsel %vm535, %v569, 0.0
        %585 = vadd.xlane.f32.xlu0 %v584
        %v586 = vpop.xlane.xlu0 %585
        %v587 = vsel %vm535, %v571, 0.0
        %588 = vadd.xlane.f32.xlu0 %v587
        %v589 = vpop.xlane.xlu0 %588
        %v590 = vsel %vm535, %v573, 0.0
        %591 = vadd.xlane.f32.xlu0 %v590
        %v592 = vpop.xlane.xlu0 %591
        %v593 = vsel %vm535, %v575, 0.0
        %594 = vadd.xlane.f32.xlu0 %v593
        %v595 = vpop.xlane.xlu0 %594
        %v596 = vsel %vm535, %v577, 0.0
        %597 = vadd.xlane.f32.xlu0 %v596
        %v598 = vpop.xlane.xlu0 %597
        %v599 = vsel %vm535, %v579, 0.0
        %600 = vadd.xlane.f32.xlu0 %v599
        %v601 = vpop.xlane.xlu0 %600
        %v602 = vsel %vm535, %v581, 0.0
        %603 = vadd.xlane.f32.xlu0 %v602
        %v604 = vpop.xlane.xlu0 %603
        %v605 = vsel %vm535, %v583, 0.0
        %606 = vadd.xlane.f32.xlu0 %v605
        %v607 = vpop.xlane.xlu0 %606
        %v609 = vsel %vm535, %v569, 0
        %v612 = vsel %vm535, %v571, 0
        %v615 = vsel %vm535, %v573, 0
        %v618 = vsel %vm535, %v575, 0
        %v621 = vsel %vm535, %v577, 0
        %v624 = vsel %vm535, %v579, 0
        %v627 = vsel %vm535, %v581, 0
        %v630 = vsel %vm535, %v583, 0
        %632 = vmatprep.subr.mxu0 0.0
        %633 = vmatpush1.msra.mxu0 %v365
        %634 = vmatprep.subr.mxu0 0.0
        %635 = vmatpush1.msra.mxu0 %v366
        %636 = vmatprep.subr.mxu0 0.0
        %637 = vmatpush1.msra.mxu0 %v367
        %638 = vmatprep.subr.mxu0 0.0
        %639 = vmatpush1.msra.mxu0 %v368
        %640 = vmatprep.subr.mxu0 0.0
        %641 = vmatpush1.msra.mxu0 %v369
        %642 = vmatprep.subr.mxu0 0.0
        %643 = vmatpush1.msra.mxu0 %v370
        %644 = vmatprep.subr.mxu0 0.0
        %645 = vmatpush1.msra.mxu0 %v371
        %646 = vmatprep.subr.mxu0 0.0
        %647 = vmatpush1.msra.mxu0 %v372
        %648 = vmatprep.subr.mxu0 0.0
        %649 = vmatpush1.msra.mxu0 0.0
        %650 = vmatprep.subr.mxu0 0.0
        %651 = vmatpush1.msra.mxu0 0.0
        %652 = vmatprep.subr.mxu0 0.0
        %653 = vmatpush1.msra.mxu0 0.0
        %654 = vmatprep.subr.mxu0 0.0
        %655 = vmatpush1.msra.mxu0 0.0
        %656 = vmatprep.subr.mxu0 0.0
        %657 = vmatpush1.msra.mxu0 0.0
        %658 = vmatprep.subr.mxu0 0.0
        %659 = vmatpush1.msra.mxu0 0.0
        %660 = vmatprep.subr.mxu0 0.0
        %661 = vmatpush1.msra.mxu0 0.0
        %662 = vmatprep.subr.mxu0 0.0
        %663 = vmatpush1.msra.mxu0 0.0
        %664 = vmatprep.subr.mxu0 0.0
        %665 = vmatpush1.msra.mxu0 0.0
        %666 = vmatprep.subr.mxu0 0.0
        %667 = vmatpush1.msra.mxu0 0.0
        %668 = vmatprep.subr.mxu0 0.0
        %669 = vmatpush1.msra.mxu0 0.0
        %670 = vmatprep.subr.mxu0 0.0
        %671 = vmatpush1.msra.mxu0 0.0
        %672 = vmatprep.subr.mxu0 0.0
        %673 = vmatpush1.msra.mxu0 0.0
        %674 = vmatprep.subr.mxu0 0.0
        %675 = vmatpush1.msra.mxu0 0.0
        %676 = vmatprep.subr.mxu0 0.0
        %677 = vmatpush1.msra.mxu0 0.0
        %678 = vmatprep.subr.mxu0 0.0
        %679 = vmatpush1.msra.mxu0 0.0
        %680 = vmatprep.subr.mxu0 0.0
        %681 = vmatpush1.msra.mxu0 0.0
        %682 = vmatprep.subr.mxu0 0.0
        %683 = vmatpush1.msra.mxu0 0.0
        %684 = vmatprep.subr.mxu0 0.0
        %685 = vmatpush1.msra.mxu0 0.0
        %686 = vmatprep.subr.mxu0 0.0
        %687 = vmatpush1.msra.mxu0 0.0
        %688 = vmatprep.subr.mxu0 0.0
        %689 = vmatpush1.msra.mxu0 0.0
        %690 = vmatprep.subr.mxu0 0.0
        %691 = vmatpush1.msra.mxu0 0.0
        %692 = vmatprep.subr.mxu0 0.0
        %693 = vmatpush1.msra.mxu0 0.0
        %694 = vmatprep.subr.mxu0 0.0
        %695 = vmatpush1.msra.mxu0 0.0
        %696 = vmatprep.mubr.f32.mxu0 0.0
        %697 = vmatmul.mubr.f32.gmra.mrb[0].mxu0 %v609
        %v698 = vpop.f32.mrb[0].mxu0
        %v699 = vadd.f32 0.0, %v698
        %v700 = vpop.f32.mrb[0].mxu0
        %701 = vmatprep.mubr.f32.mxu0 0.0
        %702 = vmatmul.mubr.f32.gmra.mrb[0].mxu0 %v612
        %v703 = vpop.f32.mrb[0].mxu0
        %v704 = vadd.f32 0.0, %v703
        %v705 = vpop.f32.mrb[0].mxu0
        %706 = vmatprep.mubr.f32.mxu0 0.0
        %707 = vmatmul.mubr.f32.gmra.mrb[0].mxu0 %v615
        %v708 = vpop.f32.mrb[0].mxu0
        %v709 = vadd.f32 0.0, %v708
        %v710 = vpop.f32.mrb[0].mxu0
        %711 = vmatprep.mubr.f32.mxu0 0.0
        %712 = vmatmul.mubr.f32.gmra.mrb[0].mxu0 %v618
        %v713 = vpop.f32.mrb[0].mxu0
        %v714 = vadd.f32 0.0, %v713
        %v715 = vpop.f32.mrb[0].mxu0
        %716 = vmatprep.mubr.f32.mxu0 0.0
        %717 = vmatmul.mubr.f32.gmra.mrb[0].mxu0 %v621
        %v718 = vpop.f32.mrb[0].mxu0
        %v719 = vadd.f32 0.0, %v718
        %v720 = vpop.f32.mrb[0].mxu0
        %721 = vmatprep.mubr.f32.mxu0 0.0
        %722 = vmatmul.mubr.f32.gmra.mrb[0].mxu0 %v624
        %v723 = vpop.f32.mrb[0].mxu0
        %v724 = vadd.f32 0.0, %v723
        %v725 = vpop.f32.mrb[0].mxu0
        %726 = vmatprep.mubr.f32.mxu0 0.0
        %727 = vmatmul.mubr.f32.gmra.mrb[0].mxu0 %v627
        %v728 = vpop.f32.mrb[0].mxu0
        %v729 = vadd.f32 0.0, %v728
        %v730 = vpop.f32.mrb[0].mxu0
        %731 = vmatprep.mubr.f32.mxu0 0.0
        %732 = vmatmul.mubr.f32.gmra.mrb[0].mxu0 %v630
        %v733 = vpop.f32.mrb[0].mxu0
        %v734 = vadd.f32 0.0, %v733
        %v735 = vpop.f32.mrb[0].mxu0
        %736 = vdwg.mxu0
        %v737 = vrcp.pop %v586
        %v738 = vmul.f32 %v699, %v737
        %v739 = vrcp.pop %v589
        %v740 = vmul.f32 %v704, %v739
        %v741 = vrcp.pop %v592
        %v742 = vmul.f32 %v709, %v741
        %v743 = vrcp.pop %v595
        %v744 = vmul.f32 %v714, %v743
        %v745 = vrcp.pop %v598
        %v746 = vmul.f32 %v719, %v745
        %v747 = vrcp.pop %v601
        %v748 = vmul.f32 %v724, %v747
        %v749 = vrcp.pop %v604
        %v750 = vmul.f32 %v729, %v749
        %v751 = vrcp.pop %v607
        %v752 = vmul.f32 %v734, %v751
        %753 = vst.msk [vmem:[%s336] sm:$0xff] %vm381, %v738
        %754 = vst.msk [vmem:[%s336 + $0x10] sm:$0xff] %vm381, %v740
        %755 = vst.msk [vmem:[%s336 + $0x20] sm:$0xff] %vm381, %v742
        %756 = vst.msk [vmem:[%s336 + $0x30] sm:$0xff] %vm381, %v744
        %757 = vst.msk [vmem:[%s336 + $0x40] sm:$0xff] %vm381, %v746
        %758 = vst.msk [vmem:[%s336 + $0x50] sm:$0xff] %vm381, %v748
        %759 = vst.msk [vmem:[%s336 + $0x60] sm:$0xff] %vm381, %v750
        %760 = vst.msk [vmem:[%s336 + $0x70] sm:$0xff] %vm381, %v752
        %v761 = vld [vmem:[%s280] sm:$0xff]
        %v762 = vld [vmem:[%s280 + $0x10] sm:$0xff]
        %v763 = vld [vmem:[%s280 + $0x20] sm:$0xff]
        %v764 = vld [vmem:[%s280 + $0x30] sm:$0xff]
        %v765 = vld [vmem:[%s280 + $0x40] sm:$0xff]
        %v766 = vld [vmem:[%s280 + $0x50] sm:$0xff]
        %v767 = vld [vmem:[%s280 + $0x60] sm:$0xff]
        %v768 = vld [vmem:[%s280 + $0x70] sm:$0xff]
        %v769 = vmul.f32 %v761, 0.35355338
        %v770 = vmul.f32 %v762, 0.35355338
        %v771 = vmul.f32 %v763, 0.35355338
        %v772 = vmul.f32 %v764, 0.35355338
        %v773 = vmul.f32 %v765, 0.35355338
        %v774 = vmul.f32 %v766, 0.35355338
        %v775 = vmul.f32 %v767, 0.35355338
        %v776 = vmul.f32 %v768, 0.35355338
        %v777 = vld [vmem:[%s289] sm:$0xff]
        %v778 = vld [vmem:[%s289 + $0x10] sm:$0xff]
        %v779 = vld [vmem:[%s289 + $0x20] sm:$0xff]
        %v780 = vld [vmem:[%s289 + $0x30] sm:$0xff]
        %v781 = vld [vmem:[%s289 + $0x40] sm:$0xff]
        %v782 = vld [vmem:[%s289 + $0x50] sm:$0xff]
        %v783 = vld [vmem:[%s289 + $0x60] sm:$0xff]
        %v784 = vld [vmem:[%s289 + $0x70] sm:$0xff]
        %v785 = vld [vmem:[%s298] sm:$0xff]
        %v786 = vld [vmem:[%s298 + $0x10] sm:$0xff]
        %v787 = vld [vmem:[%s298 + $0x20] sm:$0xff]
        %v788 = vld [vmem:[%s298 + $0x30] sm:$0xff]
        %v789 = vld [vmem:[%s298 + $0x40] sm:$0xff]
        %v790 = vld [vmem:[%s298 + $0x50] sm:$0xff]
        %v791 = vld [vmem:[%s298 + $0x60] sm:$0xff]
        %v792 = vld [vmem:[%s298 + $0x70] sm:$0xff]
        %s793 = scalar_lea.vmem [#allocation8], 64
        %v794 = vld [vmem:[%s793] sm:$0xff]
        %v795 = vld [vmem:[%s793 + $0x8] sm:$0xff]
        %v796 = vld [vmem:[%s793 + $0x10] sm:$0xff]
        %v797 = vld [vmem:[%s793 + $0x18] sm:$0xff]
        %v798 = vld [vmem:[%s793 + $0x20] sm:$0xff]
        %v799 = vld [vmem:[%s793 + $0x28] sm:$0xff]
        %v800 = vld [vmem:[%s793 + $0x30] sm:$0xff]
        %v801 = vld [vmem:[%s793 + $0x38] sm:$0xff]
        %810 = vrot.lane.b32.xlu0 %v769, 120
        %v811 = vpop.permute.xlu0 %810
        %812 = vrot.lane.b32.xlu0 %v770, 120
        %v813 = vpop.permute.xlu0 %812
        %814 = vrot.lane.b32.xlu0 %v771, 120
        %v815 = vpop.permute.xlu0 %814
        %816 = vrot.lane.b32.xlu0 %v772, 120
        %v817 = vpop.permute.xlu0 %816
        %818 = vrot.lane.b32.xlu0 %v773, 120
        %v819 = vpop.permute.xlu0 %818
        %820 = vrot.lane.b32.xlu0 %v774, 120
        %v821 = vpop.permute.xlu0 %820
        %822 = vrot.lane.b32.xlu0 %v775, 120
        %v823 = vpop.permute.xlu0 %822
        %824 = vrot.lane.b32.xlu0 %v776, 120
        %v825 = vpop.permute.xlu0 %824
        %834 = vrot.lane.b32.xlu0 %v777, 120
        %v835 = vpop.permute.xlu0 %834
        %836 = vrot.lane.b32.xlu0 %v778, 120
        %v837 = vpop.permute.xlu0 %836
        %838 = vrot.lane.b32.xlu0 %v779, 120
        %v839 = vpop.permute.xlu0 %838
        %840 = vrot.lane.b32.xlu0 %v780, 120
        %v841 = vpop.permute.xlu0 %840
        %842 = vrot.lane.b32.xlu0 %v781, 120
        %v843 = vpop.permute.xlu0 %842
        %844 = vrot.lane.b32.xlu0 %v782, 120
        %v845 = vpop.permute.xlu0 %844
        %846 = vrot.lane.b32.xlu0 %v783, 120
        %v847 = vpop.permute.xlu0 %846
        %848 = vrot.lane.b32.xlu0 %v784, 120
        %v849 = vpop.permute.xlu0 %848
        %v850 = vsel %vm381, %v811, 0
        %v852 = vsel %vm381, %v813, 0
        %v854 = vsel %vm381, %v815, 0
        %v856 = vsel %vm381, %v817, 0
        %v858 = vsel %vm381, %v819, 0
        %v860 = vsel %vm381, %v821, 0
        %v862 = vsel %vm381, %v823, 0
        %v864 = vsel %vm381, %v825, 0
        %v866 = vsel %vm381, %v835, 0
        %v868 = vsel %vm381, %v837, 0
        %v870 = vsel %vm381, %v839, 0
        %v872 = vsel %vm381, %v841, 0
        %v874 = vsel %vm381, %v843, 0
        %v876 = vsel %vm381, %v845, 0
        %v878 = vsel %vm381, %v847, 0
        %v880 = vsel %vm381, %v849, 0
        %882 = vmatprep.subr.mxu0 0.0
        %883 = vmatpush1.xpose.msra.mxu0 %v866
        %884 = vmatprep.subr.mxu0 0.0
        %885 = vmatpush1.xpose.msra.mxu0 %v868
        %886 = vmatprep.subr.mxu0 0.0
        %887 = vmatpush1.xpose.msra.mxu0 %v870
        %888 = vmatprep.subr.mxu0 0.0
        %889 = vmatpush1.xpose.msra.mxu0 %v872
        %890 = vmatprep.subr.mxu0 0.0
        %891 = vmatpush1.xpose.msra.mxu0 %v874
        %892 = vmatprep.subr.mxu0 0.0
        %893 = vmatpush1.xpose.msra.mxu0 %v876
        %894 = vmatprep.subr.mxu0 0.0
        %895 = vmatpush1.xpose.msra.mxu0 %v878
        %896 = vmatprep.subr.mxu0 0.0
        %897 = vmatpush1.xpose.msra.mxu0 %v880
        %898 = vmatprep.subr.mxu0 0.0
        %899 = vmatpush1.xpose.msra.mxu0 0.0
        %900 = vmatprep.subr.mxu0 0.0
        %901 = vmatpush1.xpose.msra.mxu0 0.0
        %902 = vmatprep.subr.mxu0 0.0
        %903 = vmatpush1.xpose.msra.mxu0 0.0
        %904 = vmatprep.subr.mxu0 0.0
        %905 = vmatpush1.xpose.msra.mxu0 0.0
        %906 = vmatprep.subr.mxu0 0.0
        %907 = vmatpush1.xpose.msra.mxu0 0.0
        %908 = vmatprep.subr.mxu0 0.0
        %909 = vmatpush1.xpose.msra.mxu0 0.0
        %910 = vmatprep.subr.mxu0 0.0
        %911 = vmatpush1.xpose.msra.mxu0 0.0
        %912 = vmatprep.subr.mxu0 0.0
        %913 = vmatpush1.xpose.msra.mxu0 0.0
        %914 = vmatprep.subr.mxu0 0.0
        %915 = vmatpush1.xpose.msra.mxu0 0.0
        %916 = vmatprep.subr.mxu0 0.0
        %917 = vmatpush1.xpose.msra.mxu0 0.0
        %918 = vmatprep.subr.mxu0 0.0
        %919 = vmatpush1.xpose.msra.mxu0 0.0
        %920 = vmatprep.subr.mxu0 0.0
        %921 = vmatpush1.xpose.msra.mxu0 0.0
        %922 = vmatprep.subr.mxu0 0.0
        %923 = vmatpush1.xpose.msra.mxu0 0.0
        %924 = vmatprep.subr.mxu0 0.0
        %925 = vmatpush1.xpose.msra.mxu0 0.0
        %926 = vmatprep.subr.mxu0 0.0
        %927 = vmatpush1.xpose.msra.mxu0 0.0
        %928 = vmatprep.subr.mxu0 0.0
        %929 = vmatpush1.xpose.msra.mxu0 0.0
        %930 = vmatprep.subr.mxu0 0.0
        %931 = vmatpush1.xpose.msra.mxu0 0.0
        %932 = vmatprep.subr.mxu0 0.0
        %933 = vmatpush1.xpose.msra.mxu0 0.0
        %934 = vmatprep.subr.mxu0 0.0
        %935 = vmatpush1.xpose.msra.mxu0 0.0
        %936 = vmatprep.subr.mxu0 0.0
        %937 = vmatpush1.xpose.msra.mxu0 0.0
        %938 = vmatprep.subr.mxu0 0.0
        %939 = vmatpush1.xpose.msra.mxu0 0.0
        %940 = vmatprep.subr.mxu0 0.0
        %941 = vmatpush1.xpose.msra.mxu0 0.0
        %942 = vmatprep.subr.mxu0 0.0
        %943 = vmatpush1.xpose.msra.mxu0 0.0
        %944 = vmatprep.subr.mxu0 0.0
        %945 = vmatpush1.xpose.msra.mxu0 0.0
        %946 = vmatprep.mubr.f32.mxu0 0.0
        %947 = vmatmul.mubr.f32.gmra.mrb[0].mxu0 %v850
        %v948 = vpop.f32.mrb[0].mxu0
        %v949 = vadd.f32 %v794, %v948
        %v950 = vpop.f32.mrb[0].mxu0
        %951 = vmatprep.mubr.f32.mxu0 0.0
        %952 = vmatmul.mubr.f32.gmra.mrb[0].mxu0 %v852
        %v953 = vpop.f32.mrb[0].mxu0
        %v954 = vadd.f32 %v795, %v953
        %v955 = vpop.f32.mrb[0].mxu0
        %956 = vmatprep.mubr.f32.mxu0 0.0
        %957 = vmatmul.mubr.f32.gmra.mrb[0].mxu0 %v854
        %v958 = vpop.f32.mrb[0].mxu0
        %v959 = vadd.f32 %v796, %v958
        %v960 = vpop.f32.mrb[0].mxu0
        %961 = vmatprep.mubr.f32.mxu0 0.0
        %962 = vmatmul.mubr.f32.gmra.mrb[0].mxu0 %v856
        %v963 = vpop.f32.mrb[0].mxu0
        %v964 = vadd.f32 %v797, %v963
        %v965 = vpop.f32.mrb[0].mxu0
        %966 = vmatprep.mubr.f32.mxu0 0.0
        %967 = vmatmul.mubr.f32.gmra.mrb[0].mxu0 %v858
        %v968 = vpop.f32.mrb[0].mxu0
        %v969 = vadd.f32 %v798, %v968
        %v970 = vpop.f32.mrb[0].mxu0
        %971 = vmatprep.mubr.f32.mxu0 0.0
        %972 = vmatmul.mubr.f32.gmra.mrb[0].mxu0 %v860
        %v973 = vpop.f32.mrb[0].mxu0
        %v974 = vadd.f32 %v799, %v973
        %v975 = vpop.f32.mrb[0].mxu0
        %976 = vmatprep.mubr.f32.mxu0 0.0
        %977 = vmatmul.mubr.f32.gmra.mrb[0].mxu0 %v862
        %v978 = vpop.f32.mrb[0].mxu0
        %v979 = vadd.f32 %v800, %v978
        %v980 = vpop.f32.mrb[0].mxu0
        %981 = vmatprep.mubr.f32.mxu0 0.0
        %982 = vmatmul.mubr.f32.gmra.mrb[0].mxu0 %v864
        %v983 = vpop.f32.mrb[0].mxu0
        %v984 = vadd.f32 %v801, %v983
        %v985 = vpop.f32.mrb[0].mxu0
        %986 = vdwg.mxu0
        %v987 = vsel %vm535, %v949, -inf
        %988 = vmax.xlane.f32.xlu0 %v987
        %v989 = vpop.xlane.xlu0 %988
        %v990 = vsel %vm535, %v954, -inf
        %991 = vmax.xlane.f32.xlu0 %v990
        %v992 = vpop.xlane.xlu0 %991
        %v993 = vsel %vm535, %v959, -inf
        %994 = vmax.xlane.f32.xlu0 %v993
        %v995 = vpop.xlane.xlu0 %994
        %v996 = vsel %vm535, %v964, -inf
        %997 = vmax.xlane.f32.xlu0 %v996
        %v998 = vpop.xlane.xlu0 %997
        %v999 = vsel %vm535, %v969, -inf
        %1000 = vmax.xlane.f32.xlu0 %v999
        %v1001 = vpop.xlane.xlu0 %1000
        %v1002 = vsel %vm535, %v974, -inf
        %1003 = vmax.xlane.f32.xlu0 %v1002
        %v1004 = vpop.xlane.xlu0 %1003
        %v1005 = vsel %vm535, %v979, -inf
        %1006 = vmax.xlane.f32.xlu0 %v1005
        %v1007 = vpop.xlane.xlu0 %1006
        %v1008 = vsel %vm535, %v984, -inf
        %1009 = vmax.xlane.f32.xlu0 %v1008
        %v1010 = vpop.xlane.xlu0 %1009
        %v1011 = vsub.f32 %v949, %v989
        %v1012 = vsub.f32 %v954, %v992
        %v1013 = vsub.f32 %v959, %v995
        %v1014 = vsub.f32 %v964, %v998
        %v1015 = vsub.f32 %v969, %v1001
        %v1016 = vsub.f32 %v974, %v1004
        %v1017 = vsub.f32 %v979, %v1007
        %v1018 = vsub.f32 %v984, %v1010
        %v1019 = vmul.f32 %v1011, 1.442695
        %v1020 = vpow.pop %v1019
        %v1021 = vmul.f32 %v1012, 1.442695
        %v1022 = vpow.pop %v1021
        %v1023 = vmul.f32 %v1013, 1.442695
        %v1024 = vpow.pop %v1023
        %v1025 = vmul.f32 %v1014, 1.442695
        %v1026 = vpow.pop %v1025
        %v1027 = vmul.f32 %v1015, 1.442695
        %v1028 = vpow.pop %v1027
        %v1029 = vmul.f32 %v1016, 1.442695
        %v1030 = vpow.pop %v1029
        %v1031 = vmul.f32 %v1017, 1.442695
        %v1032 = vpow.pop %v1031
        %v1033 = vmul.f32 %v1018, 1.442695
        %v1034 = vpow.pop %v1033
        %v1035 = vsel %vm535, %v1020, 0.0
        %1036 = vadd.xlane.f32.xlu0 %v1035
        %v1037 = vpop.xlane.xlu0 %1036
        %v1038 = vsel %vm535, %v1022, 0.0
        %1039 = vadd.xlane.f32.xlu0 %v1038
        %v1040 = vpop.xlane.xlu0 %1039
        %v1041 = vsel %vm535, %v1024, 0.0
        %1042 = vadd.xlane.f32.xlu0 %v1041
        %v1043 = vpop.xlane.xlu0 %1042
        %v1044 = vsel %vm535, %v1026, 0.0
        %1045 = vadd.xlane.f32.xlu0 %v1044
        %v1046 = vpop.xlane.xlu0 %1045
        %v1047 = vsel %vm535, %v1028, 0.0
        %1048 = vadd.xlane.f32.xlu0 %v1047
        %v1049 = vpop.xlane.xlu0 %1048
        %v1050 = vsel %vm535, %v1030, 0.0
        %1051 = vadd.xlane.f32.xlu0 %v1050
        %v1052 = vpop.xlane.xlu0 %1051
        %v1053 = vsel %vm535, %v1032, 0.0
        %1054 = vadd.xlane.f32.xlu0 %v1053
        %v1055 = vpop.xlane.xlu0 %1054
        %v1056 = vsel %vm535, %v1034, 0.0
        %1057 = vadd.xlane.f32.xlu0 %v1056
        %v1058 = vpop.xlane.xlu0 %1057
        %1067 = vrot.lane.b32.xlu0 %v785, 120
        %v1068 = vpop.permute.xlu0 %1067
        %1069 = vrot.lane.b32.xlu0 %v786, 120
        %v1070 = vpop.permute.xlu0 %1069
        %1071 = vrot.lane.b32.xlu0 %v787, 120
        %v1072 = vpop.permute.xlu0 %1071
        %1073 = vrot.lane.b32.xlu0 %v788, 120
        %v1074 = vpop.permute.xlu0 %1073
        %1075 = vrot.lane.b32.xlu0 %v789, 120
        %v1076 = vpop.permute.xlu0 %1075
        %1077 = vrot.lane.b32.xlu0 %v790, 120
        %v1078 = vpop.permute.xlu0 %1077
        %1079 = vrot.lane.b32.xlu0 %v791, 120
        %v1080 = vpop.permute.xlu0 %1079
        %1081 = vrot.lane.b32.xlu0 %v792, 120
        %v1082 = vpop.permute.xlu0 %1081
        %v1092 = vsel %vm535, %v1020, 0
        %v1095 = vsel %vm535, %v1022, 0
        %v1098 = vsel %vm535, %v1024, 0
        %v1101 = vsel %vm535, %v1026, 0
        %v1104 = vsel %vm535, %v1028, 0
        %v1107 = vsel %vm535, %v1030, 0
        %v1110 = vsel %vm535, %v1032, 0
        %v1113 = vsel %vm535, %v1034, 0
        %1115 = vmatprep.subr.mxu0 0.0
        %1116 = vmatpush1.msra.mxu0 %v1068
        %1117 = vmatprep.subr.mxu0 0.0
        %1118 = vmatpush1.msra.mxu0 %v1070
        %1119 = vmatprep.subr.mxu0 0.0
        %1120 = vmatpush1.msra.mxu0 %v1072
        %1121 = vmatprep.subr.mxu0 0.0
        %1122 = vmatpush1.msra.mxu0 %v1074
        %1123 = vmatprep.subr.mxu0 0.0
        %1124 = vmatpush1.msra.mxu0 %v1076
        %1125 = vmatprep.subr.mxu0 0.0
        %1126 = vmatpush1.msra.mxu0 %v1078
        %1127 = vmatprep.subr.mxu0 0.0
        %1128 = vmatpush1.msra.mxu0 %v1080
        %1129 = vmatprep.subr.mxu0 0.0
        %1130 = vmatpush1.msra.mxu0 %v1082
        %1131 = vmatprep.subr.mxu0 0.0
        %1132 = vmatpush1.msra.mxu0 0.0
        %1133 = vmatprep.subr.mxu0 0.0
        %1134 = vmatpush1.msra.mxu0 0.0
        %1135 = vmatprep.subr.mxu0 0.0
        %1136 = vmatpush1.msra.mxu0 0.0
        %1137 = vmatprep.subr.mxu0 0.0
        %1138 = vmatpush1.msra.mxu0 0.0
        %1139 = vmatprep.subr.mxu0 0.0
        %1140 = vmatpush1.msra.mxu0 0.0
        %1141 = vmatprep.subr.mxu0 0.0
        %1142 = vmatpush1.msra.mxu0 0.0
        %1143 = vmatprep.subr.mxu0 0.0
        %1144 = vmatpush1.msra.mxu0 0.0
        %1145 = vmatprep.subr.mxu0 0.0
        %1146 = vmatpush1.msra.mxu0 0.0
        %1147 = vmatprep.subr.mxu0 0.0
        %1148 = vmatpush1.msra.mxu0 0.0
        %1149 = vmatprep.subr.mxu0 0.0
        %1150 = vmatpush1.msra.mxu0 0.0
        %1151 = vmatprep.subr.mxu0 0.0
        %1152 = vmatpush1.msra.mxu0 0.0
        %1153 = vmatprep.subr.mxu0 0.0
        %1154 = vmatpush1.msra.mxu0 0.0
        %1155 = vmatprep.subr.mxu0 0.0
        %1156 = vmatpush1.msra.mxu0 0.0
        %1157 = vmatprep.subr.mxu0 0.0
        %1158 = vmatpush1.msra.mxu0 0.0
        %1159 = vmatprep.subr.mxu0 0.0
        %1160 = vmatpush1.msra.mxu0 0.0
        %1161 = vmatprep.subr.mxu0 0.0
        %1162 = vmatpush1.msra.mxu0 0.0
        %1163 = vmatprep.subr.mxu0 0.0
        %1164 = vmatpush1.msra.mxu0 0.0
        %1165 = vmatprep.subr.mxu0 0.0
        %1166 = vmatpush1.msra.mxu0 0.0
        %1167 = vmatprep.subr.mxu0 0.0
        %1168 = vmatpush1.msra.mxu0 0.0
        %1169 = vmatprep.subr.mxu0 0.0
        %1170 = vmatpush1.msra.mxu0 0.0
        %1171 = vmatprep.subr.mxu0 0.0
        %1172 = vmatpush1.msra.mxu0 0.0
        %1173 = vmatprep.subr.mxu0 0.0
        %1174 = vmatpush1.msra.mxu0 0.0
        %1175 = vmatprep.subr.mxu0 0.0
        %1176 = vmatpush1.msra.mxu0 0.0
        %1177 = vmatprep.subr.mxu0 0.0
        %1178 = vmatpush1.msra.mxu0 0.0
        %1179 = vmatprep.mubr.f32.mxu0 0.0
        %1180 = vmatmul.mubr.f32.gmra.mrb[0].mxu0 %v1092
        %v1181 = vpop.f32.mrb[0].mxu0
        %v1182 = vadd.f32 0.0, %v1181
        %v1183 = vpop.f32.mrb[0].mxu0
        %1184 = vmatprep.mubr.f32.mxu0 0.0
        %1185 = vmatmul.mubr.f32.gmra.mrb[0].mxu0 %v1095
        %v1186 = vpop.f32.mrb[0].mxu0
        %v1187 = vadd.f32 0.0, %v1186
        %v1188 = vpop.f32.mrb[0].mxu0
        %1189 = vmatprep.mubr.f32.mxu0 0.0
        %1190 = vmatmul.mubr.f32.gmra.mrb[0].mxu0 %v1098
        %v1191 = vpop.f32.mrb[0].mxu0
        %v1192 = vadd.f32 0.0, %v1191
        %v1193 = vpop.f32.mrb[0].mxu0
        %1194 = vmatprep.mubr.f32.mxu0 0.0
        %1195 = vmatmul.mubr.f32.gmra.mrb[0].mxu0 %v1101
        %v1196 = vpop.f32.mrb[0].mxu0
        %v1197 = vadd.f32 0.0, %v1196
        %v1198 = vpop.f32.mrb[0].mxu0
        %1199 = vmatprep.mubr.f32.mxu0 0.0
        %1200 = vmatmul.mubr.f32.gmra.mrb[0].mxu0 %v1104
        %v1201 = vpop.f32.mrb[0].mxu0
        %v1202 = vadd.f32 0.0, %v1201
        %v1203 = vpop.f32.mrb[0].mxu0
        %1204 = vmatprep.mubr.f32.mxu0 0.0
        %1205 = vmatmul.mubr.f32.gmra.mrb[0].mxu0 %v1107
        %v1206 = vpop.f32.mrb[0].mxu0
        %v1207 = vadd.f32 0.0, %v1206
        %v1208 = vpop.f32.mrb[0].mxu0
        %1209 = vmatprep.mubr.f32.mxu0 0.0
        %1210 = vmatmul.mubr.f32.gmra.mrb[0].mxu0 %v1110
        %v1211 = vpop.f32.mrb[0].mxu0
        %v1212 = vadd.f32 0.0, %v1211
        %v1213 = vpop.f32.mrb[0].mxu0
        %1214 = vmatprep.mubr.f32.mxu0 0.0
        %1215 = vmatmul.mubr.f32.gmra.mrb[0].mxu0 %v1113
        %v1216 = vpop.f32.mrb[0].mxu0
        %v1217 = vadd.f32 0.0, %v1216
        %v1218 = vpop.f32.mrb[0].mxu0
        %1219 = vdwg.mxu0
        %v1220 = vrcp.pop %v1037
        %v1221 = vmul.f32 %v1182, %v1220
        %v1222 = vrcp.pop %v1040
        %v1223 = vmul.f32 %v1187, %v1222
        %v1224 = vrcp.pop %v1043
        %v1225 = vmul.f32 %v1192, %v1224
        %v1226 = vrcp.pop %v1046
        %v1227 = vmul.f32 %v1197, %v1226
        %v1228 = vrcp.pop %v1049
        %v1229 = vmul.f32 %v1202, %v1228
        %v1230 = vrcp.pop %v1052
        %v1231 = vmul.f32 %v1207, %v1230
        %v1232 = vrcp.pop %v1055
        %v1233 = vmul.f32 %v1212, %v1232
        %v1234 = vrcp.pop %v1058
        %v1235 = vmul.f32 %v1217, %v1234
        %1244 = vrot.lane.b32.xlu0 %v1221, 8
        %v1245 = vpop.permute.xlu0 %1244
        %1246 = vrot.lane.b32.xlu0 %v1223, 8
        %v1247 = vpop.permute.xlu0 %1246
        %1248 = vrot.lane.b32.xlu0 %v1225, 8
        %v1249 = vpop.permute.xlu0 %1248
        %1250 = vrot.lane.b32.xlu0 %v1227, 8
        %v1251 = vpop.permute.xlu0 %1250
        %1252 = vrot.lane.b32.xlu0 %v1229, 8
        %v1253 = vpop.permute.xlu0 %1252
        %1254 = vrot.lane.b32.xlu0 %v1231, 8
        %v1255 = vpop.permute.xlu0 %1254
        %1256 = vrot.lane.b32.xlu0 %v1233, 8
        %v1257 = vpop.permute.xlu0 %1256
        %1258 = vrot.lane.b32.xlu0 %v1235, 8
        %v1259 = vpop.permute.xlu0 %1258
        %vm1268 = vcmask 130112
        %1269 = vst.msk [vmem:[%s336] sm:$0xff] %vm1268, %v1245
        %1270 = vst.msk [vmem:[%s336 + $0x10] sm:$0xff] %vm1268, %v1247
        %1271 = vst.msk [vmem:[%s336 + $0x20] sm:$0xff] %vm1268, %v1249
        %1272 = vst.msk [vmem:[%s336 + $0x30] sm:$0xff] %vm1268, %v1251
        %1273 = vst.msk [vmem:[%s336 + $0x40] sm:$0xff] %vm1268, %v1253
        %1274 = vst.msk [vmem:[%s336 + $0x50] sm:$0xff] %vm1268, %v1255
        %1275 = vst.msk [vmem:[%s336 + $0x60] sm:$0xff] %vm1268, %v1257
        %1276 = vst.msk [vmem:[%s336 + $0x70] sm:$0xff] %vm1268, %v1259
        %v1277 = vld [vmem:[%s280] sm:$0xff]
        %v1278 = vld [vmem:[%s280 + $0x10] sm:$0xff]
        %v1279 = vld [vmem:[%s280 + $0x20] sm:$0xff]
        %v1280 = vld [vmem:[%s280 + $0x30] sm:$0xff]
        %v1281 = vld [vmem:[%s280 + $0x40] sm:$0xff]
        %v1282 = vld [vmem:[%s280 + $0x50] sm:$0xff]
        %v1283 = vld [vmem:[%s280 + $0x60] sm:$0xff]
        %v1284 = vld [vmem:[%s280 + $0x70] sm:$0xff]
        %v1285 = vmul.f32 %v1277, 0.35355338
        %v1286 = vmul.f32 %v1278, 0.35355338
        %v1287 = vmul.f32 %v1279, 0.35355338
        %v1288 = vmul.f32 %v1280, 0.35355338
        %v1289 = vmul.f32 %v1281, 0.35355338
        %v1290 = vmul.f32 %v1282, 0.35355338
        %v1291 = vmul.f32 %v1283, 0.35355338
        %v1292 = vmul.f32 %v1284, 0.35355338
        %v1293 = vld [vmem:[%s289] sm:$0xff]
        %v1294 = vld [vmem:[%s289 + $0x10] sm:$0xff]
        %v1295 = vld [vmem:[%s289 + $0x20] sm:$0xff]
        %v1296 = vld [vmem:[%s289 + $0x30] sm:$0xff]
        %v1297 = vld [vmem:[%s289 + $0x40] sm:$0xff]
        %v1298 = vld [vmem:[%s289 + $0x50] sm:$0xff]
        %v1299 = vld [vmem:[%s289 + $0x60] sm:$0xff]
        %v1300 = vld [vmem:[%s289 + $0x70] sm:$0xff]
        %v1301 = vld [vmem:[%s298] sm:$0xff]
        %v1302 = vld [vmem:[%s298 + $0x10] sm:$0xff]
        %v1303 = vld [vmem:[%s298 + $0x20] sm:$0xff]
        %v1304 = vld [vmem:[%s298 + $0x30] sm:$0xff]
        %v1305 = vld [vmem:[%s298 + $0x40] sm:$0xff]
        %v1306 = vld [vmem:[%s298 + $0x50] sm:$0xff]
        %v1307 = vld [vmem:[%s298 + $0x60] sm:$0xff]
        %v1308 = vld [vmem:[%s298 + $0x70] sm:$0xff]
        %s1309 = scalar_lea.vmem [#allocation8], 128
        %v1310 = vld [vmem:[%s1309] sm:$0xff]
        %v1311 = vld [vmem:[%s1309 + $0x8] sm:$0xff]
        %v1312 = vld [vmem:[%s1309 + $0x10] sm:$0xff]
        %v1313 = vld [vmem:[%s1309 + $0x18] sm:$0xff]
        %v1314 = vld [vmem:[%s1309 + $0x20] sm:$0xff]
        %v1315 = vld [vmem:[%s1309 + $0x28] sm:$0xff]
        %v1316 = vld [vmem:[%s1309 + $0x30] sm:$0xff]
        %v1317 = vld [vmem:[%s1309 + $0x38] sm:$0xff]
        %1326 = vrot.lane.b32.xlu0 %v1285, 112
        %v1327 = vpop.permute.xlu0 %1326
        %1328 = vrot.lane.b32.xlu0 %v1286, 112
        %v1329 = vpop.permute.xlu0 %1328
        %1330 = vrot.lane.b32.xlu0 %v1287, 112
        %v1331 = vpop.permute.xlu0 %1330
        %1332 = vrot.lane.b32.xlu0 %v1288, 112
        %v1333 = vpop.permute.xlu0 %1332
        %1334 = vrot.lane.b32.xlu0 %v1289, 112
        %v1335 = vpop.permute.xlu0 %1334
        %1336 = vrot.lane.b32.xlu0 %v1290, 112
        %v1337 = vpop.permute.xlu0 %1336
        %1338 = vrot.lane.b32.xlu0 %v1291, 112
        %v1339 = vpop.permute.xlu0 %1338
        %1340 = vrot.lane.b32.xlu0 %v1292, 112
        %v1341 = vpop.permute.xlu0 %1340
        %1350 = vrot.lane.b32.xlu0 %v1293, 112
        %v1351 = vpop.permute.xlu0 %1350
        %1352 = vrot.lane.b32.xlu0 %v1294, 112
        %v1353 = vpop.permute.xlu0 %1352
        %1354 = vrot.lane.b32.xlu0 %v1295, 112
        %v1355 = vpop.permute.xlu0 %1354
        %1356 = vrot.lane.b32.xlu0 %v1296, 112
        %v1357 = vpop.permute.xlu0 %1356
        %1358 = vrot.lane.b32.xlu0 %v1297, 112
        %v1359 = vpop.permute.xlu0 %1358
        %1360 = vrot.lane.b32.xlu0 %v1298, 112
        %v1361 = vpop.permute.xlu0 %1360
        %1362 = vrot.lane.b32.xlu0 %v1299, 112
        %v1363 = vpop.permute.xlu0 %1362
        %1364 = vrot.lane.b32.xlu0 %v1300, 112
        %v1365 = vpop.permute.xlu0 %1364
        %v1366 = vsel %vm381, %v1327, 0
        %v1368 = vsel %vm381, %v1329, 0
        %v1370 = vsel %vm381, %v1331, 0
        %v1372 = vsel %vm381, %v1333, 0
        %v1374 = vsel %vm381, %v1335, 0
        %v1376 = vsel %vm381, %v1337, 0
        %v1378 = vsel %vm381, %v1339, 0
        %v1380 = vsel %vm381, %v1341, 0
        %v1382 = vsel %vm381, %v1351, 0
        %v1384 = vsel %vm381, %v1353, 0
        %v1386 = vsel %vm381, %v1355, 0
        %v1388 = vsel %vm381, %v1357, 0
        %v1390 = vsel %vm381, %v1359, 0
        %v1392 = vsel %vm381, %v1361, 0
        %v1394 = vsel %vm381, %v1363, 0
        %v1396 = vsel %vm381, %v1365, 0
        %1398 = vmatprep.subr.mxu0 0.0
        %1399 = vmatpush1.xpose.msra.mxu0 %v1382
        %1400 = vmatprep.subr.mxu0 0.0
        %1401 = vmatpush1.xpose.msra.mxu0 %v1384
        %1402 = vmatprep.subr.mxu0 0.0
        %1403 = vmatpush1.xpose.msra.mxu0 %v1386
        %1404 = vmatprep.subr.mxu0 0.0
        %1405 = vmatpush1.xpose.msra.mxu0 %v1388
        %1406 = vmatprep.subr.mxu0 0.0
        %1407 = vmatpush1.xpose.msra.mxu0 %v1390
        %1408 = vmatprep.subr.mxu0 0.0
        %1409 = vmatpush1.xpose.msra.mxu0 %v1392
        %1410 = vmatprep.subr.mxu0 0.0
        %1411 = vmatpush1.xpose.msra.mxu0 %v1394
        %1412 = vmatprep.subr.mxu0 0.0
        %1413 = vmatpush1.xpose.msra.mxu0 %v1396
        %1414 = vmatprep.subr.mxu0 0.0
        %1415 = vmatpush1.xpose.msra.mxu0 0.0
        %1416 = vmatprep.subr.mxu0 0.0
        %1417 = vmatpush1.xpose.msra.mxu0 0.0
        %1418 = vmatprep.subr.mxu0 0.0
        %1419 = vmatpush1.xpose.msra.mxu0 0.0
        %1420 = vmatprep.subr.mxu0 0.0
        %1421 = vmatpush1.xpose.msra.mxu0 0.0
        %1422 = vmatprep.subr.mxu0 0.0
        %1423 = vmatpush1.xpose.msra.mxu0 0.0
        %1424 = vmatprep.subr.mxu0 0.0
        %1425 = vmatpush1.xpose.msra.mxu0 0.0
        %1426 = vmatprep.subr.mxu0 0.0
        %1427 = vmatpush1.xpose.msra.mxu0 0.0
        %1428 = vmatprep.subr.mxu0 0.0
        %1429 = vmatpush1.xpose.msra.mxu0 0.0
        %1430 = vmatprep.subr.mxu0 0.0
        %1431 = vmatpush1.xpose.msra.mxu0 0.0
        %1432 = vmatprep.subr.mxu0 0.0
        %1433 = vmatpush1.xpose.msra.mxu0 0.0
        %1434 = vmatprep.subr.mxu0 0.0
        %1435 = vmatpush1.xpose.msra.mxu0 0.0
        %1436 = vmatprep.subr.mxu0 0.0
        %1437 = vmatpush1.xpose.msra.mxu0 0.0
        %1438 = vmatprep.subr.mxu0 0.0
        %1439 = vmatpush1.xpose.msra.mxu0 0.0
        %1440 = vmatprep.subr.mxu0 0.0
        %1441 = vmatpush1.xpose.msra.mxu0 0.0
        %1442 = vmatprep.subr.mxu0 0.0
        %1443 = vmatpush1.xpose.msra.mxu0 0.0
        %1444 = vmatprep.subr.mxu0 0.0
        %1445 = vmatpush1.xpose.msra.mxu0 0.0
        %1446 = vmatprep.subr.mxu0 0.0
        %1447 = vmatpush1.xpose.msra.mxu0 0.0
        %1448 = vmatprep.subr.mxu0 0.0
        %1449 = vmatpush1.xpose.msra.mxu0 0.0
        %1450 = vmatprep.subr.mxu0 0.0
        %1451 = vmatpush1.xpose.msra.mxu0 0.0
        %1452 = vmatprep.subr.mxu0 0.0
        %1453 = vmatpush1.xpose.msra.mxu0 0.0
        %1454 = vmatprep.subr.mxu0 0.0
        %1455 = vmatpush1.xpose.msra.mxu0 0.0
        %1456 = vmatprep.subr.mxu0 0.0
        %1457 = vmatpush1.xpose.msra.mxu0 0.0
        %1458 = vmatprep.subr.mxu0 0.0
        %1459 = vmatpush1.xpose.msra.mxu0 0.0
        %1460 = vmatprep.subr.mxu0 0.0
        %1461 = vmatpush1.xpose.msra.mxu0 0.0
        %1462 = vmatprep.mubr.f32.mxu0 0.0
        %1463 = vmatmul.mubr.f32.gmra.mrb[0].mxu0 %v1366
        %v1464 = vpop.f32.mrb[0].mxu0
        %v1465 = vadd.f32 %v1310, %v1464
        %v1466 = vpop.f32.mrb[0].mxu0
        %1467 = vmatprep.mubr.f32.mxu0 0.0
        %1468 = vmatmul.mubr.f32.gmra.mrb[0].mxu0 %v1368
        %v1469 = vpop.f32.mrb[0].mxu0
        %v1470 = vadd.f32 %v1311, %v1469
        %v1471 = vpop.f32.mrb[0].mxu0
        %1472 = vmatprep.mubr.f32.mxu0 0.0
        %1473 = vmatmul.mubr.f32.gmra.mrb[0].mxu0 %v1370
        %v1474 = vpop.f32.mrb[0].mxu0
        %v1475 = vadd.f32 %v1312, %v1474
        %v1476 = vpop.f32.mrb[0].mxu0
        %1477 = vmatprep.mubr.f32.mxu0 0.0
        %1478 = vmatmul.mubr.f32.gmra.mrb[0].mxu0 %v1372
        %v1479 = vpop.f32.mrb[0].mxu0
        %v1480 = vadd.f32 %v1313, %v1479
        %v1481 = vpop.f32.mrb[0].mxu0
        %1482 = vmatprep.mubr.f32.mxu0 0.0
        %1483 = vmatmul.mubr.f32.gmra.mrb[0].mxu0 %v1374
        %v1484 = vpop.f32.mrb[0].mxu0
        %v1485 = vadd.f32 %v1314, %v1484
        %v1486 = vpop.f32.mrb[0].mxu0
        %1487 = vmatprep.mubr.f32.mxu0 0.0
        %1488 = vmatmul.mubr.f32.gmra.mrb[0].mxu0 %v1376
        %v1489 = vpop.f32.mrb[0].mxu0
        %v1490 = vadd.f32 %v1315, %v1489
        %v1491 = vpop.f32.mrb[0].mxu0
        %1492 = vmatprep.mubr.f32.mxu0 0.0
        %1493 = vmatmul.mubr.f32.gmra.mrb[0].mxu0 %v1378
        %v1494 = vpop.f32.mrb[0].mxu0
        %v1495 = vadd.f32 %v1316, %v1494
        %v1496 = vpop.f32.mrb[0].mxu0
        %1497 = vmatprep.mubr.f32.mxu0 0.0
        %1498 = vmatmul.mubr.f32.gmra.mrb[0].mxu0 %v1380
        %v1499 = vpop.f32.mrb[0].mxu0
        %v1500 = vadd.f32 %v1317, %v1499
        %v1501 = vpop.f32.mrb[0].mxu0
        %1502 = vdwg.mxu0
        %v1503 = vsel %vm535, %v1465, -inf
        %1504 = vmax.xlane.f32.xlu0 %v1503
        %v1505 = vpop.xlane.xlu0 %1504
        %v1506 = vsel %vm535, %v1470, -inf
        %1507 = vmax.xlane.f32.xlu0 %v1506
        %v1508 = vpop.xlane.xlu0 %1507
        %v1509 = vsel %vm535, %v1475, -inf
        %1510 = vmax.xlane.f32.xlu0 %v1509
        %v1511 = vpop.xlane.xlu0 %1510
        %v1512 = vsel %vm535, %v1480, -inf
        %1513 = vmax.xlane.f32.xlu0 %v1512
        %v1514 = vpop.xlane.xlu0 %1513
        %v1515 = vsel %vm535, %v1485, -inf
        %1516 = vmax.xlane.f32.xlu0 %v1515
        %v1517 = vpop.xlane.xlu0 %1516
        %v1518 = vsel %vm535, %v1490, -inf
        %1519 = vmax.xlane.f32.xlu0 %v1518
        %v1520 = vpop.xlane.xlu0 %1519
        %v1521 = vsel %vm535, %v1495, -inf
        %1522 = vmax.xlane.f32.xlu0 %v1521
        %v1523 = vpop.xlane.xlu0 %1522
        %v1524 = vsel %vm535, %v1500, -inf
        %1525 = vmax.xlane.f32.xlu0 %v1524
        %v1526 = vpop.xlane.xlu0 %1525
        %v1527 = vsub.f32 %v1465, %v1505
        %v1528 = vsub.f32 %v1470, %v1508
        %v1529 = vsub.f32 %v1475, %v1511
        %v1530 = vsub.f32 %v1480, %v1514
        %v1531 = vsub.f32 %v1485, %v1517
        %v1532 = vsub.f32 %v1490, %v1520
        %v1533 = vsub.f32 %v1495, %v1523
        %v1534 = vsub.f32 %v1500, %v1526
        %v1535 = vmul.f32 %v1527, 1.442695
        %v1536 = vpow.pop %v1535
        %v1537 = vmul.f32 %v1528, 1.442695
        %v1538 = vpow.pop %v1537
        %v1539 = vmul.f32 %v1529, 1.442695
        %v1540 = vpow.pop %v1539
        %v1541 = vmul.f32 %v1530, 1.442695
        %v1542 = vpow.pop %v1541
        %v1543 = vmul.f32 %v1531, 1.442695
        %v1544 = vpow.pop %v1543
        %v1545 = vmul.f32 %v1532, 1.442695
        %v1546 = vpow.pop %v1545
        %v1547 = vmul.f32 %v1533, 1.442695
        %v1548 = vpow.pop %v1547
        %v1549 = vmul.f32 %v1534, 1.442695
        %v1550 = vpow.pop %v1549
        %v1551 = vsel %vm535, %v1536, 0.0
        %1552 = vadd.xlane.f32.xlu0 %v1551
        %v1553 = vpop.xlane.xlu0 %1552
        %v1554 = vsel %vm535, %v1538, 0.0
        %1555 = vadd.xlane.f32.xlu0 %v1554
        %v1556 = vpop.xlane.xlu0 %1555
        %v1557 = vsel %vm535, %v1540, 0.0
        %1558 = vadd.xlane.f32.xlu0 %v1557
        %v1559 = vpop.xlane.xlu0 %1558
        %v1560 = vsel %vm535, %v1542, 0.0
        %1561 = vadd.xlane.f32.xlu0 %v1560
        %v1562 = vpop.xlane.xlu0 %1561
        %v1563 = vsel %vm535, %v1544, 0.0
        %1564 = vadd.xlane.f32.xlu0 %v1563
        %v1565 = vpop.xlane.xlu0 %1564
        %v1566 = vsel %vm535, %v1546, 0.0
        %1567 = vadd.xlane.f32.xlu0 %v1566
        %v1568 = vpop.xlane.xlu0 %1567
        %v1569 = vsel %vm535, %v1548, 0.0
        %1570 = vadd.xlane.f32.xlu0 %v1569
        %v1571 = vpop.xlane.xlu0 %1570
        %v1572 = vsel %vm535, %v1550, 0.0
        %1573 = vadd.xlane.f32.xlu0 %v1572
        %v1574 = vpop.xlane.xlu0 %1573
        %1583 = vrot.lane.b32.xlu0 %v1301, 112
        %v1584 = vpop.permute.xlu0 %1583
        %1585 = vrot.lane.b32.xlu0 %v1302, 112
        %v1586 = vpop.permute.xlu0 %1585
        %1587 = vrot.lane.b32.xlu0 %v1303, 112
        %v1588 = vpop.permute.xlu0 %1587
        %1589 = vrot.lane.b32.xlu0 %v1304, 112
        %v1590 = vpop.permute.xlu0 %1589
        %1591 = vrot.lane.b32.xlu0 %v1305, 112
        %v1592 = vpop.permute.xlu0 %1591
        %1593 = vrot.lane.b32.xlu0 %v1306, 112
        %v1594 = vpop.permute.xlu0 %1593
        %1595 = vrot.lane.b32.xlu0 %v1307, 112
        %v1596 = vpop.permute.xlu0 %1595
        %1597 = vrot.lane.b32.xlu0 %v1308, 112
        %v1598 = vpop.permute.xlu0 %1597
        %v1608 = vsel %vm535, %v1536, 0
        %v1611 = vsel %vm535, %v1538, 0
        %v1614 = vsel %vm535, %v1540, 0
        %v1617 = vsel %vm535, %v1542, 0
        %v1620 = vsel %vm535, %v1544, 0
        %v1623 = vsel %vm535, %v1546, 0
        %v1626 = vsel %vm535, %v1548, 0
        %v1629 = vsel %vm535, %v1550, 0
        %1631 = vmatprep.subr.mxu0 0.0
        %1632 = vmatpush1.msra.mxu0 %v1584
        %1633 = vmatprep.subr.mxu0 0.0
        %1634 = vmatpush1.msra.mxu0 %v1586
        %1635 = vmatprep.subr.mxu0 0.0
        %1636 = vmatpush1.msra.mxu0 %v1588
        %1637 = vmatprep.subr.mxu0 0.0
        %1638 = vmatpush1.msra.mxu0 %v1590
        %1639 = vmatprep.subr.mxu0 0.0
        %1640 = vmatpush1.msra.mxu0 %v1592
        %1641 = vmatprep.subr.mxu0 0.0
        %1642 = vmatpush1.msra.mxu0 %v1594
        %1643 = vmatprep.subr.mxu0 0.0
        %1644 = vmatpush1.msra.mxu0 %v1596
        %1645 = vmatprep.subr.mxu0 0.0
        %1646 = vmatpush1.msra.mxu0 %v1598
        %1647 = vmatprep.subr.mxu0 0.0
        %1648 = vmatpush1.msra.mxu0 0.0
        %1649 = vmatprep.subr.mxu0 0.0
        %1650 = vmatpush1.msra.mxu0 0.0
        %1651 = vmatprep.subr.mxu0 0.0
        %1652 = vmatpush1.msra.mxu0 0.0
        %1653 = vmatprep.subr.mxu0 0.0
        %1654 = vmatpush1.msra.mxu0 0.0
        %1655 = vmatprep.subr.mxu0 0.0
        %1656 = vmatpush1.msra.mxu0 0.0
        %1657 = vmatprep.subr.mxu0 0.0
        %1658 = vmatpush1.msra.mxu0 0.0
        %1659 = vmatprep.subr.mxu0 0.0
        %1660 = vmatpush1.msra.mxu0 0.0
        %1661 = vmatprep.subr.mxu0 0.0
        %1662 = vmatpush1.msra.mxu0 0.0
        %1663 = vmatprep.subr.mxu0 0.0
        %1664 = vmatpush1.msra.mxu0 0.0
        %1665 = vmatprep.subr.mxu0 0.0
        %1666 = vmatpush1.msra.mxu0 0.0
        %1667 = vmatprep.subr.mxu0 0.0
        %1668 = vmatpush1.msra.mxu0 0.0
        %1669 = vmatprep.subr.mxu0 0.0
        %1670 = vmatpush1.msra.mxu0 0.0
        %1671 = vmatprep.subr.mxu0 0.0
        %1672 = vmatpush1.msra.mxu0 0.0
        %1673 = vmatprep.subr.mxu0 0.0
        %1674 = vmatpush1.msra.mxu0 0.0
        %1675 = vmatprep.subr.mxu0 0.0
        %1676 = vmatpush1.msra.mxu0 0.0
        %1677 = vmatprep.subr.mxu0 0.0
        %1678 = vmatpush1.msra.mxu0 0.0
        %1679 = vmatprep.subr.mxu0 0.0
        %1680 = vmatpush1.msra.mxu0 0.0
        %1681 = vmatprep.subr.mxu0 0.0
        %1682 = vmatpush1.msra.mxu0 0.0
        %1683 = vmatprep.subr.mxu0 0.0
        %1684 = vmatpush1.msra.mxu0 0.0
        %1685 = vmatprep.subr.mxu0 0.0
        %1686 = vmatpush1.msra.mxu0 0.0
        %1687 = vmatprep.subr.mxu0 0.0
        %1688 = vmatpush1.msra.mxu0 0.0
        %1689 = vmatprep.subr.mxu0 0.0
        %1690 = vmatpush1.msra.mxu0 0.0
        %1691 = vmatprep.subr.mxu0 0.0
        %1692 = vmatpush1.msra.mxu0 0.0
        %1693 = vmatprep.subr.mxu0 0.0
        %1694 = vmatpush1.msra.mxu0 0.0
        %1695 = vmatprep.mubr.f32.mxu0 0.0
        %1696 = vmatmul.mubr.f32.gmra.mrb[0].mxu0 %v1608
        %v1697 = vpop.f32.mrb[0].mxu0
        %v1698 = vadd.f32 0.0, %v1697
        %v1699 = vpop.f32.mrb[0].mxu0
        %1700 = vmatprep.mubr.f32.mxu0 0.0
        %1701 = vmatmul.mubr.f32.gmra.mrb[0].mxu0 %v1611
        %v1702 = vpop.f32.mrb[0].mxu0
        %v1703 = vadd.f32 0.0, %v1702
        %v1704 = vpop.f32.mrb[0].mxu0
        %1705 = vmatprep.mubr.f32.mxu0 0.0
        %1706 = vmatmul.mubr.f32.gmra.mrb[0].mxu0 %v1614
        %v1707 = vpop.f32.mrb[0].mxu0
        %v1708 = vadd.f32 0.0, %v1707
        %v1709 = vpop.f32.mrb[0].mxu0
        %1710 = vmatprep.mubr.f32.mxu0 0.0
        %1711 = vmatmul.mubr.f32.gmra.mrb[0].mxu0 %v1617
        %v1712 = vpop.f32.mrb[0].mxu0
        %v1713 = vadd.f32 0.0, %v1712
        %v1714 = vpop.f32.mrb[0].mxu0
        %1715 = vmatprep.mubr.f32.mxu0 0.0
        %1716 = vmatmul.mubr.f32.gmra.mrb[0].mxu0 %v1620
        %v1717 = vpop.f32.mrb[0].mxu0
        %v1718 = vadd.f32 0.0, %v1717
        %v1719 = vpop.f32.mrb[0].mxu0
        %1720 = vmatprep.mubr.f32.mxu0 0.0
        %1721 = vmatmul.mubr.f32.gmra.mrb[0].mxu0 %v1623
        %v1722 = vpop.f32.mrb[0].mxu0
        %v1723 = vadd.f32 0.0, %v1722
        %v1724 = vpop.f32.mrb[0].mxu0
        %1725 = vmatprep.mubr.f32.mxu0 0.0
        %1726 = vmatmul.mubr.f32.gmra.mrb[0].mxu0 %v1626
        %v1727 = vpop.f32.mrb[0].mxu0
        %v1728 = vadd.f32 0.0, %v1727
        %v1729 = vpop.f32.mrb[0].mxu0
        %1730 = vmatprep.mubr.f32.mxu0 0.0
        %1731 = vmatmul.mubr.f32.gmra.mrb[0].mxu0 %v1629
        %v1732 = vpop.f32.mrb[0].mxu0
        %v1733 = vadd.f32 0.0, %v1732
        %v1734 = vpop.f32.mrb[0].mxu0
        %1735 = vdwg.mxu0
        %v1736 = vrcp.pop %v1553
        %v1737 = vmul.f32 %v1698, %v1736
        %v1738 = vrcp.pop %v1556
        %v1739 = vmul.f32 %v1703, %v1738
        %v1740 = vrcp.pop %v1559
        %v1741 = vmul.f32 %v1708, %v1740
        %v1742 = vrcp.pop %v1562
        %v1743 = vmul.f32 %v1713, %v1742
        %v1744 = vrcp.pop %v1565
        %v1745 = vmul.f32 %v1718, %v1744
        %v1746 = vrcp.pop %v1568
        %v1747 = vmul.f32 %v1723, %v1746
        %v1748 = vrcp.pop %v1571
        %v1749 = vmul.f32 %v1728, %v1748
        %v1750 = vrcp.pop %v1574
        %v1751 = vmul.f32 %v1733, %v1750
        %1760 = vrot.lane.b32.xlu0 %v1737, 16
        %v1761 = vpop.permute.xlu0 %1760
        %1762 = vrot.lane.b32.xlu0 %v1739, 16
        %v1763 = vpop.permute.xlu0 %1762
        %1764 = vrot.lane.b32.xlu0 %v1741, 16
        %v1765 = vpop.permute.xlu0 %1764
        %1766 = vrot.lane.b32.xlu0 %v1743, 16
        %v1767 = vpop.permute.xlu0 %1766
        %1768 = vrot.lane.b32.xlu0 %v1745, 16
        %v1769 = vpop.permute.xlu0 %1768
        %1770 = vrot.lane.b32.xlu0 %v1747, 16
        %v1771 = vpop.permute.xlu0 %1770
        %1772 = vrot.lane.b32.xlu0 %v1749, 16
        %v1773 = vpop.permute.xlu0 %1772
        %1774 = vrot.lane.b32.xlu0 %v1751, 16
        %v1775 = vpop.permute.xlu0 %1774
        %vm1784 = vcmask 195712
        %1785 = vst.msk [vmem:[%s336] sm:$0xff] %vm1784, %v1761
        %1786 = vst.msk [vmem:[%s336 + $0x10] sm:$0xff] %vm1784, %v1763
        %1787 = vst.msk [vmem:[%s336 + $0x20] sm:$0xff] %vm1784, %v1765
        %1788 = vst.msk [vmem:[%s336 + $0x30] sm:$0xff] %vm1784, %v1767
        %1789 = vst.msk [vmem:[%s336 + $0x40] sm:$0xff] %vm1784, %v1769
        %1790 = vst.msk [vmem:[%s336 + $0x50] sm:$0xff] %vm1784, %v1771
        %1791 = vst.msk [vmem:[%s336 + $0x60] sm:$0xff] %vm1784, %v1773
        %1792 = vst.msk [vmem:[%s336 + $0x70] sm:$0xff] %vm1784, %v1775
        %v1793 = vld [vmem:[%s280] sm:$0xff]
        %v1794 = vld [vmem:[%s280 + $0x10] sm:$0xff]
        %v1795 = vld [vmem:[%s280 + $0x20] sm:$0xff]
        %v1796 = vld [vmem:[%s280 + $0x30] sm:$0xff]
        %v1797 = vld [vmem:[%s280 + $0x40] sm:$0xff]
        %v1798 = vld [vmem:[%s280 + $0x50] sm:$0xff]
        %v1799 = vld [vmem:[%s280 + $0x60] sm:$0xff]
        %v1800 = vld [vmem:[%s280 + $0x70] sm:$0xff]
        %v1801 = vmul.f32 %v1793, 0.35355338
        %v1802 = vmul.f32 %v1794, 0.35355338
        %v1803 = vmul.f32 %v1795, 0.35355338
        %v1804 = vmul.f32 %v1796, 0.35355338
        %v1805 = vmul.f32 %v1797, 0.35355338
        %v1806 = vmul.f32 %v1798, 0.35355338
        %v1807 = vmul.f32 %v1799, 0.35355338
        %v1808 = vmul.f32 %v1800, 0.35355338
        %v1809 = vld [vmem:[%s289] sm:$0xff]
        %v1810 = vld [vmem:[%s289 + $0x10] sm:$0xff]
        %v1811 = vld [vmem:[%s289 + $0x20] sm:$0xff]
        %v1812 = vld [vmem:[%s289 + $0x30] sm:$0xff]
        %v1813 = vld [vmem:[%s289 + $0x40] sm:$0xff]
        %v1814 = vld [vmem:[%s289 + $0x50] sm:$0xff]
        %v1815 = vld [vmem:[%s289 + $0x60] sm:$0xff]
        %v1816 = vld [vmem:[%s289 + $0x70] sm:$0xff]
        %v1817 = vld [vmem:[%s298] sm:$0xff]
        %v1818 = vld [vmem:[%s298 + $0x10] sm:$0xff]
        %v1819 = vld [vmem:[%s298 + $0x20] sm:$0xff]
        %v1820 = vld [vmem:[%s298 + $0x30] sm:$0xff]
        %v1821 = vld [vmem:[%s298 + $0x40] sm:$0xff]
        %v1822 = vld [vmem:[%s298 + $0x50] sm:$0xff]
        %v1823 = vld [vmem:[%s298 + $0x60] sm:$0xff]
        %v1824 = vld [vmem:[%s298 + $0x70] sm:$0xff]
        %s1825 = scalar_lea.vmem [#allocation8], 192
        %v1826 = vld [vmem:[%s1825] sm:$0xff]
        %v1827 = vld [vmem:[%s1825 + $0x8] sm:$0xff]
        %v1828 = vld [vmem:[%s1825 + $0x10] sm:$0xff]
        %v1829 = vld [vmem:[%s1825 + $0x18] sm:$0xff]
        %v1830 = vld [vmem:[%s1825 + $0x20] sm:$0xff]
        %v1831 = vld [vmem:[%s1825 + $0x28] sm:$0xff]
        %v1832 = vld [vmem:[%s1825 + $0x30] sm:$0xff]
        %v1833 = vld [vmem:[%s1825 + $0x38] sm:$0xff]
        %1842 = vrot.lane.b32.xlu0 %v1801, 104
        %v1843 = vpop.permute.xlu0 %1842
        %1844 = vrot.lane.b32.xlu0 %v1802, 104
        %v1845 = vpop.permute.xlu0 %1844
        %1846 = vrot.lane.b32.xlu0 %v1803, 104
        %v1847 = vpop.permute.xlu0 %1846
        %1848 = vrot.lane.b32.xlu0 %v1804, 104
        %v1849 = vpop.permute.xlu0 %1848
        %1850 = vrot.lane.b32.xlu0 %v1805, 104
        %v1851 = vpop.permute.xlu0 %1850
        %1852 = vrot.lane.b32.xlu0 %v1806, 104
        %v1853 = vpop.permute.xlu0 %1852
        %1854 = vrot.lane.b32.xlu0 %v1807, 104
        %v1855 = vpop.permute.xlu0 %1854
        %1856 = vrot.lane.b32.xlu0 %v1808, 104
        %v1857 = vpop.permute.xlu0 %1856
        %1866 = vrot.lane.b32.xlu0 %v1809, 104
        %v1867 = vpop.permute.xlu0 %1866
        %1868 = vrot.lane.b32.xlu0 %v1810, 104
        %v1869 = vpop.permute.xlu0 %1868
        %1870 = vrot.lane.b32.xlu0 %v1811, 104
        %v1871 = vpop.permute.xlu0 %1870
        %1872 = vrot.lane.b32.xlu0 %v1812, 104
        %v1873 = vpop.permute.xlu0 %1872
        %1874 = vrot.lane.b32.xlu0 %v1813, 104
        %v1875 = vpop.permute.xlu0 %1874
        %1876 = vrot.lane.b32.xlu0 %v1814, 104
        %v1877 = vpop.permute.xlu0 %1876
        %1878 = vrot.lane.b32.xlu0 %v1815, 104
        %v1879 = vpop.permute.xlu0 %1878
        %1880 = vrot.lane.b32.xlu0 %v1816, 104
        %v1881 = vpop.permute.xlu0 %1880
        %v1882 = vsel %vm381, %v1843, 0
        %v1884 = vsel %vm381, %v1845, 0
        %v1886 = vsel %vm381, %v1847, 0
        %v1888 = vsel %vm381, %v1849, 0
        %v1890 = vsel %vm381, %v1851, 0
        %v1892 = vsel %vm381, %v1853, 0
        %v1894 = vsel %vm381, %v1855, 0
        %v1896 = vsel %vm381, %v1857, 0
        %v1898 = vsel %vm381, %v1867, 0
        %v1900 = vsel %vm381, %v1869, 0
        %v1902 = vsel %vm381, %v1871, 0
        %v1904 = vsel %vm381, %v1873, 0
        %v1906 = vsel %vm381, %v1875, 0
        %v1908 = vsel %vm381, %v1877, 0
        %v1910 = vsel %vm381, %v1879, 0
        %v1912 = vsel %vm381, %v1881, 0
        %1914 = vmatprep.subr.mxu0 0.0
        %1915 = vmatpush1.xpose.msra.mxu0 %v1898
        %1916 = vmatprep.subr.mxu0 0.0
        %1917 = vmatpush1.xpose.msra.mxu0 %v1900
        %1918 = vmatprep.subr.mxu0 0.0
        %1919 = vmatpush1.xpose.msra.mxu0 %v1902
        %1920 = vmatprep.subr.mxu0 0.0
        %1921 = vmatpush1.xpose.msra.mxu0 %v1904
        %1922 = vmatprep.subr.mxu0 0.0
        %1923 = vmatpush1.xpose.msra.mxu0 %v1906
        %1924 = vmatprep.subr.mxu0 0.0
        %1925 = vmatpush1.xpose.msra.mxu0 %v1908
        %1926 = vmatprep.subr.mxu0 0.0
        %1927 = vmatpush1.xpose.msra.mxu0 %v1910
        %1928 = vmatprep.subr.mxu0 0.0
        %1929 = vmatpush1.xpose.msra.mxu0 %v1912
        %1930 = vmatprep.subr.mxu0 0.0
        %1931 = vmatpush1.xpose.msra.mxu0 0.0
        %1932 = vmatprep.subr.mxu0 0.0
        %1933 = vmatpush1.xpose.msra.mxu0 0.0
        %1934 = vmatprep.subr.mxu0 0.0
        %1935 = vmatpush1.xpose.msra.mxu0 0.0
        %1936 = vmatprep.subr.mxu0 0.0
        %1937 = vmatpush1.xpose.msra.mxu0 0.0
        %1938 = vmatprep.subr.mxu0 0.0
        %1939 = vmatpush1.xpose.msra.mxu0 0.0
        %1940 = vmatprep.subr.mxu0 0.0
        %1941 = vmatpush1.xpose.msra.mxu0 0.0
        %1942 = vmatprep.subr.mxu0 0.0
        %1943 = vmatpush1.xpose.msra.mxu0 0.0
        %1944 = vmatprep.subr.mxu0 0.0
        %1945 = vmatpush1.xpose.msra.mxu0 0.0
        %1946 = vmatprep.subr.mxu0 0.0
        %1947 = vmatpush1.xpose.msra.mxu0 0.0
        %1948 = vmatprep.subr.mxu0 0.0
        %1949 = vmatpush1.xpose.msra.mxu0 0.0
        %1950 = vmatprep.subr.mxu0 0.0
        %1951 = vmatpush1.xpose.msra.mxu0 0.0
        %1952 = vmatprep.subr.mxu0 0.0
        %1953 = vmatpush1.xpose.msra.mxu0 0.0
        %1954 = vmatprep.subr.mxu0 0.0
        %1955 = vmatpush1.xpose.msra.mxu0 0.0
        %1956 = vmatprep.subr.mxu0 0.0
        %1957 = vmatpush1.xpose.msra.mxu0 0.0
        %1958 = vmatprep.subr.mxu0 0.0
        %1959 = vmatpush1.xpose.msra.mxu0 0.0
        %1960 = vmatprep.subr.mxu0 0.0
        %1961 = vmatpush1.xpose.msra.mxu0 0.0
        %1962 = vmatprep.subr.mxu0 0.0
        %1963 = vmatpush1.xpose.msra.mxu0 0.0
        %1964 = vmatprep.subr.mxu0 0.0
        %1965 = vmatpush1.xpose.msra.mxu0 0.0
        %1966 = vmatprep.subr.mxu0 0.0
        %1967 = vmatpush1.xpose.msra.mxu0 0.0
        %1968 = vmatprep.subr.mxu0 0.0
        %1969 = vmatpush1.xpose.msra.mxu0 0.0
        %1970 = vmatprep.subr.mxu0 0.0
        %1971 = vmatpush1.xpose.msra.mxu0 0.0
        %1972 = vmatprep.subr.mxu0 0.0
        %1973 = vmatpush1.xpose.msra.mxu0 0.0
        %1974 = vmatprep.subr.mxu0 0.0
        %1975 = vmatpush1.xpose.msra.mxu0 0.0
        %1976 = vmatprep.subr.mxu0 0.0
        %1977 = vmatpush1.xpose.msra.mxu0 0.0
        %1978 = vmatprep.mubr.f32.mxu0 0.0
        %1979 = vmatmul.mubr.f32.gmra.mrb[0].mxu0 %v1882
        %v1980 = vpop.f32.mrb[0].mxu0
        %v1981 = vadd.f32 %v1826, %v1980
        %v1982 = vpop.f32.mrb[0].mxu0
        %1983 = vmatprep.mubr.f32.mxu0 0.0
        %1984 = vmatmul.mubr.f32.gmra.mrb[0].mxu0 %v1884
        %v1985 = vpop.f32.mrb[0].mxu0
        %v1986 = vadd.f32 %v1827, %v1985
        %v1987 = vpop.f32.mrb[0].mxu0
        %1988 = vmatprep.mubr.f32.mxu0 0.0
        %1989 = vmatmul.mubr.f32.gmra.mrb[0].mxu0 %v1886
        %v1990 = vpop.f32.mrb[0].mxu0
        %v1991 = vadd.f32 %v1828, %v1990
        %v1992 = vpop.f32.mrb[0].mxu0
        %1993 = vmatprep.mubr.f32.mxu0 0.0
        %1994 = vmatmul.mubr.f32.gmra.mrb[0].mxu0 %v1888
        %v1995 = vpop.f32.mrb[0].mxu0
        %v1996 = vadd.f32 %v1829, %v1995
        %v1997 = vpop.f32.mrb[0].mxu0
        %1998 = vmatprep.mubr.f32.mxu0 0.0
        %1999 = vmatmul.mubr.f32.gmra.mrb[0].mxu0 %v1890
        %v2000 = vpop.f32.mrb[0].mxu0
        %v2001 = vadd.f32 %v1830, %v2000
        %v2002 = vpop.f32.mrb[0].mxu0
        %2003 = vmatprep.mubr.f32.mxu0 0.0
        %2004 = vmatmul.mubr.f32.gmra.mrb[0].mxu0 %v1892
        %v2005 = vpop.f32.mrb[0].mxu0
        %v2006 = vadd.f32 %v1831, %v2005
        %v2007 = vpop.f32.mrb[0].mxu0
        %2008 = vmatprep.mubr.f32.mxu0 0.0
        %2009 = vmatmul.mubr.f32.gmra.mrb[0].mxu0 %v1894
        %v2010 = vpop.f32.mrb[0].mxu0
        %v2011 = vadd.f32 %v1832, %v2010
        %v2012 = vpop.f32.mrb[0].mxu0
        %2013 = vmatprep.mubr.f32.mxu0 0.0
        %2014 = vmatmul.mubr.f32.gmra.mrb[0].mxu0 %v1896
        %v2015 = vpop.f32.mrb[0].mxu0
        %v2016 = vadd.f32 %v1833, %v2015
        %v2017 = vpop.f32.mrb[0].mxu0
        %2018 = vdwg.mxu0
        %v2019 = vsel %vm535, %v1981, -inf
        %2020 = vmax.xlane.f32.xlu0 %v2019
        %v2021 = vpop.xlane.xlu0 %2020
        %v2022 = vsel %vm535, %v1986, -inf
        %2023 = vmax.xlane.f32.xlu0 %v2022
        %v2024 = vpop.xlane.xlu0 %2023
        %v2025 = vsel %vm535, %v1991, -inf
        %2026 = vmax.xlane.f32.xlu0 %v2025
        %v2027 = vpop.xlane.xlu0 %2026
        %v2028 = vsel %vm535, %v1996, -inf
        %2029 = vmax.xlane.f32.xlu0 %v2028
        %v2030 = vpop.xlane.xlu0 %2029
        %v2031 = vsel %vm535, %v2001, -inf
        %2032 = vmax.xlane.f32.xlu0 %v2031
        %v2033 = vpop.xlane.xlu0 %2032
        %v2034 = vsel %vm535, %v2006, -inf
        %2035 = vmax.xlane.f32.xlu0 %v2034
        %v2036 = vpop.xlane.xlu0 %2035
        %v2037 = vsel %vm535, %v2011, -inf
        %2038 = vmax.xlane.f32.xlu0 %v2037
        %v2039 = vpop.xlane.xlu0 %2038
        %v2040 = vsel %vm535, %v2016, -inf
        %2041 = vmax.xlane.f32.xlu0 %v2040
        %v2042 = vpop.xlane.xlu0 %2041
        %v2043 = vsub.f32 %v1981, %v2021
        %v2044 = vsub.f32 %v1986, %v2024
        %v2045 = vsub.f32 %v1991, %v2027
        %v2046 = vsub.f32 %v1996, %v2030
        %v2047 = vsub.f32 %v2001, %v2033
        %v2048 = vsub.f32 %v2006, %v2036
        %v2049 = vsub.f32 %v2011, %v2039
        %v2050 = vsub.f32 %v2016, %v2042
        %v2051 = vmul.f32 %v2043, 1.442695
        %v2052 = vpow.pop %v2051
        %v2053 = vmul.f32 %v2044, 1.442695
        %v2054 = vpow.pop %v2053
        %v2055 = vmul.f32 %v2045, 1.442695
        %v2056 = vpow.pop %v2055
        %v2057 = vmul.f32 %v2046, 1.442695
        %v2058 = vpow.pop %v2057
        %v2059 = vmul.f32 %v2047, 1.442695
        %v2060 = vpow.pop %v2059
        %v2061 = vmul.f32 %v2048, 1.442695
        %v2062 = vpow.pop %v2061
        %v2063 = vmul.f32 %v2049, 1.442695
        %v2064 = vpow.pop %v2063
        %v2065 = vmul.f32 %v2050, 1.442695
        %v2066 = vpow.pop %v2065
        %v2067 = vsel %vm535, %v2052, 0.0
        %2068 = vadd.xlane.f32.xlu0 %v2067
        %v2069 = vpop.xlane.xlu0 %2068
        %v2070 = vsel %vm535, %v2054, 0.0
        %2071 = vadd.xlane.f32.xlu0 %v2070
        %v2072 = vpop.xlane.xlu0 %2071
        %v2073 = vsel %vm535, %v2056, 0.0
        %2074 = vadd.xlane.f32.xlu0 %v2073
        %v2075 = vpop.xlane.xlu0 %2074
        %v2076 = vsel %vm535, %v2058, 0.0
        %2077 = vadd.xlane.f32.xlu0 %v2076
        %v2078 = vpop.xlane.xlu0 %2077
        %v2079 = vsel %vm535, %v2060, 0.0
        %2080 = vadd.xlane.f32.xlu0 %v2079
        %v2081 = vpop.xlane.xlu0 %2080
        %v2082 = vsel %vm535, %v2062, 0.0
        %2083 = vadd.xlane.f32.xlu0 %v2082
        %v2084 = vpop.xlane.xlu0 %2083
        %v2085 = vsel %vm535, %v2064, 0.0
        %2086 = vadd.xlane.f32.xlu0 %v2085
        %v2087 = vpop.xlane.xlu0 %2086
        %v2088 = vsel %vm535, %v2066, 0.0
        %2089 = vadd.xlane.f32.xlu0 %v2088
        %v2090 = vpop.xlane.xlu0 %2089
        %2099 = vrot.lane.b32.xlu0 %v1817, 104
        %v2100 = vpop.permute.xlu0 %2099
        %2101 = vrot.lane.b32.xlu0 %v1818, 104
        %v2102 = vpop.permute.xlu0 %2101
        %2103 = vrot.lane.b32.xlu0 %v1819, 104
        %v2104 = vpop.permute.xlu0 %2103
        %2105 = vrot.lane.b32.xlu0 %v1820, 104
        %v2106 = vpop.permute.xlu0 %2105
        %2107 = vrot.lane.b32.xlu0 %v1821, 104
        %v2108 = vpop.permute.xlu0 %2107
        %2109 = vrot.lane.b32.xlu0 %v1822, 104
        %v2110 = vpop.permute.xlu0 %2109
        %2111 = vrot.lane.b32.xlu0 %v1823, 104
        %v2112 = vpop.permute.xlu0 %2111
        %2113 = vrot.lane.b32.xlu0 %v1824, 104
        %v2114 = vpop.permute.xlu0 %2113
        %v2124 = vsel %vm535, %v2052, 0
        %v2127 = vsel %vm535, %v2054, 0
        %v2130 = vsel %vm535, %v2056, 0
        %v2133 = vsel %vm535, %v2058, 0
        %v2136 = vsel %vm535, %v2060, 0
        %v2139 = vsel %vm535, %v2062, 0
        %v2142 = vsel %vm535, %v2064, 0
        %v2145 = vsel %vm535, %v2066, 0
        %2147 = vmatprep.subr.mxu0 0.0
        %2148 = vmatpush1.msra.mxu0 %v2100
        %2149 = vmatprep.subr.mxu0 0.0
        %2150 = vmatpush1.msra.mxu0 %v2102
        %2151 = vmatprep.subr.mxu0 0.0
        %2152 = vmatpush1.msra.mxu0 %v2104
        %2153 = vmatprep.subr.mxu0 0.0
        %2154 = vmatpush1.msra.mxu0 %v2106
        %2155 = vmatprep.subr.mxu0 0.0
        %2156 = vmatpush1.msra.mxu0 %v2108
        %2157 = vmatprep.subr.mxu0 0.0
        %2158 = vmatpush1.msra.mxu0 %v2110
        %2159 = vmatprep.subr.mxu0 0.0
        %2160 = vmatpush1.msra.mxu0 %v2112
        %2161 = vmatprep.subr.mxu0 0.0
        %2162 = vmatpush1.msra.mxu0 %v2114
        %2163 = vmatprep.subr.mxu0 0.0
        %2164 = vmatpush1.msra.mxu0 0.0
        %2165 = vmatprep.subr.mxu0 0.0
        %2166 = vmatpush1.msra.mxu0 0.0
        %2167 = vmatprep.subr.mxu0 0.0
        %2168 = vmatpush1.msra.mxu0 0.0
        %2169 = vmatprep.subr.mxu0 0.0
        %2170 = vmatpush1.msra.mxu0 0.0
        %2171 = vmatprep.subr.mxu0 0.0
        %2172 = vmatpush1.msra.mxu0 0.0
        %2173 = vmatprep.subr.mxu0 0.0
        %2174 = vmatpush1.msra.mxu0 0.0
        %2175 = vmatprep.subr.mxu0 0.0
        %2176 = vmatpush1.msra.mxu0 0.0
        %2177 = vmatprep.subr.mxu0 0.0
        %2178 = vmatpush1.msra.mxu0 0.0
        %2179 = vmatprep.subr.mxu0 0.0
        %2180 = vmatpush1.msra.mxu0 0.0
        %2181 = vmatprep.subr.mxu0 0.0
        %2182 = vmatpush1.msra.mxu0 0.0
        %2183 = vmatprep.subr.mxu0 0.0
        %2184 = vmatpush1.msra.mxu0 0.0
        %2185 = vmatprep.subr.mxu0 0.0
        %2186 = vmatpush1.msra.mxu0 0.0
        %2187 = vmatprep.subr.mxu0 0.0
        %2188 = vmatpush1.msra.mxu0 0.0
        %2189 = vmatprep.subr.mxu0 0.0
        %2190 = vmatpush1.msra.mxu0 0.0
        %2191 = vmatprep.subr.mxu0 0.0
        %2192 = vmatpush1.msra.mxu0 0.0
        %2193 = vmatprep.subr.mxu0 0.0
        %2194 = vmatpush1.msra.mxu0 0.0
        %2195 = vmatprep.subr.mxu0 0.0
        %2196 = vmatpush1.msra.mxu0 0.0
        %2197 = vmatprep.subr.mxu0 0.0
        %2198 = vmatpush1.msra.mxu0 0.0
        %2199 = vmatprep.subr.mxu0 0.0
        %2200 = vmatpush1.msra.mxu0 0.0
        %2201 = vmatprep.subr.mxu0 0.0
        %2202 = vmatpush1.msra.mxu0 0.0
        %2203 = vmatprep.subr.mxu0 0.0
        %2204 = vmatpush1.msra.mxu0 0.0
        %2205 = vmatprep.subr.mxu0 0.0
        %2206 = vmatpush1.msra.mxu0 0.0
        %2207 = vmatprep.subr.mxu0 0.0
        %2208 = vmatpush1.msra.mxu0 0.0
        %2209 = vmatprep.subr.mxu0 0.0
        %2210 = vmatpush1.msra.mxu0 0.0
        %2211 = vmatprep.mubr.f32.mxu0 0.0
        %2212 = vmatmul.mubr.f32.gmra.mrb[0].mxu0 %v2124
        %v2213 = vpop.f32.mrb[0].mxu0
        %v2214 = vadd.f32 0.0, %v2213
        %v2215 = vpop.f32.mrb[0].mxu0
        %2216 = vmatprep.mubr.f32.mxu0 0.0
        %2217 = vmatmul.mubr.f32.gmra.mrb[0].mxu0 %v2127
        %v2218 = vpop.f32.mrb[0].mxu0
        %v2219 = vadd.f32 0.0, %v2218
        %v2220 = vpop.f32.mrb[0].mxu0
        %2221 = vmatprep.mubr.f32.mxu0 0.0
        %2222 = vmatmul.mubr.f32.gmra.mrb[0].mxu0 %v2130
        %v2223 = vpop.f32.mrb[0].mxu0
        %v2224 = vadd.f32 0.0, %v2223
        %v2225 = vpop.f32.mrb[0].mxu0
        %2226 = vmatprep.mubr.f32.mxu0 0.0
        %2227 = vmatmul.mubr.f32.gmra.mrb[0].mxu0 %v2133
        %v2228 = vpop.f32.mrb[0].mxu0
        %v2229 = vadd.f32 0.0, %v2228
        %v2230 = vpop.f32.mrb[0].mxu0
        %2231 = vmatprep.mubr.f32.mxu0 0.0
        %2232 = vmatmul.mubr.f32.gmra.mrb[0].mxu0 %v2136
        %v2233 = vpop.f32.mrb[0].mxu0
        %v2234 = vadd.f32 0.0, %v2233
        %v2235 = vpop.f32.mrb[0].mxu0
        %2236 = vmatprep.mubr.f32.mxu0 0.0
        %2237 = vmatmul.mubr.f32.gmra.mrb[0].mxu0 %v2139
        %v2238 = vpop.f32.mrb[0].mxu0
        %v2239 = vadd.f32 0.0, %v2238
        %v2240 = vpop.f32.mrb[0].mxu0
        %2241 = vmatprep.mubr.f32.mxu0 0.0
        %2242 = vmatmul.mubr.f32.gmra.mrb[0].mxu0 %v2142
        %v2243 = vpop.f32.mrb[0].mxu0
        %v2244 = vadd.f32 0.0, %v2243
        %v2245 = vpop.f32.mrb[0].mxu0
        %2246 = vmatprep.mubr.f32.mxu0 0.0
        %2247 = vmatmul.mubr.f32.gmra.mrb[0].mxu0 %v2145
        %v2248 = vpop.f32.mrb[0].mxu0
        %v2249 = vadd.f32 0.0, %v2248
        %v2250 = vpop.f32.mrb[0].mxu0
        %2251 = vdwg.mxu0
        %v2252 = vrcp.pop %v2069
        %v2253 = vmul.f32 %v2214, %v2252
        %v2254 = vrcp.pop %v2072
        %v2255 = vmul.f32 %v2219, %v2254
        %v2256 = vrcp.pop %v2075
        %v2257 = vmul.f32 %v2224, %v2256
        %v2258 = vrcp.pop %v2078
        %v2259 = vmul.f32 %v2229, %v2258
        %v2260 = vrcp.pop %v2081
        %v2261 = vmul.f32 %v2234, %v2260
        %v2262 = vrcp.pop %v2084
        %v2263 = vmul.f32 %v2239, %v2262
        %v2264 = vrcp.pop %v2087
        %v2265 = vmul.f32 %v2244, %v2264
        %v2266 = vrcp.pop %v2090
        %v2267 = vmul.f32 %v2249, %v2266
        %2276 = vrot.lane.b32.xlu0 %v2253, 24
        %v2277 = vpop.permute.xlu0 %2276
        %2278 = vrot.lane.b32.xlu0 %v2255, 24
        %v2279 = vpop.permute.xlu0 %2278
        %2280 = vrot.lane.b32.xlu0 %v2257, 24
        %v2281 = vpop.permute.xlu0 %2280
        %2282 = vrot.lane.b32.xlu0 %v2259, 24
        %v2283 = vpop.permute.xlu0 %2282
        %2284 = vrot.lane.b32.xlu0 %v2261, 24
        %v2285 = vpop.permute.xlu0 %2284
        %2286 = vrot.lane.b32.xlu0 %v2263, 24
        %v2287 = vpop.permute.xlu0 %2286
        %2288 = vrot.lane.b32.xlu0 %v2265, 24
        %v2289 = vpop.permute.xlu0 %2288
        %2290 = vrot.lane.b32.xlu0 %v2267, 24
        %v2291 = vpop.permute.xlu0 %2290
        %vm2300 = vcmask 261312
        %2301 = vst.msk [vmem:[%s336] sm:$0xff] %vm2300, %v2277
        %2302 = vst.msk [vmem:[%s336 + $0x10] sm:$0xff] %vm2300, %v2279
        %2303 = vst.msk [vmem:[%s336 + $0x20] sm:$0xff] %vm2300, %v2281
        %2304 = vst.msk [vmem:[%s336 + $0x30] sm:$0xff] %vm2300, %v2283
        %2305 = vst.msk [vmem:[%s336 + $0x40] sm:$0xff] %vm2300, %v2285
        %2306 = vst.msk [vmem:[%s336 + $0x50] sm:$0xff] %vm2300, %v2287
        %2307 = vst.msk [vmem:[%s336 + $0x60] sm:$0xff] %vm2300, %v2289
        %2308 = vst.msk [vmem:[%s336 + $0x70] sm:$0xff] %vm2300, %v2291
        %v2309 = vld [vmem:[%s280 + $0x8] sm:$0xff]
        %v2310 = vld [vmem:[%s280 + $0x18] sm:$0xff]
        %v2311 = vld [vmem:[%s280 + $0x28] sm:$0xff]
        %v2312 = vld [vmem:[%s280 + $0x38] sm:$0xff]
        %v2313 = vld [vmem:[%s280 + $0x48] sm:$0xff]
        %v2314 = vld [vmem:[%s280 + $0x58] sm:$0xff]
        %v2315 = vld [vmem:[%s280 + $0x68] sm:$0xff]
        %v2316 = vld [vmem:[%s280 + $0x78] sm:$0xff]
        %v2317 = vmul.f32 %v2309, 0.35355338
        %v2318 = vmul.f32 %v2310, 0.35355338
        %v2319 = vmul.f32 %v2311, 0.35355338
        %v2320 = vmul.f32 %v2312, 0.35355338
        %v2321 = vmul.f32 %v2313, 0.35355338
        %v2322 = vmul.f32 %v2314, 0.35355338
        %v2323 = vmul.f32 %v2315, 0.35355338
        %v2324 = vmul.f32 %v2316, 0.35355338
        %v2325 = vld [vmem:[%s289 + $0x8] sm:$0xff]
        %v2326 = vld [vmem:[%s289 + $0x18] sm:$0xff]
        %v2327 = vld [vmem:[%s289 + $0x28] sm:$0xff]
        %v2328 = vld [vmem:[%s289 + $0x38] sm:$0xff]
        %v2329 = vld [vmem:[%s289 + $0x48] sm:$0xff]
        %v2330 = vld [vmem:[%s289 + $0x58] sm:$0xff]
        %v2331 = vld [vmem:[%s289 + $0x68] sm:$0xff]
        %v2332 = vld [vmem:[%s289 + $0x78] sm:$0xff]
        %v2333 = vld [vmem:[%s298 + $0x8] sm:$0xff]
        %v2334 = vld [vmem:[%s298 + $0x18] sm:$0xff]
        %v2335 = vld [vmem:[%s298 + $0x28] sm:$0xff]
        %v2336 = vld [vmem:[%s298 + $0x38] sm:$0xff]
        %v2337 = vld [vmem:[%s298 + $0x48] sm:$0xff]
        %v2338 = vld [vmem:[%s298 + $0x58] sm:$0xff]
        %v2339 = vld [vmem:[%s298 + $0x68] sm:$0xff]
        %v2340 = vld [vmem:[%s298 + $0x78] sm:$0xff]
        %v2341 = vld [vmem:[#allocation8] sm:$0xff]
        %v2342 = vld [vmem:[#allocation8 + $0x8] sm:$0xff]
        %v2343 = vld [vmem:[#allocation8 + $0x10] sm:$0xff]
        %v2344 = vld [vmem:[#allocation8 + $0x18] sm:$0xff]
        %v2345 = vld [vmem:[#allocation8 + $0x20] sm:$0xff]
        %v2346 = vld [vmem:[#allocation8 + $0x28] sm:$0xff]
        %v2347 = vld [vmem:[#allocation8 + $0x30] sm:$0xff]
        %v2348 = vld [vmem:[#allocation8 + $0x38] sm:$0xff]
        %v2350 = vsel %vm381, %v2317, 0
        %v2353 = vsel %vm381, %v2318, 0
        %v2356 = vsel %vm381, %v2319, 0
        %v2359 = vsel %vm381, %v2320, 0
        %v2362 = vsel %vm381, %v2321, 0
        %v2365 = vsel %vm381, %v2322, 0
        %v2368 = vsel %vm381, %v2323, 0
        %v2371 = vsel %vm381, %v2324, 0
        %v2374 = vsel %vm381, %v2325, 0
        %v2377 = vsel %vm381, %v2326, 0
        %v2380 = vsel %vm381, %v2327, 0
        %v2383 = vsel %vm381, %v2328, 0
        %v2386 = vsel %vm381, %v2329, 0
        %v2389 = vsel %vm381, %v2330, 0
        %v2392 = vsel %vm381, %v2331, 0
        %v2395 = vsel %vm381, %v2332, 0
        %2397 = vmatprep.subr.mxu0 0.0
        %2398 = vmatpush1.xpose.msra.mxu0 %v2374
        %2399 = vmatprep.subr.mxu0 0.0
        %2400 = vmatpush1.xpose.msra.mxu0 %v2377
        %2401 = vmatprep.subr.mxu0 0.0
        %2402 = vmatpush1.xpose.msra.mxu0 %v2380
        %2403 = vmatprep.subr.mxu0 0.0
        %2404 = vmatpush1.xpose.msra.mxu0 %v2383
        %2405 = vmatprep.subr.mxu0 0.0
        %2406 = vmatpush1.xpose.msra.mxu0 %v2386
        %2407 = vmatprep.subr.mxu0 0.0
        %2408 = vmatpush1.xpose.msra.mxu0 %v2389
        %2409 = vmatprep.subr.mxu0 0.0
        %2410 = vmatpush1.xpose.msra.mxu0 %v2392
        %2411 = vmatprep.subr.mxu0 0.0
        %2412 = vmatpush1.xpose.msra.mxu0 %v2395
        %2413 = vmatprep.subr.mxu0 0.0
        %2414 = vmatpush1.xpose.msra.mxu0 0.0
        %2415 = vmatprep.subr.mxu0 0.0
        %2416 = vmatpush1.xpose.msra.mxu0 0.0
        %2417 = vmatprep.subr.mxu0 0.0
        %2418 = vmatpush1.xpose.msra.mxu0 0.0
        %2419 = vmatprep.subr.mxu0 0.0
        %2420 = vmatpush1.xpose.msra.mxu0 0.0
        %2421 = vmatprep.subr.mxu0 0.0
        %2422 = vmatpush1.xpose.msra.mxu0 0.0
        %2423 = vmatprep.subr.mxu0 0.0
        %2424 = vmatpush1.xpose.msra.mxu0 0.0
        %2425 = vmatprep.subr.mxu0 0.0
        %2426 = vmatpush1.xpose.msra.mxu0 0.0
        %2427 = vmatprep.subr.mxu0 0.0
        %2428 = vmatpush1.xpose.msra.mxu0 0.0
        %2429 = vmatprep.subr.mxu0 0.0
        %2430 = vmatpush1.xpose.msra.mxu0 0.0
        %2431 = vmatprep.subr.mxu0 0.0
        %2432 = vmatpush1.xpose.msra.mxu0 0.0
        %2433 = vmatprep.subr.mxu0 0.0
        %2434 = vmatpush1.xpose.msra.mxu0 0.0
        %2435 = vmatprep.subr.mxu0 0.0
        %2436 = vmatpush1.xpose.msra.mxu0 0.0
        %2437 = vmatprep.subr.mxu0 0.0
        %2438 = vmatpush1.xpose.msra.mxu0 0.0
        %2439 = vmatprep.subr.mxu0 0.0
        %2440 = vmatpush1.xpose.msra.mxu0 0.0
        %2441 = vmatprep.subr.mxu0 0.0
        %2442 = vmatpush1.xpose.msra.mxu0 0.0
        %2443 = vmatprep.subr.mxu0 0.0
        %2444 = vmatpush1.xpose.msra.mxu0 0.0
        %2445 = vmatprep.subr.mxu0 0.0
        %2446 = vmatpush1.xpose.msra.mxu0 0.0
        %2447 = vmatprep.subr.mxu0 0.0
        %2448 = vmatpush1.xpose.msra.mxu0 0.0
        %2449 = vmatprep.subr.mxu0 0.0
        %2450 = vmatpush1.xpose.msra.mxu0 0.0
        %2451 = vmatprep.subr.mxu0 0.0
        %2452 = vmatpush1.xpose.msra.mxu0 0.0
        %2453 = vmatprep.subr.mxu0 0.0
        %2454 = vmatpush1.xpose.msra.mxu0 0.0
        %2455 = vmatprep.subr.mxu0 0.0
        %2456 = vmatpush1.xpose.msra.mxu0 0.0
        %2457 = vmatprep.subr.mxu0 0.0
        %2458 = vmatpush1.xpose.msra.mxu0 0.0
        %2459 = vmatprep.subr.mxu0 0.0
        %2460 = vmatpush1.xpose.msra.mxu0 0.0
        %2461 = vmatprep.mubr.f32.mxu0 0.0
        %2462 = vmatmul.mubr.f32.gmra.mrb[0].mxu0 %v2350
        %v2463 = vpop.f32.mrb[0].mxu0
        %v2464 = vadd.f32 %v2341, %v2463
        %v2465 = vpop.f32.mrb[0].mxu0
        %2466 = vmatprep.mubr.f32.mxu0 0.0
        %2467 = vmatmul.mubr.f32.gmra.mrb[0].mxu0 %v2353
        %v2468 = vpop.f32.mrb[0].mxu0
        %v2469 = vadd.f32 %v2342, %v2468
        %v2470 = vpop.f32.mrb[0].mxu0
        %2471 = vmatprep.mubr.f32.mxu0 0.0
        %2472 = vmatmul.mubr.f32.gmra.mrb[0].mxu0 %v2356
        %v2473 = vpop.f32.mrb[0].mxu0
        %v2474 = vadd.f32 %v2343, %v2473
        %v2475 = vpop.f32.mrb[0].mxu0
        %2476 = vmatprep.mubr.f32.mxu0 0.0
        %2477 = vmatmul.mubr.f32.gmra.mrb[0].mxu0 %v2359
        %v2478 = vpop.f32.mrb[0].mxu0
        %v2479 = vadd.f32 %v2344, %v2478
        %v2480 = vpop.f32.mrb[0].mxu0
        %2481 = vmatprep.mubr.f32.mxu0 0.0
        %2482 = vmatmul.mubr.f32.gmra.mrb[0].mxu0 %v2362
        %v2483 = vpop.f32.mrb[0].mxu0
        %v2484 = vadd.f32 %v2345, %v2483
        %v2485 = vpop.f32.mrb[0].mxu0
        %2486 = vmatprep.mubr.f32.mxu0 0.0
        %2487 = vmatmul.mubr.f32.gmra.mrb[0].mxu0 %v2365
        %v2488 = vpop.f32.mrb[0].mxu0
        %v2489 = vadd.f32 %v2346, %v2488
        %v2490 = vpop.f32.mrb[0].mxu0
        %2491 = vmatprep.mubr.f32.mxu0 0.0
        %2492 = vmatmul.mubr.f32.gmra.mrb[0].mxu0 %v2368
        %v2493 = vpop.f32.mrb[0].mxu0
        %v2494 = vadd.f32 %v2347, %v2493
        %v2495 = vpop.f32.mrb[0].mxu0
        %2496 = vmatprep.mubr.f32.mxu0 0.0
        %2497 = vmatmul.mubr.f32.gmra.mrb[0].mxu0 %v2371
        %v2498 = vpop.f32.mrb[0].mxu0
        %v2499 = vadd.f32 %v2348, %v2498
        %v2500 = vpop.f32.mrb[0].mxu0
        %2501 = vdwg.mxu0
        %v2502 = vsel %vm535, %v2464, -inf
        %2503 = vmax.xlane.f32.xlu0 %v2502
        %v2504 = vpop.xlane.xlu0 %2503
        %v2505 = vsel %vm535, %v2469, -inf
        %2506 = vmax.xlane.f32.xlu0 %v2505
        %v2507 = vpop.xlane.xlu0 %2506
        %v2508 = vsel %vm535, %v2474, -inf
        %2509 = vmax.xlane.f32.xlu0 %v2508
        %v2510 = vpop.xlane.xlu0 %2509
        %v2511 = vsel %vm535, %v2479, -inf
        %2512 = vmax.xlane.f32.xlu0 %v2511
        %v2513 = vpop.xlane.xlu0 %2512
        %v2514 = vsel %vm535, %v2484, -inf
        %2515 = vmax.xlane.f32.xlu0 %v2514
        %v2516 = vpop.xlane.xlu0 %2515
        %v2517 = vsel %vm535, %v2489, -inf
        %2518 = vmax.xlane.f32.xlu0 %v2517
        %v2519 = vpop.xlane.xlu0 %2518
        %v2520 = vsel %vm535, %v2494, -inf
        %2521 = vmax.xlane.f32.xlu0 %v2520
        %v2522 = vpop.xlane.xlu0 %2521
        %v2523 = vsel %vm535, %v2499, -inf
        %2524 = vmax.xlane.f32.xlu0 %v2523
        %v2525 = vpop.xlane.xlu0 %2524
        %v2526 = vsub.f32 %v2464, %v2504
        %v2527 = vsub.f32 %v2469, %v2507
        %v2528 = vsub.f32 %v2474, %v2510
        %v2529 = vsub.f32 %v2479, %v2513
        %v2530 = vsub.f32 %v2484, %v2516
        %v2531 = vsub.f32 %v2489, %v2519
        %v2532 = vsub.f32 %v2494, %v2522
        %v2533 = vsub.f32 %v2499, %v2525
        %v2534 = vmul.f32 %v2526, 1.442695
        %v2535 = vpow.pop %v2534
        %v2536 = vmul.f32 %v2527, 1.442695
        %v2537 = vpow.pop %v2536
        %v2538 = vmul.f32 %v2528, 1.442695
        %v2539 = vpow.pop %v2538
        %v2540 = vmul.f32 %v2529, 1.442695
        %v2541 = vpow.pop %v2540
        %v2542 = vmul.f32 %v2530, 1.442695
        %v2543 = vpow.pop %v2542
        %v2544 = vmul.f32 %v2531, 1.442695
        %v2545 = vpow.pop %v2544
        %v2546 = vmul.f32 %v2532, 1.442695
        %v2547 = vpow.pop %v2546
        %v2548 = vmul.f32 %v2533, 1.442695
        %v2549 = vpow.pop %v2548
        %v2550 = vsel %vm535, %v2535, 0.0
        %2551 = vadd.xlane.f32.xlu0 %v2550
        %v2552 = vpop.xlane.xlu0 %2551
        %v2553 = vsel %vm535, %v2537, 0.0
        %2554 = vadd.xlane.f32.xlu0 %v2553
        %v2555 = vpop.xlane.xlu0 %2554
        %v2556 = vsel %vm535, %v2539, 0.0
        %2557 = vadd.xlane.f32.xlu0 %v2556
        %v2558 = vpop.xlane.xlu0 %2557
        %v2559 = vsel %vm535, %v2541, 0.0
        %2560 = vadd.xlane.f32.xlu0 %v2559
        %v2561 = vpop.xlane.xlu0 %2560
        %v2562 = vsel %vm535, %v2543, 0.0
        %2563 = vadd.xlane.f32.xlu0 %v2562
        %v2564 = vpop.xlane.xlu0 %2563
        %v2565 = vsel %vm535, %v2545, 0.0
        %2566 = vadd.xlane.f32.xlu0 %v2565
        %v2567 = vpop.xlane.xlu0 %2566
        %v2568 = vsel %vm535, %v2547, 0.0
        %2569 = vadd.xlane.f32.xlu0 %v2568
        %v2570 = vpop.xlane.xlu0 %2569
        %v2571 = vsel %vm535, %v2549, 0.0
        %2572 = vadd.xlane.f32.xlu0 %v2571
        %v2573 = vpop.xlane.xlu0 %2572
        %v2575 = vsel %vm535, %v2535, 0
        %v2578 = vsel %vm535, %v2537, 0
        %v2581 = vsel %vm535, %v2539, 0
        %v2584 = vsel %vm535, %v2541, 0
        %v2587 = vsel %vm535, %v2543, 0
        %v2590 = vsel %vm535, %v2545, 0
        %v2593 = vsel %vm535, %v2547, 0
        %v2596 = vsel %vm535, %v2549, 0
        %2598 = vmatprep.subr.mxu0 0.0
        %2599 = vmatpush1.msra.mxu0 %v2333
        %2600 = vmatprep.subr.mxu0 0.0
        %2601 = vmatpush1.msra.mxu0 %v2334
        %2602 = vmatprep.subr.mxu0 0.0
        %2603 = vmatpush1.msra.mxu0 %v2335
        %2604 = vmatprep.subr.mxu0 0.0
        %2605 = vmatpush1.msra.mxu0 %v2336
        %2606 = vmatprep.subr.mxu0 0.0
        %2607 = vmatpush1.msra.mxu0 %v2337
        %2608 = vmatprep.subr.mxu0 0.0
        %2609 = vmatpush1.msra.mxu0 %v2338
        %2610 = vmatprep.subr.mxu0 0.0
        %2611 = vmatpush1.msra.mxu0 %v2339
        %2612 = vmatprep.subr.mxu0 0.0
        %2613 = vmatpush1.msra.mxu0 %v2340
        %2614 = vmatprep.subr.mxu0 0.0
        %2615 = vmatpush1.msra.mxu0 0.0
        %2616 = vmatprep.subr.mxu0 0.0
        %2617 = vmatpush1.msra.mxu0 0.0
        %2618 = vmatprep.subr.mxu0 0.0
        %2619 = vmatpush1.msra.mxu0 0.0
        %2620 = vmatprep.subr.mxu0 0.0
        %2621 = vmatpush1.msra.mxu0 0.0
        %2622 = vmatprep.subr.mxu0 0.0
        %2623 = vmatpush1.msra.mxu0 0.0
        %2624 = vmatprep.subr.mxu0 0.0
        %2625 = vmatpush1.msra.mxu0 0.0
        %2626 = vmatprep.subr.mxu0 0.0
        %2627 = vmatpush1.msra.mxu0 0.0
        %2628 = vmatprep.subr.mxu0 0.0
        %2629 = vmatpush1.msra.mxu0 0.0
        %2630 = vmatprep.subr.mxu0 0.0
        %2631 = vmatpush1.msra.mxu0 0.0
        %2632 = vmatprep.subr.mxu0 0.0
        %2633 = vmatpush1.msra.mxu0 0.0
        %2634 = vmatprep.subr.mxu0 0.0
        %2635 = vmatpush1.msra.mxu0 0.0
        %2636 = vmatprep.subr.mxu0 0.0
        %2637 = vmatpush1.msra.mxu0 0.0
        %2638 = vmatprep.subr.mxu0 0.0
        %2639 = vmatpush1.msra.mxu0 0.0
        %2640 = vmatprep.subr.mxu0 0.0
        %2641 = vmatpush1.msra.mxu0 0.0
        %2642 = vmatprep.subr.mxu0 0.0
        %2643 = vmatpush1.msra.mxu0 0.0
        %2644 = vmatprep.subr.mxu0 0.0
        %2645 = vmatpush1.msra.mxu0 0.0
        %2646 = vmatprep.subr.mxu0 0.0
        %2647 = vmatpush1.msra.mxu0 0.0
        %2648 = vmatprep.subr.mxu0 0.0
        %2649 = vmatpush1.msra.mxu0 0.0
        %2650 = vmatprep.subr.mxu0 0.0
        %2651 = vmatpush1.msra.mxu0 0.0
        %2652 = vmatprep.subr.mxu0 0.0
        %2653 = vmatpush1.msra.mxu0 0.0
        %2654 = vmatprep.subr.mxu0 0.0
        %2655 = vmatpush1.msra.mxu0 0.0
        %2656 = vmatprep.subr.mxu0 0.0
        %2657 = vmatpush1.msra.mxu0 0.0
        %2658 = vmatprep.subr.mxu0 0.0
        %2659 = vmatpush1.msra.mxu0 0.0
        %2660 = vmatprep.subr.mxu0 0.0
        %2661 = vmatpush1.msra.mxu0 0.0
        %2662 = vmatprep.mubr.f32.mxu0 0.0
        %2663 = vmatmul.mubr.f32.gmra.mrb[0].mxu0 %v2575
        %v2664 = vpop.f32.mrb[0].mxu0
        %v2665 = vadd.f32 0.0, %v2664
        %v2666 = vpop.f32.mrb[0].mxu0
        %2667 = vmatprep.mubr.f32.mxu0 0.0
        %2668 = vmatmul.mubr.f32.gmra.mrb[0].mxu0 %v2578
        %v2669 = vpop.f32.mrb[0].mxu0
        %v2670 = vadd.f32 0.0, %v2669
        %v2671 = vpop.f32.mrb[0].mxu0
        %2672 = vmatprep.mubr.f32.mxu0 0.0
        %2673 = vmatmul.mubr.f32.gmra.mrb[0].mxu0 %v2581
        %v2674 = vpop.f32.mrb[0].mxu0
        %v2675 = vadd.f32 0.0, %v2674
        %v2676 = vpop.f32.mrb[0].mxu0
        %2677 = vmatprep.mubr.f32.mxu0 0.0
        %2678 = vmatmul.mubr.f32.gmra.mrb[0].mxu0 %v2584
        %v2679 = vpop.f32.mrb[0].mxu0
        %v2680 = vadd.f32 0.0, %v2679
        %v2681 = vpop.f32.mrb[0].mxu0
        %2682 = vmatprep.mubr.f32.mxu0 0.0
        %2683 = vmatmul.mubr.f32.gmra.mrb[0].mxu0 %v2587
        %v2684 = vpop.f32.mrb[0].mxu0
        %v2685 = vadd.f32 0.0, %v2684
        %v2686 = vpop.f32.mrb[0].mxu0
        %2687 = vmatprep.mubr.f32.mxu0 0.0
        %2688 = vmatmul.mubr.f32.gmra.mrb[0].mxu0 %v2590
        %v2689 = vpop.f32.mrb[0].mxu0
        %v2690 = vadd.f32 0.0, %v2689
        %v2691 = vpop.f32.mrb[0].mxu0
        %2692 = vmatprep.mubr.f32.mxu0 0.0
        %2693 = vmatmul.mubr.f32.gmra.mrb[0].mxu0 %v2593
        %v2694 = vpop.f32.mrb[0].mxu0
        %v2695 = vadd.f32 0.0, %v2694
        %v2696 = vpop.f32.mrb[0].mxu0
        %2697 = vmatprep.mubr.f32.mxu0 0.0
        %2698 = vmatmul.mubr.f32.gmra.mrb[0].mxu0 %v2596
        %v2699 = vpop.f32.mrb[0].mxu0
        %v2700 = vadd.f32 0.0, %v2699
        %v2701 = vpop.f32.mrb[0].mxu0
        %2702 = vdwg.mxu0
        %v2703 = vrcp.pop %v2552
        %v2704 = vmul.f32 %v2665, %v2703
        %v2705 = vrcp.pop %v2555
        %v2706 = vmul.f32 %v2670, %v2705
        %v2707 = vrcp.pop %v2558
        %v2708 = vmul.f32 %v2675, %v2707
        %v2709 = vrcp.pop %v2561
        %v2710 = vmul.f32 %v2680, %v2709
        %v2711 = vrcp.pop %v2564
        %v2712 = vmul.f32 %v2685, %v2711
        %v2713 = vrcp.pop %v2567
        %v2714 = vmul.f32 %v2690, %v2713
        %v2715 = vrcp.pop %v2570
        %v2716 = vmul.f32 %v2695, %v2715
        %v2717 = vrcp.pop %v2573
        %v2718 = vmul.f32 %v2700, %v2717
        %2719 = vst.msk [vmem:[%s336 + $0x8] sm:$0xff] %vm381, %v2704
        %2720 = vst.msk [vmem:[%s336 + $0x18] sm:$0xff] %vm381, %v2706
        %2721 = vst.msk [vmem:[%s336 + $0x28] sm:$0xff] %vm381, %v2708
        %2722 = vst.msk [vmem:[%s336 + $0x38] sm:$0xff] %vm381, %v2710
        %2723 = vst.msk [vmem:[%s336 + $0x48] sm:$0xff] %vm381, %v2712
        %2724 = vst.msk [vmem:[%s336 + $0x58] sm:$0xff] %vm381, %v2714
        %2725 = vst.msk [vmem:[%s336 + $0x68] sm:$0xff] %vm381, %v2716
        %2726 = vst.msk [vmem:[%s336 + $0x78] sm:$0xff] %vm381, %v2718
        %v2727 = vld [vmem:[%s280 + $0x8] sm:$0xff]
        %v2728 = vld [vmem:[%s280 + $0x18] sm:$0xff]
        %v2729 = vld [vmem:[%s280 + $0x28] sm:$0xff]
        %v2730 = vld [vmem:[%s280 + $0x38] sm:$0xff]
        %v2731 = vld [vmem:[%s280 + $0x48] sm:$0xff]
        %v2732 = vld [vmem:[%s280 + $0x58] sm:$0xff]
        %v2733 = vld [vmem:[%s280 + $0x68] sm:$0xff]
        %v2734 = vld [vmem:[%s280 + $0x78] sm:$0xff]
        %v2735 = vmul.f32 %v2727, 0.35355338
        %v2736 = vmul.f32 %v2728, 0.35355338
        %v2737 = vmul.f32 %v2729, 0.35355338
        %v2738 = vmul.f32 %v2730, 0.35355338
        %v2739 = vmul.f32 %v2731, 0.35355338
        %v2740 = vmul.f32 %v2732, 0.35355338
        %v2741 = vmul.f32 %v2733, 0.35355338
        %v2742 = vmul.f32 %v2734, 0.35355338
        %v2743 = vld [vmem:[%s289 + $0x8] sm:$0xff]
        %v2744 = vld [vmem:[%s289 + $0x18] sm:$0xff]
        %v2745 = vld [vmem:[%s289 + $0x28] sm:$0xff]
        %v2746 = vld [vmem:[%s289 + $0x38] sm:$0xff]
        %v2747 = vld [vmem:[%s289 + $0x48] sm:$0xff]
        %v2748 = vld [vmem:[%s289 + $0x58] sm:$0xff]
        %v2749 = vld [vmem:[%s289 + $0x68] sm:$0xff]
        %v2750 = vld [vmem:[%s289 + $0x78] sm:$0xff]
        %v2751 = vld [vmem:[%s298 + $0x8] sm:$0xff]
        %v2752 = vld [vmem:[%s298 + $0x18] sm:$0xff]
        %v2753 = vld [vmem:[%s298 + $0x28] sm:$0xff]
        %v2754 = vld [vmem:[%s298 + $0x38] sm:$0xff]
        %v2755 = vld [vmem:[%s298 + $0x48] sm:$0xff]
        %v2756 = vld [vmem:[%s298 + $0x58] sm:$0xff]
        %v2757 = vld [vmem:[%s298 + $0x68] sm:$0xff]
        %v2758 = vld [vmem:[%s298 + $0x78] sm:$0xff]
        %v2759 = vld [vmem:[%s793] sm:$0xff]
        %v2760 = vld [vmem:[%s793 + $0x8] sm:$0xff]
        %v2761 = vld [vmem:[%s793 + $0x10] sm:$0xff]
        %v2762 = vld [vmem:[%s793 + $0x18] sm:$0xff]
        %v2763 = vld [vmem:[%s793 + $0x20] sm:$0xff]
        %v2764 = vld [vmem:[%s793 + $0x28] sm:$0xff]
        %v2765 = vld [vmem:[%s793 + $0x30] sm:$0xff]
        %v2766 = vld [vmem:[%s793 + $0x38] sm:$0xff]
        %2775 = vrot.lane.b32.xlu0 %v2735, 120
        %v2776 = vpop.permute.xlu0 %2775
        %2777 = vrot.lane.b32.xlu0 %v2736, 120
        %v2778 = vpop.permute.xlu0 %2777
        %2779 = vrot.lane.b32.xlu0 %v2737, 120
        %v2780 = vpop.permute.xlu0 %2779
        %2781 = vrot.lane.b32.xlu0 %v2738, 120
        %v2782 = vpop.permute.xlu0 %2781
        %2783 = vrot.lane.b32.xlu0 %v2739, 120
        %v2784 = vpop.permute.xlu0 %2783
        %2785 = vrot.lane.b32.xlu0 %v2740, 120
        %v2786 = vpop.permute.xlu0 %2785
        %2787 = vrot.lane.b32.xlu0 %v2741, 120
        %v2788 = vpop.permute.xlu0 %2787
        %2789 = vrot.lane.b32.xlu0 %v2742, 120
        %v2790 = vpop.permute.xlu0 %2789
        %2799 = vrot.lane.b32.xlu0 %v2743, 120
        %v2800 = vpop.permute.xlu0 %2799
        %2801 = vrot.lane.b32.xlu0 %v2744, 120
        %v2802 = vpop.permute.xlu0 %2801
        %2803 = vrot.lane.b32.xlu0 %v2745, 120
        %v2804 = vpop.permute.xlu0 %2803
        %2805 = vrot.lane.b32.xlu0 %v2746, 120
        %v2806 = vpop.permute.xlu0 %2805
        %2807 = vrot.lane.b32.xlu0 %v2747, 120
        %v2808 = vpop.permute.xlu0 %2807
        %2809 = vrot.lane.b32.xlu0 %v2748, 120
        %v2810 = vpop.permute.xlu0 %2809
        %2811 = vrot.lane.b32.xlu0 %v2749, 120
        %v2812 = vpop.permute.xlu0 %2811
        %2813 = vrot.lane.b32.xlu0 %v2750, 120
        %v2814 = vpop.permute.xlu0 %2813
        %v2815 = vsel %vm381, %v2776, 0
        %v2817 = vsel %vm381, %v2778, 0
        %v2819 = vsel %vm381, %v2780, 0
        %v2821 = vsel %vm381, %v2782, 0
        %v2823 = vsel %vm381, %v2784, 0
        %v2825 = vsel %vm381, %v2786, 0
        %v2827 = vsel %vm381, %v2788, 0
        %v2829 = vsel %vm381, %v2790, 0
        %v2831 = vsel %vm381, %v2800, 0
        %v2833 = vsel %vm381, %v2802, 0
        %v2835 = vsel %vm381, %v2804, 0
        %v2837 = vsel %vm381, %v2806, 0
        %v2839 = vsel %vm381, %v2808, 0
        %v2841 = vsel %vm381, %v2810, 0
        %v2843 = vsel %vm381, %v2812, 0
        %v2845 = vsel %vm381, %v2814, 0
        %2847 = vmatprep.subr.mxu0 0.0
        %2848 = vmatpush1.xpose.msra.mxu0 %v2831
        %2849 = vmatprep.subr.mxu0 0.0
        %2850 = vmatpush1.xpose.msra.mxu0 %v2833
        %2851 = vmatprep.subr.mxu0 0.0
        %2852 = vmatpush1.xpose.msra.mxu0 %v2835
        %2853 = vmatprep.subr.mxu0 0.0
        %2854 = vmatpush1.xpose.msra.mxu0 %v2837
        %2855 = vmatprep.subr.mxu0 0.0
        %2856 = vmatpush1.xpose.msra.mxu0 %v2839
        %2857 = vmatprep.subr.mxu0 0.0
        %2858 = vmatpush1.xpose.msra.mxu0 %v2841
        %2859 = vmatprep.subr.mxu0 0.0
        %2860 = vmatpush1.xpose.msra.mxu0 %v2843
        %2861 = vmatprep.subr.mxu0 0.0
        %2862 = vmatpush1.xpose.msra.mxu0 %v2845
        %2863 = vmatprep.subr.mxu0 0.0
        %2864 = vmatpush1.xpose.msra.mxu0 0.0
        %2865 = vmatprep.subr.mxu0 0.0
        %2866 = vmatpush1.xpose.msra.mxu0 0.0
        %2867 = vmatprep.subr.mxu0 0.0
        %2868 = vmatpush1.xpose.msra.mxu0 0.0
        %2869 = vmatprep.subr.mxu0 0.0
        %2870 = vmatpush1.xpose.msra.mxu0 0.0
        %2871 = vmatprep.subr.mxu0 0.0
        %2872 = vmatpush1.xpose.msra.mxu0 0.0
        %2873 = vmatprep.subr.mxu0 0.0
        %2874 = vmatpush1.xpose.msra.mxu0 0.0
        %2875 = vmatprep.subr.mxu0 0.0
        %2876 = vmatpush1.xpose.msra.mxu0 0.0
        %2877 = vmatprep.subr.mxu0 0.0
        %2878 = vmatpush1.xpose.msra.mxu0 0.0
        %2879 = vmatprep.subr.mxu0 0.0
        %2880 = vmatpush1.xpose.msra.mxu0 0.0
        %2881 = vmatprep.subr.mxu0 0.0
        %2882 = vmatpush1.xpose.msra.mxu0 0.0
        %2883 = vmatprep.subr.mxu0 0.0
        %2884 = vmatpush1.xpose.msra.mxu0 0.0
        %2885 = vmatprep.subr.mxu0 0.0
        %2886 = vmatpush1.xpose.msra.mxu0 0.0
        %2887 = vmatprep.subr.mxu0 0.0
        %2888 = vmatpush1.xpose.msra.mxu0 0.0
        %2889 = vmatprep.subr.mxu0 0.0
        %2890 = vmatpush1.xpose.msra.mxu0 0.0
        %2891 = vmatprep.subr.mxu0 0.0
        %2892 = vmatpush1.xpose.msra.mxu0 0.0
        %2893 = vmatprep.subr.mxu0 0.0
        %2894 = vmatpush1.xpose.msra.mxu0 0.0
        %2895 = vmatprep.subr.mxu0 0.0
        %2896 = vmatpush1.xpose.msra.mxu0 0.0
        %2897 = vmatprep.subr.mxu0 0.0
        %2898 = vmatpush1.xpose.msra.mxu0 0.0
        %2899 = vmatprep.subr.mxu0 0.0
        %2900 = vmatpush1.xpose.msra.mxu0 0.0
        %2901 = vmatprep.subr.mxu0 0.0
        %2902 = vmatpush1.xpose.msra.mxu0 0.0
        %2903 = vmatprep.subr.mxu0 0.0
        %2904 = vmatpush1.xpose.msra.mxu0 0.0
        %2905 = vmatprep.subr.mxu0 0.0
        %2906 = vmatpush1.xpose.msra.mxu0 0.0
        %2907 = vmatprep.subr.mxu0 0.0
        %2908 = vmatpush1.xpose.msra.mxu0 0.0
        %2909 = vmatprep.subr.mxu0 0.0
        %2910 = vmatpush1.xpose.msra.mxu0 0.0
        %2911 = vmatprep.mubr.f32.mxu0 0.0
        %2912 = vmatmul.mubr.f32.gmra.mrb[0].mxu0 %v2815
        %v2913 = vpop.f32.mrb[0].mxu0
        %v2914 = vadd.f32 %v2759, %v2913
        %v2915 = vpop.f32.mrb[0].mxu0
        %2916 = vmatprep.mubr.f32.mxu0 0.0
        %2917 = vmatmul.mubr.f32.gmra.mrb[0].mxu0 %v2817
        %v2918 = vpop.f32.mrb[0].mxu0
        %v2919 = vadd.f32 %v2760, %v2918
        %v2920 = vpop.f32.mrb[0].mxu0
        %2921 = vmatprep.mubr.f32.mxu0 0.0
        %2922 = vmatmul.mubr.f32.gmra.mrb[0].mxu0 %v2819
        %v2923 = vpop.f32.mrb[0].mxu0
        %v2924 = vadd.f32 %v2761, %v2923
        %v2925 = vpop.f32.mrb[0].mxu0
        %2926 = vmatprep.mubr.f32.mxu0 0.0
        %2927 = vmatmul.mubr.f32.gmra.mrb[0].mxu0 %v2821
        %v2928 = vpop.f32.mrb[0].mxu0
        %v2929 = vadd.f32 %v2762, %v2928
        %v2930 = vpop.f32.mrb[0].mxu0
        %2931 = vmatprep.mubr.f32.mxu0 0.0
        %2932 = vmatmul.mubr.f32.gmra.mrb[0].mxu0 %v2823
        %v2933 = vpop.f32.mrb[0].mxu0
        %v2934 = vadd.f32 %v2763, %v2933
        %v2935 = vpop.f32.mrb[0].mxu0
        %2936 = vmatprep.mubr.f32.mxu0 0.0
        %2937 = vmatmul.mubr.f32.gmra.mrb[0].mxu0 %v2825
        %v2938 = vpop.f32.mrb[0].mxu0
        %v2939 = vadd.f32 %v2764, %v2938
        %v2940 = vpop.f32.mrb[0].mxu0
        %2941 = vmatprep.mubr.f32.mxu0 0.0
        %2942 = vmatmul.mubr.f32.gmra.mrb[0].mxu0 %v2827
        %v2943 = vpop.f32.mrb[0].mxu0
        %v2944 = vadd.f32 %v2765, %v2943
        %v2945 = vpop.f32.mrb[0].mxu0
        %2946 = vmatprep.mubr.f32.mxu0 0.0
        %2947 = vmatmul.mubr.f32.gmra.mrb[0].mxu0 %v2829
        %v2948 = vpop.f32.mrb[0].mxu0
        %v2949 = vadd.f32 %v2766, %v2948
        %v2950 = vpop.f32.mrb[0].mxu0
        %2951 = vdwg.mxu0
        %v2952 = vsel %vm535, %v2914, -inf
        %2953 = vmax.xlane.f32.xlu0 %v2952
        %v2954 = vpop.xlane.xlu0 %2953
        %v2955 = vsel %vm535, %v2919, -inf
        %2956 = vmax.xlane.f32.xlu0 %v2955
        %v2957 = vpop.xlane.xlu0 %2956
        %v2958 = vsel %vm535, %v2924, -inf
        %2959 = vmax.xlane.f32.xlu0 %v2958
        %v2960 = vpop.xlane.xlu0 %2959
        %v2961 = vsel %vm535, %v2929, -inf
        %2962 = vmax.xlane.f32.xlu0 %v2961
        %v2963 = vpop.xlane.xlu0 %2962
        %v2964 = vsel %vm535, %v2934, -inf
        %2965 = vmax.xlane.f32.xlu0 %v2964
        %v2966 = vpop.xlane.xlu0 %2965
        %v2967 = vsel %vm535, %v2939, -inf
        %2968 = vmax.xlane.f32.xlu0 %v2967
        %v2969 = vpop.xlane.xlu0 %2968
        %v2970 = vsel %vm535, %v2944, -inf
        %2971 = vmax.xlane.f32.xlu0 %v2970
        %v2972 = vpop.xlane.xlu0 %2971
        %v2973 = vsel %vm535, %v2949, -inf
        %2974 = vmax.xlane.f32.xlu0 %v2973
        %v2975 = vpop.xlane.xlu0 %2974
        %v2976 = vsub.f32 %v2914, %v2954
        %v2977 = vsub.f32 %v2919, %v2957
        %v2978 = vsub.f32 %v2924, %v2960
        %v2979 = vsub.f32 %v2929, %v2963
        %v2980 = vsub.f32 %v2934, %v2966
        %v2981 = vsub.f32 %v2939, %v2969
        %v2982 = vsub.f32 %v2944, %v2972
        %v2983 = vsub.f32 %v2949, %v2975
        %v2984 = vmul.f32 %v2976, 1.442695
        %v2985 = vpow.pop %v2984
        %v2986 = vmul.f32 %v2977, 1.442695
        %v2987 = vpow.pop %v2986
        %v2988 = vmul.f32 %v2978, 1.442695
        %v2989 = vpow.pop %v2988
        %v2990 = vmul.f32 %v2979, 1.442695
        %v2991 = vpow.pop %v2990
        %v2992 = vmul.f32 %v2980, 1.442695
        %v2993 = vpow.pop %v2992
        %v2994 = vmul.f32 %v2981, 1.442695
        %v2995 = vpow.pop %v2994
        %v2996 = vmul.f32 %v2982, 1.442695
        %v2997 = vpow.pop %v2996
        %v2998 = vmul.f32 %v2983, 1.442695
        %v2999 = vpow.pop %v2998
        %v3000 = vsel %vm535, %v2985, 0.0
        %3001 = vadd.xlane.f32.xlu0 %v3000
        %v3002 = vpop.xlane.xlu0 %3001
        %v3003 = vsel %vm535, %v2987, 0.0
        %3004 = vadd.xlane.f32.xlu0 %v3003
        %v3005 = vpop.xlane.xlu0 %3004
        %v3006 = vsel %vm535, %v2989, 0.0
        %3007 = vadd.xlane.f32.xlu0 %v3006
        %v3008 = vpop.xlane.xlu0 %3007
        %v3009 = vsel %vm535, %v2991, 0.0
        %3010 = vadd.xlane.f32.xlu0 %v3009
        %v3011 = vpop.xlane.xlu0 %3010
        %v3012 = vsel %vm535, %v2993, 0.0
        %3013 = vadd.xlane.f32.xlu0 %v3012
        %v3014 = vpop.xlane.xlu0 %3013
        %v3015 = vsel %vm535, %v2995, 0.0
        %3016 = vadd.xlane.f32.xlu0 %v3015
        %v3017 = vpop.xlane.xlu0 %3016
        %v3018 = vsel %vm535, %v2997, 0.0
        %3019 = vadd.xlane.f32.xlu0 %v3018
        %v3020 = vpop.xlane.xlu0 %3019
        %v3021 = vsel %vm535, %v2999, 0.0
        %3022 = vadd.xlane.f32.xlu0 %v3021
        %v3023 = vpop.xlane.xlu0 %3022
        %3032 = vrot.lane.b32.xlu0 %v2751, 120
        %v3033 = vpop.permute.xlu0 %3032
        %3034 = vrot.lane.b32.xlu0 %v2752, 120
        %v3035 = vpop.permute.xlu0 %3034
        %3036 = vrot.lane.b32.xlu0 %v2753, 120
        %v3037 = vpop.permute.xlu0 %3036
        %3038 = vrot.lane.b32.xlu0 %v2754, 120
        %v3039 = vpop.permute.xlu0 %3038
        %3040 = vrot.lane.b32.xlu0 %v2755, 120
        %v3041 = vpop.permute.xlu0 %3040
        %3042 = vrot.lane.b32.xlu0 %v2756, 120
        %v3043 = vpop.permute.xlu0 %3042
        %3044 = vrot.lane.b32.xlu0 %v2757, 120
        %v3045 = vpop.permute.xlu0 %3044
        %3046 = vrot.lane.b32.xlu0 %v2758, 120
        %v3047 = vpop.permute.xlu0 %3046
        %v3057 = vsel %vm535, %v2985, 0
        %v3060 = vsel %vm535, %v2987, 0
        %v3063 = vsel %vm535, %v2989, 0
        %v3066 = vsel %vm535, %v2991, 0
        %v3069 = vsel %vm535, %v2993, 0
        %v3072 = vsel %vm535, %v2995, 0
        %v3075 = vsel %vm535, %v2997, 0
        %v3078 = vsel %vm535, %v2999, 0
        %3080 = vmatprep.subr.mxu0 0.0
        %3081 = vmatpush1.msra.mxu0 %v3033
        %3082 = vmatprep.subr.mxu0 0.0
        %3083 = vmatpush1.msra.mxu0 %v3035
        %3084 = vmatprep.subr.mxu0 0.0
        %3085 = vmatpush1.msra.mxu0 %v3037
        %3086 = vmatprep.subr.mxu0 0.0
        %3087 = vmatpush1.msra.mxu0 %v3039
        %3088 = vmatprep.subr.mxu0 0.0
        %3089 = vmatpush1.msra.mxu0 %v3041
        %3090 = vmatprep.subr.mxu0 0.0
        %3091 = vmatpush1.msra.mxu0 %v3043
        %3092 = vmatprep.subr.mxu0 0.0
        %3093 = vmatpush1.msra.mxu0 %v3045
        %3094 = vmatprep.subr.mxu0 0.0
        %3095 = vmatpush1.msra.mxu0 %v3047
        %3096 = vmatprep.subr.mxu0 0.0
        %3097 = vmatpush1.msra.mxu0 0.0
        %3098 = vmatprep.subr.mxu0 0.0
        %3099 = vmatpush1.msra.mxu0 0.0
        %3100 = vmatprep.subr.mxu0 0.0
        %3101 = vmatpush1.msra.mxu0 0.0
        %3102 = vmatprep.subr.mxu0 0.0
        %3103 = vmatpush1.msra.mxu0 0.0
        %3104 = vmatprep.subr.mxu0 0.0
        %3105 = vmatpush1.msra.mxu0 0.0
        %3106 = vmatprep.subr.mxu0 0.0
        %3107 = vmatpush1.msra.mxu0 0.0
        %3108 = vmatprep.subr.mxu0 0.0
        %3109 = vmatpush1.msra.mxu0 0.0
        %3110 = vmatprep.subr.mxu0 0.0
        %3111 = vmatpush1.msra.mxu0 0.0
        %3112 = vmatprep.subr.mxu0 0.0
        %3113 = vmatpush1.msra.mxu0 0.0
        %3114 = vmatprep.subr.mxu0 0.0
        %3115 = vmatpush1.msra.mxu0 0.0
        %3116 = vmatprep.subr.mxu0 0.0
        %3117 = vmatpush1.msra.mxu0 0.0
        %3118 = vmatprep.subr.mxu0 0.0
        %3119 = vmatpush1.msra.mxu0 0.0
        %3120 = vmatprep.subr.mxu0 0.0
        %3121 = vmatpush1.msra.mxu0 0.0
        %3122 = vmatprep.subr.mxu0 0.0
        %3123 = vmatpush1.msra.mxu0 0.0
        %3124 = vmatprep.subr.mxu0 0.0
        %3125 = vmatpush1.msra.mxu0 0.0
        %3126 = vmatprep.subr.mxu0 0.0
        %3127 = vmatpush1.msra.mxu0 0.0
        %3128 = vmatprep.subr.mxu0 0.0
        %3129 = vmatpush1.msra.mxu0 0.0
        %3130 = vmatprep.subr.mxu0 0.0
        %3131 = vmatpush1.msra.mxu0 0.0
        %3132 = vmatprep.subr.mxu0 0.0
        %3133 = vmatpush1.msra.mxu0 0.0
        %3134 = vmatprep.subr.mxu0 0.0
        %3135 = vmatpush1.msra.mxu0 0.0
        %3136 = vmatprep.subr.mxu0 0.0
        %3137 = vmatpush1.msra.mxu0 0.0
        %3138 = vmatprep.subr.mxu0 0.0
        %3139 = vmatpush1.msra.mxu0 0.0
        %3140 = vmatprep.subr.mxu0 0.0
        %3141 = vmatpush1.msra.mxu0 0.0
        %3142 = vmatprep.subr.mxu0 0.0
        %3143 = vmatpush1.msra.mxu0 0.0
        %3144 = vmatprep.mubr.f32.mxu0 0.0
        %3145 = vmatmul.mubr.f32.gmra.mrb[0].mxu0 %v3057
        %v3146 = vpop.f32.mrb[0].mxu0
        %v3147 = vadd.f32 0.0, %v3146
        %v3148 = vpop.f32.mrb[0].mxu0
        %3149 = vmatprep.mubr.f32.mxu0 0.0
        %3150 = vmatmul.mubr.f32.gmra.mrb[0].mxu0 %v3060
        %v3151 = vpop.f32.mrb[0].mxu0
        %v3152 = vadd.f32 0.0, %v3151
        %v3153 = vpop.f32.mrb[0].mxu0
        %3154 = vmatprep.mubr.f32.mxu0 0.0
        %3155 = vmatmul.mubr.f32.gmra.mrb[0].mxu0 %v3063
        %v3156 = vpop.f32.mrb[0].mxu0
        %v3157 = vadd.f32 0.0, %v3156
        %v3158 = vpop.f32.mrb[0].mxu0
        %3159 = vmatprep.mubr.f32.mxu0 0.0
        %3160 = vmatmul.mubr.f32.gmra.mrb[0].mxu0 %v3066
        %v3161 = vpop.f32.mrb[0].mxu0
        %v3162 = vadd.f32 0.0, %v3161
        %v3163 = vpop.f32.mrb[0].mxu0
        %3164 = vmatprep.mubr.f32.mxu0 0.0
        %3165 = vmatmul.mubr.f32.gmra.mrb[0].mxu0 %v3069
        %v3166 = vpop.f32.mrb[0].mxu0
        %v3167 = vadd.f32 0.0, %v3166
        %v3168 = vpop.f32.mrb[0].mxu0
        %3169 = vmatprep.mubr.f32.mxu0 0.0
        %3170 = vmatmul.mubr.f32.gmra.mrb[0].mxu0 %v3072
        %v3171 = vpop.f32.mrb[0].mxu0
        %v3172 = vadd.f32 0.0, %v3171
        %v3173 = vpop.f32.mrb[0].mxu0
        %3174 = vmatprep.mubr.f32.mxu0 0.0
        %3175 = vmatmul.mubr.f32.gmra.mrb[0].mxu0 %v3075
        %v3176 = vpop.f32.mrb[0].mxu0
        %v3177 = vadd.f32 0.0, %v3176
        %v3178 = vpop.f32.mrb[0].mxu0
        %3179 = vmatprep.mubr.f32.mxu0 0.0
        %3180 = vmatmul.mubr.f32.gmra.mrb[0].mxu0 %v3078
        %v3181 = vpop.f32.mrb[0].mxu0
        %v3182 = vadd.f32 0.0, %v3181
        %v3183 = vpop.f32.mrb[0].mxu0
        %3184 = vdwg.mxu0
        %v3185 = vrcp.pop %v3002
        %v3186 = vmul.f32 %v3147, %v3185
        %v3187 = vrcp.pop %v3005
        %v3188 = vmul.f32 %v3152, %v3187
        %v3189 = vrcp.pop %v3008
        %v3190 = vmul.f32 %v3157, %v3189
        %v3191 = vrcp.pop %v3011
        %v3192 = vmul.f32 %v3162, %v3191
        %v3193 = vrcp.pop %v3014
        %v3194 = vmul.f32 %v3167, %v3193
        %v3195 = vrcp.pop %v3017
        %v3196 = vmul.f32 %v3172, %v3195
        %v3197 = vrcp.pop %v3020
        %v3198 = vmul.f32 %v3177, %v3197
        %v3199 = vrcp.pop %v3023
        %v3200 = vmul.f32 %v3182, %v3199
        %3209 = vrot.lane.b32.xlu0 %v3186, 8
        %v3210 = vpop.permute.xlu0 %3209
        %3211 = vrot.lane.b32.xlu0 %v3188, 8
        %v3212 = vpop.permute.xlu0 %3211
        %3213 = vrot.lane.b32.xlu0 %v3190, 8
        %v3214 = vpop.permute.xlu0 %3213
        %3215 = vrot.lane.b32.xlu0 %v3192, 8
        %v3216 = vpop.permute.xlu0 %3215
        %3217 = vrot.lane.b32.xlu0 %v3194, 8
        %v3218 = vpop.permute.xlu0 %3217
        %3219 = vrot.lane.b32.xlu0 %v3196, 8
        %v3220 = vpop.permute.xlu0 %3219
        %3221 = vrot.lane.b32.xlu0 %v3198, 8
        %v3222 = vpop.permute.xlu0 %3221
        %3223 = vrot.lane.b32.xlu0 %v3200, 8
        %v3224 = vpop.permute.xlu0 %3223
        %3233 = vst.msk [vmem:[%s336 + $0x8] sm:$0xff] %vm1268, %v3210
        %3234 = vst.msk [vmem:[%s336 + $0x18] sm:$0xff] %vm1268, %v3212
        %3235 = vst.msk [vmem:[%s336 + $0x28] sm:$0xff] %vm1268, %v3214
        %3236 = vst.msk [vmem:[%s336 + $0x38] sm:$0xff] %vm1268, %v3216
        %3237 = vst.msk [vmem:[%s336 + $0x48] sm:$0xff] %vm1268, %v3218
        %3238 = vst.msk [vmem:[%s336 + $0x58] sm:$0xff] %vm1268, %v3220
        %3239 = vst.msk [vmem:[%s336 + $0x68] sm:$0xff] %vm1268, %v3222
        %3240 = vst.msk [vmem:[%s336 + $0x78] sm:$0xff] %vm1268, %v3224
        %v3241 = vld [vmem:[%s280 + $0x8] sm:$0xff]
        %v3242 = vld [vmem:[%s280 + $0x18] sm:$0xff]
        %v3243 = vld [vmem:[%s280 + $0x28] sm:$0xff]
        %v3244 = vld [vmem:[%s280 + $0x38] sm:$0xff]
        %v3245 = vld [vmem:[%s280 + $0x48] sm:$0xff]
        %v3246 = vld [vmem:[%s280 + $0x58] sm:$0xff]
        %v3247 = vld [vmem:[%s280 + $0x68] sm:$0xff]
        %v3248 = vld [vmem:[%s280 + $0x78] sm:$0xff]
        %v3249 = vmul.f32 %v3241, 0.35355338
        %v3250 = vmul.f32 %v3242, 0.35355338
        %v3251 = vmul.f32 %v3243, 0.35355338
        %v3252 = vmul.f32 %v3244, 0.35355338
        %v3253 = vmul.f32 %v3245, 0.35355338
        %v3254 = vmul.f32 %v3246, 0.35355338
        %v3255 = vmul.f32 %v3247, 0.35355338
        %v3256 = vmul.f32 %v3248, 0.35355338
        %v3257 = vld [vmem:[%s289 + $0x8] sm:$0xff]
        %v3258 = vld [vmem:[%s289 + $0x18] sm:$0xff]
        %v3259 = vld [vmem:[%s289 + $0x28] sm:$0xff]
        %v3260 = vld [vmem:[%s289 + $0x38] sm:$0xff]
        %v3261 = vld [vmem:[%s289 + $0x48] sm:$0xff]
        %v3262 = vld [vmem:[%s289 + $0x58] sm:$0xff]
        %v3263 = vld [vmem:[%s289 + $0x68] sm:$0xff]
        %v3264 = vld [vmem:[%s289 + $0x78] sm:$0xff]
        %v3265 = vld [vmem:[%s298 + $0x8] sm:$0xff]
        %v3266 = vld [vmem:[%s298 + $0x18] sm:$0xff]
        %v3267 = vld [vmem:[%s298 + $0x28] sm:$0xff]
        %v3268 = vld [vmem:[%s298 + $0x38] sm:$0xff]
        %v3269 = vld [vmem:[%s298 + $0x48] sm:$0xff]
        %v3270 = vld [vmem:[%s298 + $0x58] sm:$0xff]
        %v3271 = vld [vmem:[%s298 + $0x68] sm:$0xff]
        %v3272 = vld [vmem:[%s298 + $0x78] sm:$0xff]
        %v3273 = vld [vmem:[%s1309] sm:$0xff]
        %v3274 = vld [vmem:[%s1309 + $0x8] sm:$0xff]
        %v3275 = vld [vmem:[%s1309 + $0x10] sm:$0xff]
        %v3276 = vld [vmem:[%s1309 + $0x18] sm:$0xff]
        %v3277 = vld [vmem:[%s1309 + $0x20] sm:$0xff]
        %v3278 = vld [vmem:[%s1309 + $0x28] sm:$0xff]
        %v3279 = vld [vmem:[%s1309 + $0x30] sm:$0xff]
        %v3280 = vld [vmem:[%s1309 + $0x38] sm:$0xff]
        %3289 = vrot.lane.b32.xlu0 %v3249, 112
        %v3290 = vpop.permute.xlu0 %3289
        %3291 = vrot.lane.b32.xlu0 %v3250, 112
        %v3292 = vpop.permute.xlu0 %3291
        %3293 = vrot.lane.b32.xlu0 %v3251, 112
        %v3294 = vpop.permute.xlu0 %3293
        %3295 = vrot.lane.b32.xlu0 %v3252, 112
        %v3296 = vpop.permute.xlu0 %3295
        %3297 = vrot.lane.b32.xlu0 %v3253, 112
        %v3298 = vpop.permute.xlu0 %3297
        %3299 = vrot.lane.b32.xlu0 %v3254, 112
        %v3300 = vpop.permute.xlu0 %3299
        %3301 = vrot.lane.b32.xlu0 %v3255, 112
        %v3302 = vpop.permute.xlu0 %3301
        %3303 = vrot.lane.b32.xlu0 %v3256, 112
        %v3304 = vpop.permute.xlu0 %3303
        %3313 = vrot.lane.b32.xlu0 %v3257, 112
        %v3314 = vpop.permute.xlu0 %3313
        %3315 = vrot.lane.b32.xlu0 %v3258, 112
        %v3316 = vpop.permute.xlu0 %3315
        %3317 = vrot.lane.b32.xlu0 %v3259, 112
        %v3318 = vpop.permute.xlu0 %3317
        %3319 = vrot.lane.b32.xlu0 %v3260, 112
        %v3320 = vpop.permute.xlu0 %3319
        %3321 = vrot.lane.b32.xlu0 %v3261, 112
        %v3322 = vpop.permute.xlu0 %3321
        %3323 = vrot.lane.b32.xlu0 %v3262, 112
        %v3324 = vpop.permute.xlu0 %3323
        %3325 = vrot.lane.b32.xlu0 %v3263, 112
        %v3326 = vpop.permute.xlu0 %3325
        %3327 = vrot.lane.b32.xlu0 %v3264, 112
        %v3328 = vpop.permute.xlu0 %3327
        %v3329 = vsel %vm381, %v3290, 0
        %v3331 = vsel %vm381, %v3292, 0
        %v3333 = vsel %vm381, %v3294, 0
        %v3335 = vsel %vm381, %v3296, 0
        %v3337 = vsel %vm381, %v3298, 0
        %v3339 = vsel %vm381, %v3300, 0
        %v3341 = vsel %vm381, %v3302, 0
        %v3343 = vsel %vm381, %v3304, 0
        %v3345 = vsel %vm381, %v3314, 0
        %v3347 = vsel %vm381, %v3316, 0
        %v3349 = vsel %vm381, %v3318, 0
        %v3351 = vsel %vm381, %v3320, 0
        %v3353 = vsel %vm381, %v3322, 0
        %v3355 = vsel %vm381, %v3324, 0
        %v3357 = vsel %vm381, %v3326, 0
        %v3359 = vsel %vm381, %v3328, 0
        %3361 = vmatprep.subr.mxu0 0.0
        %3362 = vmatpush1.xpose.msra.mxu0 %v3345
        %3363 = vmatprep.subr.mxu0 0.0
        %3364 = vmatpush1.xpose.msra.mxu0 %v3347
        %3365 = vmatprep.subr.mxu0 0.0
        %3366 = vmatpush1.xpose.msra.mxu0 %v3349
        %3367 = vmatprep.subr.mxu0 0.0
        %3368 = vmatpush1.xpose.msra.mxu0 %v3351
        %3369 = vmatprep.subr.mxu0 0.0
        %3370 = vmatpush1.xpose.msra.mxu0 %v3353
        %3371 = vmatprep.subr.mxu0 0.0
        %3372 = vmatpush1.xpose.msra.mxu0 %v3355
        %3373 = vmatprep.subr.mxu0 0.0
        %3374 = vmatpush1.xpose.msra.mxu0 %v3357
        %3375 = vmatprep.subr.mxu0 0.0
        %3376 = vmatpush1.xpose.msra.mxu0 %v3359
        %3377 = vmatprep.subr.mxu0 0.0
        %3378 = vmatpush1.xpose.msra.mxu0 0.0
        %3379 = vmatprep.subr.mxu0 0.0
        %3380 = vmatpush1.xpose.msra.mxu0 0.0
        %3381 = vmatprep.subr.mxu0 0.0
        %3382 = vmatpush1.xpose.msra.mxu0 0.0
        %3383 = vmatprep.subr.mxu0 0.0
        %3384 = vmatpush1.xpose.msra.mxu0 0.0
        %3385 = vmatprep.subr.mxu0 0.0
        %3386 = vmatpush1.xpose.msra.mxu0 0.0
        %3387 = vmatprep.subr.mxu0 0.0
        %3388 = vmatpush1.xpose.msra.mxu0 0.0
        %3389 = vmatprep.subr.mxu0 0.0
        %3390 = vmatpush1.xpose.msra.mxu0 0.0
        %3391 = vmatprep.subr.mxu0 0.0
        %3392 = vmatpush1.xpose.msra.mxu0 0.0
        %3393 = vmatprep.subr.mxu0 0.0
        %3394 = vmatpush1.xpose.msra.mxu0 0.0
        %3395 = vmatprep.subr.mxu0 0.0
        %3396 = vmatpush1.xpose.msra.mxu0 0.0
        %3397 = vmatprep.subr.mxu0 0.0
        %3398 = vmatpush1.xpose.msra.mxu0 0.0
        %3399 = vmatprep.subr.mxu0 0.0
        %3400 = vmatpush1.xpose.msra.mxu0 0.0
        %3401 = vmatprep.subr.mxu0 0.0
        %3402 = vmatpush1.xpose.msra.mxu0 0.0
        %3403 = vmatprep.subr.mxu0 0.0
        %3404 = vmatpush1.xpose.msra.mxu0 0.0
        %3405 = vmatprep.subr.mxu0 0.0
        %3406 = vmatpush1.xpose.msra.mxu0 0.0
        %3407 = vmatprep.subr.mxu0 0.0
        %3408 = vmatpush1.xpose.msra.mxu0 0.0
        %3409 = vmatprep.subr.mxu0 0.0
        %3410 = vmatpush1.xpose.msra.mxu0 0.0
        %3411 = vmatprep.subr.mxu0 0.0
        %3412 = vmatpush1.xpose.msra.mxu0 0.0
        %3413 = vmatprep.subr.mxu0 0.0
        %3414 = vmatpush1.xpose.msra.mxu0 0.0
        %3415 = vmatprep.subr.mxu0 0.0
        %3416 = vmatpush1.xpose.msra.mxu0 0.0
        %3417 = vmatprep.subr.mxu0 0.0
        %3418 = vmatpush1.xpose.msra.mxu0 0.0
        %3419 = vmatprep.subr.mxu0 0.0
        %3420 = vmatpush1.xpose.msra.mxu0 0.0
        %3421 = vmatprep.subr.mxu0 0.0
        %3422 = vmatpush1.xpose.msra.mxu0 0.0
        %3423 = vmatprep.subr.mxu0 0.0
        %3424 = vmatpush1.xpose.msra.mxu0 0.0
        %3425 = vmatprep.mubr.f32.mxu0 0.0
        %3426 = vmatmul.mubr.f32.gmra.mrb[0].mxu0 %v3329
        %v3427 = vpop.f32.mrb[0].mxu0
        %v3428 = vadd.f32 %v3273, %v3427
        %v3429 = vpop.f32.mrb[0].mxu0
        %3430 = vmatprep.mubr.f32.mxu0 0.0
        %3431 = vmatmul.mubr.f32.gmra.mrb[0].mxu0 %v3331
        %v3432 = vpop.f32.mrb[0].mxu0
        %v3433 = vadd.f32 %v3274, %v3432
        %v3434 = vpop.f32.mrb[0].mxu0
        %3435 = vmatprep.mubr.f32.mxu0 0.0
        %3436 = vmatmul.mubr.f32.gmra.mrb[0].mxu0 %v3333
        %v3437 = vpop.f32.mrb[0].mxu0
        %v3438 = vadd.f32 %v3275, %v3437
        %v3439 = vpop.f32.mrb[0].mxu0
        %3440 = vmatprep.mubr.f32.mxu0 0.0
        %3441 = vmatmul.mubr.f32.gmra.mrb[0].mxu0 %v3335
        %v3442 = vpop.f32.mrb[0].mxu0
        %v3443 = vadd.f32 %v3276, %v3442
        %v3444 = vpop.f32.mrb[0].mxu0
        %3445 = vmatprep.mubr.f32.mxu0 0.0
        %3446 = vmatmul.mubr.f32.gmra.mrb[0].mxu0 %v3337
        %v3447 = vpop.f32.mrb[0].mxu0
        %v3448 = vadd.f32 %v3277, %v3447
        %v3449 = vpop.f32.mrb[0].mxu0
        %3450 = vmatprep.mubr.f32.mxu0 0.0
        %3451 = vmatmul.mubr.f32.gmra.mrb[0].mxu0 %v3339
        %v3452 = vpop.f32.mrb[0].mxu0
        %v3453 = vadd.f32 %v3278, %v3452
        %v3454 = vpop.f32.mrb[0].mxu0
        %3455 = vmatprep.mubr.f32.mxu0 0.0
        %3456 = vmatmul.mubr.f32.gmra.mrb[0].mxu0 %v3341
        %v3457 = vpop.f32.mrb[0].mxu0
        %v3458 = vadd.f32 %v3279, %v3457
        %v3459 = vpop.f32.mrb[0].mxu0
        %3460 = vmatprep.mubr.f32.mxu0 0.0
        %3461 = vmatmul.mubr.f32.gmra.mrb[0].mxu0 %v3343
        %v3462 = vpop.f32.mrb[0].mxu0
        %v3463 = vadd.f32 %v3280, %v3462
        %v3464 = vpop.f32.mrb[0].mxu0
        %3465 = vdwg.mxu0
        %v3466 = vsel %vm535, %v3428, -inf
        %3467 = vmax.xlane.f32.xlu0 %v3466
        %v3468 = vpop.xlane.xlu0 %3467
        %v3469 = vsel %vm535, %v3433, -inf
        %3470 = vmax.xlane.f32.xlu0 %v3469
        %v3471 = vpop.xlane.xlu0 %3470
        %v3472 = vsel %vm535, %v3438, -inf
        %3473 = vmax.xlane.f32.xlu0 %v3472
        %v3474 = vpop.xlane.xlu0 %3473
        %v3475 = vsel %vm535, %v3443, -inf
        %3476 = vmax.xlane.f32.xlu0 %v3475
        %v3477 = vpop.xlane.xlu0 %3476
        %v3478 = vsel %vm535, %v3448, -inf
        %3479 = vmax.xlane.f32.xlu0 %v3478
        %v3480 = vpop.xlane.xlu0 %3479
        %v3481 = vsel %vm535, %v3453, -inf
        %3482 = vmax.xlane.f32.xlu0 %v3481
        %v3483 = vpop.xlane.xlu0 %3482
        %v3484 = vsel %vm535, %v3458, -inf
        %3485 = vmax.xlane.f32.xlu0 %v3484
        %v3486 = vpop.xlane.xlu0 %3485
        %v3487 = vsel %vm535, %v3463, -inf
        %3488 = vmax.xlane.f32.xlu0 %v3487
        %v3489 = vpop.xlane.xlu0 %3488
        %v3490 = vsub.f32 %v3428, %v3468
        %v3491 = vsub.f32 %v3433, %v3471
        %v3492 = vsub.f32 %v3438, %v3474
        %v3493 = vsub.f32 %v3443, %v3477
        %v3494 = vsub.f32 %v3448, %v3480
        %v3495 = vsub.f32 %v3453, %v3483
        %v3496 = vsub.f32 %v3458, %v3486
        %v3497 = vsub.f32 %v3463, %v3489
        %v3498 = vmul.f32 %v3490, 1.442695
        %v3499 = vpow.pop %v3498
        %v3500 = vmul.f32 %v3491, 1.442695
        %v3501 = vpow.pop %v3500
        %v3502 = vmul.f32 %v3492, 1.442695
        %v3503 = vpow.pop %v3502
        %v3504 = vmul.f32 %v3493, 1.442695
        %v3505 = vpow.pop %v3504
        %v3506 = vmul.f32 %v3494, 1.442695
        %v3507 = vpow.pop %v3506
        %v3508 = vmul.f32 %v3495, 1.442695
        %v3509 = vpow.pop %v3508
        %v3510 = vmul.f32 %v3496, 1.442695
        %v3511 = vpow.pop %v3510
        %v3512 = vmul.f32 %v3497, 1.442695
        %v3513 = vpow.pop %v3512
        %v3514 = vsel %vm535, %v3499, 0.0
        %3515 = vadd.xlane.f32.xlu0 %v3514
        %v3516 = vpop.xlane.xlu0 %3515
        %v3517 = vsel %vm535, %v3501, 0.0
        %3518 = vadd.xlane.f32.xlu0 %v3517
        %v3519 = vpop.xlane.xlu0 %3518
        %v3520 = vsel %vm535, %v3503, 0.0
        %3521 = vadd.xlane.f32.xlu0 %v3520
        %v3522 = vpop.xlane.xlu0 %3521
        %v3523 = vsel %vm535, %v3505, 0.0
        %3524 = vadd.xlane.f32.xlu0 %v3523
        %v3525 = vpop.xlane.xlu0 %3524
        %v3526 = vsel %vm535, %v3507, 0.0
        %3527 = vadd.xlane.f32.xlu0 %v3526
        %v3528 = vpop.xlane.xlu0 %3527
        %v3529 = vsel %vm535, %v3509, 0.0
        %3530 = vadd.xlane.f32.xlu0 %v3529
        %v3531 = vpop.xlane.xlu0 %3530
        %v3532 = vsel %vm535, %v3511, 0.0
        %3533 = vadd.xlane.f32.xlu0 %v3532
        %v3534 = vpop.xlane.xlu0 %3533
        %v3535 = vsel %vm535, %v3513, 0.0
        %3536 = vadd.xlane.f32.xlu0 %v3535
        %v3537 = vpop.xlane.xlu0 %3536
        %3546 = vrot.lane.b32.xlu0 %v3265, 112
        %v3547 = vpop.permute.xlu0 %3546
        %3548 = vrot.lane.b32.xlu0 %v3266, 112
        %v3549 = vpop.permute.xlu0 %3548
        %3550 = vrot.lane.b32.xlu0 %v3267, 112
        %v3551 = vpop.permute.xlu0 %3550
        %3552 = vrot.lane.b32.xlu0 %v3268, 112
        %v3553 = vpop.permute.xlu0 %3552
        %3554 = vrot.lane.b32.xlu0 %v3269, 112
        %v3555 = vpop.permute.xlu0 %3554
        %3556 = vrot.lane.b32.xlu0 %v3270, 112
        %v3557 = vpop.permute.xlu0 %3556
        %3558 = vrot.lane.b32.xlu0 %v3271, 112
        %v3559 = vpop.permute.xlu0 %3558
        %3560 = vrot.lane.b32.xlu0 %v3272, 112
        %v3561 = vpop.permute.xlu0 %3560
        %v3571 = vsel %vm535, %v3499, 0
        %v3574 = vsel %vm535, %v3501, 0
        %v3577 = vsel %vm535, %v3503, 0
        %v3580 = vsel %vm535, %v3505, 0
        %v3583 = vsel %vm535, %v3507, 0
        %v3586 = vsel %vm535, %v3509, 0
        %v3589 = vsel %vm535, %v3511, 0
        %v3592 = vsel %vm535, %v3513, 0
        %3594 = vmatprep.subr.mxu0 0.0
        %3595 = vmatpush1.msra.mxu0 %v3547
        %3596 = vmatprep.subr.mxu0 0.0
        %3597 = vmatpush1.msra.mxu0 %v3549
        %3598 = vmatprep.subr.mxu0 0.0
        %3599 = vmatpush1.msra.mxu0 %v3551
        %3600 = vmatprep.subr.mxu0 0.0
        %3601 = vmatpush1.msra.mxu0 %v3553
        %3602 = vmatprep.subr.mxu0 0.0
        %3603 = vmatpush1.msra.mxu0 %v3555
        %3604 = vmatprep.subr.mxu0 0.0
        %3605 = vmatpush1.msra.mxu0 %v3557
        %3606 = vmatprep.subr.mxu0 0.0
        %3607 = vmatpush1.msra.mxu0 %v3559
        %3608 = vmatprep.subr.mxu0 0.0
        %3609 = vmatpush1.msra.mxu0 %v3561
        %3610 = vmatprep.subr.mxu0 0.0
        %3611 = vmatpush1.msra.mxu0 0.0
        %3612 = vmatprep.subr.mxu0 0.0
        %3613 = vmatpush1.msra.mxu0 0.0
        %3614 = vmatprep.subr.mxu0 0.0
        %3615 = vmatpush1.msra.mxu0 0.0
        %3616 = vmatprep.subr.mxu0 0.0
        %3617 = vmatpush1.msra.mxu0 0.0
        %3618 = vmatprep.subr.mxu0 0.0
        %3619 = vmatpush1.msra.mxu0 0.0
        %3620 = vmatprep.subr.mxu0 0.0
        %3621 = vmatpush1.msra.mxu0 0.0
        %3622 = vmatprep.subr.mxu0 0.0
        %3623 = vmatpush1.msra.mxu0 0.0
        %3624 = vmatprep.subr.mxu0 0.0
        %3625 = vmatpush1.msra.mxu0 0.0
        %3626 = vmatprep.subr.mxu0 0.0
        %3627 = vmatpush1.msra.mxu0 0.0
        %3628 = vmatprep.subr.mxu0 0.0
        %3629 = vmatpush1.msra.mxu0 0.0
        %3630 = vmatprep.subr.mxu0 0.0
        %3631 = vmatpush1.msra.mxu0 0.0
        %3632 = vmatprep.subr.mxu0 0.0
        %3633 = vmatpush1.msra.mxu0 0.0
        %3634 = vmatprep.subr.mxu0 0.0
        %3635 = vmatpush1.msra.mxu0 0.0
        %3636 = vmatprep.subr.mxu0 0.0
        %3637 = vmatpush1.msra.mxu0 0.0
        %3638 = vmatprep.subr.mxu0 0.0
        %3639 = vmatpush1.msra.mxu0 0.0
        %3640 = vmatprep.subr.mxu0 0.0
        %3641 = vmatpush1.msra.mxu0 0.0
        %3642 = vmatprep.subr.mxu0 0.0
        %3643 = vmatpush1.msra.mxu0 0.0
        %3644 = vmatprep.subr.mxu0 0.0
        %3645 = vmatpush1.msra.mxu0 0.0
        %3646 = vmatprep.subr.mxu0 0.0
        %3647 = vmatpush1.msra.mxu0 0.0
        %3648 = vmatprep.subr.mxu0 0.0
        %3649 = vmatpush1.msra.mxu0 0.0
        %3650 = vmatprep.subr.mxu0 0.0
        %3651 = vmatpush1.msra.mxu0 0.0
        %3652 = vmatprep.subr.mxu0 0.0
        %3653 = vmatpush1.msra.mxu0 0.0
        %3654 = vmatprep.subr.mxu0 0.0
        %3655 = vmatpush1.msra.mxu0 0.0
        %3656 = vmatprep.subr.mxu0 0.0
        %3657 = vmatpush1.msra.mxu0 0.0
        %3658 = vmatprep.mubr.f32.mxu0 0.0
        %3659 = vmatmul.mubr.f32.gmra.mrb[0].mxu0 %v3571
        %v3660 = vpop.f32.mrb[0].mxu0
        %v3661 = vadd.f32 0.0, %v3660
        %v3662 = vpop.f32.mrb[0].mxu0
        %3663 = vmatprep.mubr.f32.mxu0 0.0
        %3664 = vmatmul.mubr.f32.gmra.mrb[0].mxu0 %v3574
        %v3665 = vpop.f32.mrb[0].mxu0
        %v3666 = vadd.f32 0.0, %v3665
        %v3667 = vpop.f32.mrb[0].mxu0
        %3668 = vmatprep.mubr.f32.mxu0 0.0
        %3669 = vmatmul.mubr.f32.gmra.mrb[0].mxu0 %v3577
        %v3670 = vpop.f32.mrb[0].mxu0
        %v3671 = vadd.f32 0.0, %v3670
        %v3672 = vpop.f32.mrb[0].mxu0
        %3673 = vmatprep.mubr.f32.mxu0 0.0
        %3674 = vmatmul.mubr.f32.gmra.mrb[0].mxu0 %v3580
        %v3675 = vpop.f32.mrb[0].mxu0
        %v3676 = vadd.f32 0.0, %v3675
        %v3677 = vpop.f32.mrb[0].mxu0
        %3678 = vmatprep.mubr.f32.mxu0 0.0
        %3679 = vmatmul.mubr.f32.gmra.mrb[0].mxu0 %v3583
        %v3680 = vpop.f32.mrb[0].mxu0
        %v3681 = vadd.f32 0.0, %v3680
        %v3682 = vpop.f32.mrb[0].mxu0
        %3683 = vmatprep.mubr.f32.mxu0 0.0
        %3684 = vmatmul.mubr.f32.gmra.mrb[0].mxu0 %v3586
        %v3685 = vpop.f32.mrb[0].mxu0
        %v3686 = vadd.f32 0.0, %v3685
        %v3687 = vpop.f32.mrb[0].mxu0
        %3688 = vmatprep.mubr.f32.mxu0 0.0
        %3689 = vmatmul.mubr.f32.gmra.mrb[0].mxu0 %v3589
        %v3690 = vpop.f32.mrb[0].mxu0
        %v3691 = vadd.f32 0.0, %v3690
        %v3692 = vpop.f32.mrb[0].mxu0
        %3693 = vmatprep.mubr.f32.mxu0 0.0
        %3694 = vmatmul.mubr.f32.gmra.mrb[0].mxu0 %v3592
        %v3695 = vpop.f32.mrb[0].mxu0
        %v3696 = vadd.f32 0.0, %v3695
        %v3697 = vpop.f32.mrb[0].mxu0
        %3698 = vdwg.mxu0
        %v3699 = vrcp.pop %v3516
        %v3700 = vmul.f32 %v3661, %v3699
        %v3701 = vrcp.pop %v3519
        %v3702 = vmul.f32 %v3666, %v3701
        %v3703 = vrcp.pop %v3522
        %v3704 = vmul.f32 %v3671, %v3703
        %v3705 = vrcp.pop %v3525
        %v3706 = vmul.f32 %v3676, %v3705
        %v3707 = vrcp.pop %v3528
        %v3708 = vmul.f32 %v3681, %v3707
        %v3709 = vrcp.pop %v3531
        %v3710 = vmul.f32 %v3686, %v3709
        %v3711 = vrcp.pop %v3534
        %v3712 = vmul.f32 %v3691, %v3711
        %v3713 = vrcp.pop %v3537
        %v3714 = vmul.f32 %v3696, %v3713
        %3723 = vrot.lane.b32.xlu0 %v3700, 16
        %v3724 = vpop.permute.xlu0 %3723
        %3725 = vrot.lane.b32.xlu0 %v3702, 16
        %v3726 = vpop.permute.xlu0 %3725
        %3727 = vrot.lane.b32.xlu0 %v3704, 16
        %v3728 = vpop.permute.xlu0 %3727
        %3729 = vrot.lane.b32.xlu0 %v3706, 16
        %v3730 = vpop.permute.xlu0 %3729
        %3731 = vrot.lane.b32.xlu0 %v3708, 16
        %v3732 = vpop.permute.xlu0 %3731
        %3733 = vrot.lane.b32.xlu0 %v3710, 16
        %v3734 = vpop.permute.xlu0 %3733
        %3735 = vrot.lane.b32.xlu0 %v3712, 16
        %v3736 = vpop.permute.xlu0 %3735
        %3737 = vrot.lane.b32.xlu0 %v3714, 16
        %v3738 = vpop.permute.xlu0 %3737
        %3747 = vst.msk [vmem:[%s336 + $0x8] sm:$0xff] %vm1784, %v3724
        %3748 = vst.msk [vmem:[%s336 + $0x18] sm:$0xff] %vm1784, %v3726
        %3749 = vst.msk [vmem:[%s336 + $0x28] sm:$0xff] %vm1784, %v3728
        %3750 = vst.msk [vmem:[%s336 + $0x38] sm:$0xff] %vm1784, %v3730
        %3751 = vst.msk [vmem:[%s336 + $0x48] sm:$0xff] %vm1784, %v3732
        %3752 = vst.msk [vmem:[%s336 + $0x58] sm:$0xff] %vm1784, %v3734
        %3753 = vst.msk [vmem:[%s336 + $0x68] sm:$0xff] %vm1784, %v3736
        %3754 = vst.msk [vmem:[%s336 + $0x78] sm:$0xff] %vm1784, %v3738
        %v3755 = vld [vmem:[%s280 + $0x8] sm:$0xff]
        %v3756 = vld [vmem:[%s280 + $0x18] sm:$0xff]
        %v3757 = vld [vmem:[%s280 + $0x28] sm:$0xff]
        %v3758 = vld [vmem:[%s280 + $0x38] sm:$0xff]
        %v3759 = vld [vmem:[%s280 + $0x48] sm:$0xff]
        %v3760 = vld [vmem:[%s280 + $0x58] sm:$0xff]
        %v3761 = vld [vmem:[%s280 + $0x68] sm:$0xff]
        %v3762 = vld [vmem:[%s280 + $0x78] sm:$0xff]
        %v3763 = vmul.f32 %v3755, 0.35355338
        %v3764 = vmul.f32 %v3756, 0.35355338
        %v3765 = vmul.f32 %v3757, 0.35355338
        %v3766 = vmul.f32 %v3758, 0.35355338
        %v3767 = vmul.f32 %v3759, 0.35355338
        %v3768 = vmul.f32 %v3760, 0.35355338
        %v3769 = vmul.f32 %v3761, 0.35355338
        %v3770 = vmul.f32 %v3762, 0.35355338
        %v3771 = vld [vmem:[%s289 + $0x8] sm:$0xff]
        %v3772 = vld [vmem:[%s289 + $0x18] sm:$0xff]
        %v3773 = vld [vmem:[%s289 + $0x28] sm:$0xff]
        %v3774 = vld [vmem:[%s289 + $0x38] sm:$0xff]
        %v3775 = vld [vmem:[%s289 + $0x48] sm:$0xff]
        %v3776 = vld [vmem:[%s289 + $0x58] sm:$0xff]
        %v3777 = vld [vmem:[%s289 + $0x68] sm:$0xff]
        %v3778 = vld [vmem:[%s289 + $0x78] sm:$0xff]
        %v3779 = vld [vmem:[%s298 + $0x8] sm:$0xff]
        %v3780 = vld [vmem:[%s298 + $0x18] sm:$0xff]
        %v3781 = vld [vmem:[%s298 + $0x28] sm:$0xff]
        %v3782 = vld [vmem:[%s298 + $0x38] sm:$0xff]
        %v3783 = vld [vmem:[%s298 + $0x48] sm:$0xff]
        %v3784 = vld [vmem:[%s298 + $0x58] sm:$0xff]
        %v3785 = vld [vmem:[%s298 + $0x68] sm:$0xff]
        %v3786 = vld [vmem:[%s298 + $0x78] sm:$0xff]
        %v3787 = vld [vmem:[%s1825] sm:$0xff]
        %v3788 = vld [vmem:[%s1825 + $0x8] sm:$0xff]
        %v3789 = vld [vmem:[%s1825 + $0x10] sm:$0xff]
        %v3790 = vld [vmem:[%s1825 + $0x18] sm:$0xff]
        %v3791 = vld [vmem:[%s1825 + $0x20] sm:$0xff]
        %v3792 = vld [vmem:[%s1825 + $0x28] sm:$0xff]
        %v3793 = vld [vmem:[%s1825 + $0x30] sm:$0xff]
        %v3794 = vld [vmem:[%s1825 + $0x38] sm:$0xff]
        %3803 = vrot.lane.b32.xlu0 %v3763, 104
        %v3804 = vpop.permute.xlu0 %3803
        %3805 = vrot.lane.b32.xlu0 %v3764, 104
        %v3806 = vpop.permute.xlu0 %3805
        %3807 = vrot.lane.b32.xlu0 %v3765, 104
        %v3808 = vpop.permute.xlu0 %3807
        %3809 = vrot.lane.b32.xlu0 %v3766, 104
        %v3810 = vpop.permute.xlu0 %3809
        %3811 = vrot.lane.b32.xlu0 %v3767, 104
        %v3812 = vpop.permute.xlu0 %3811
        %3813 = vrot.lane.b32.xlu0 %v3768, 104
        %v3814 = vpop.permute.xlu0 %3813
        %3815 = vrot.lane.b32.xlu0 %v3769, 104
        %v3816 = vpop.permute.xlu0 %3815
        %3817 = vrot.lane.b32.xlu0 %v3770, 104
        %v3818 = vpop.permute.xlu0 %3817
        %3827 = vrot.lane.b32.xlu0 %v3771, 104
        %v3828 = vpop.permute.xlu0 %3827
        %3829 = vrot.lane.b32.xlu0 %v3772, 104
        %v3830 = vpop.permute.xlu0 %3829
        %3831 = vrot.lane.b32.xlu0 %v3773, 104
        %v3832 = vpop.permute.xlu0 %3831
        %3833 = vrot.lane.b32.xlu0 %v3774, 104
        %v3834 = vpop.permute.xlu0 %3833
        %3835 = vrot.lane.b32.xlu0 %v3775, 104
        %v3836 = vpop.permute.xlu0 %3835
        %3837 = vrot.lane.b32.xlu0 %v3776, 104
        %v3838 = vpop.permute.xlu0 %3837
        %3839 = vrot.lane.b32.xlu0 %v3777, 104
        %v3840 = vpop.permute.xlu0 %3839
        %3841 = vrot.lane.b32.xlu0 %v3778, 104
        %v3842 = vpop.permute.xlu0 %3841
        %v3843 = vsel %vm381, %v3804, 0
        %v3845 = vsel %vm381, %v3806, 0
        %v3847 = vsel %vm381, %v3808, 0
        %v3849 = vsel %vm381, %v3810, 0
        %v3851 = vsel %vm381, %v3812, 0
        %v3853 = vsel %vm381, %v3814, 0
        %v3855 = vsel %vm381, %v3816, 0
        %v3857 = vsel %vm381, %v3818, 0
        %v3859 = vsel %vm381, %v3828, 0
        %v3861 = vsel %vm381, %v3830, 0
        %v3863 = vsel %vm381, %v3832, 0
        %v3865 = vsel %vm381, %v3834, 0
        %v3867 = vsel %vm381, %v3836, 0
        %v3869 = vsel %vm381, %v3838, 0
        %v3871 = vsel %vm381, %v3840, 0
        %v3873 = vsel %vm381, %v3842, 0
        %3875 = vmatprep.subr.mxu0 0.0
        %3876 = vmatpush1.xpose.msra.mxu0 %v3859
        %3877 = vmatprep.subr.mxu0 0.0
        %3878 = vmatpush1.xpose.msra.mxu0 %v3861
        %3879 = vmatprep.subr.mxu0 0.0
        %3880 = vmatpush1.xpose.msra.mxu0 %v3863
        %3881 = vmatprep.subr.mxu0 0.0
        %3882 = vmatpush1.xpose.msra.mxu0 %v3865
        %3883 = vmatprep.subr.mxu0 0.0
        %3884 = vmatpush1.xpose.msra.mxu0 %v3867
        %3885 = vmatprep.subr.mxu0 0.0
        %3886 = vmatpush1.xpose.msra.mxu0 %v3869
        %3887 = vmatprep.subr.mxu0 0.0
        %3888 = vmatpush1.xpose.msra.mxu0 %v3871
        %3889 = vmatprep.subr.mxu0 0.0
        %3890 = vmatpush1.xpose.msra.mxu0 %v3873
        %3891 = vmatprep.subr.mxu0 0.0
        %3892 = vmatpush1.xpose.msra.mxu0 0.0
        %3893 = vmatprep.subr.mxu0 0.0
        %3894 = vmatpush1.xpose.msra.mxu0 0.0
        %3895 = vmatprep.subr.mxu0 0.0
        %3896 = vmatpush1.xpose.msra.mxu0 0.0
        %3897 = vmatprep.subr.mxu0 0.0
        %3898 = vmatpush1.xpose.msra.mxu0 0.0
        %3899 = vmatprep.subr.mxu0 0.0
        %3900 = vmatpush1.xpose.msra.mxu0 0.0
        %3901 = vmatprep.subr.mxu0 0.0
        %3902 = vmatpush1.xpose.msra.mxu0 0.0
        %3903 = vmatprep.subr.mxu0 0.0
        %3904 = vmatpush1.xpose.msra.mxu0 0.0
        %3905 = vmatprep.subr.mxu0 0.0
        %3906 = vmatpush1.xpose.msra.mxu0 0.0
        %3907 = vmatprep.subr.mxu0 0.0
        %3908 = vmatpush1.xpose.msra.mxu0 0.0
        %3909 = vmatprep.subr.mxu0 0.0
        %3910 = vmatpush1.xpose.msra.mxu0 0.0
        %3911 = vmatprep.subr.mxu0 0.0
        %3912 = vmatpush1.xpose.msra.mxu0 0.0
        %3913 = vmatprep.subr.mxu0 0.0
        %3914 = vmatpush1.xpose.msra.mxu0 0.0
        %3915 = vmatprep.subr.mxu0 0.0
        %3916 = vmatpush1.xpose.msra.mxu0 0.0
        %3917 = vmatprep.subr.mxu0 0.0
        %3918 = vmatpush1.xpose.msra.mxu0 0.0
        %3919 = vmatprep.subr.mxu0 0.0
        %3920 = vmatpush1.xpose.msra.mxu0 0.0
        %3921 = vmatprep.subr.mxu0 0.0
        %3922 = vmatpush1.xpose.msra.mxu0 0.0
        %3923 = vmatprep.subr.mxu0 0.0
        %3924 = vmatpush1.xpose.msra.mxu0 0.0
        %3925 = vmatprep.subr.mxu0 0.0
        %3926 = vmatpush1.xpose.msra.mxu0 0.0
        %3927 = vmatprep.subr.mxu0 0.0
        %3928 = vmatpush1.xpose.msra.mxu0 0.0
        %3929 = vmatprep.subr.mxu0 0.0
        %3930 = vmatpush1.xpose.msra.mxu0 0.0
        %3931 = vmatprep.subr.mxu0 0.0
        %3932 = vmatpush1.xpose.msra.mxu0 0.0
        %3933 = vmatprep.subr.mxu0 0.0
        %3934 = vmatpush1.xpose.msra.mxu0 0.0
        %3935 = vmatprep.subr.mxu0 0.0
        %3936 = vmatpush1.xpose.msra.mxu0 0.0
        %3937 = vmatprep.subr.mxu0 0.0
        %3938 = vmatpush1.xpose.msra.mxu0 0.0
        %3939 = vmatprep.mubr.f32.mxu0 0.0
        %3940 = vmatmul.mubr.f32.gmra.mrb[0].mxu0 %v3843
        %v3941 = vpop.f32.mrb[0].mxu0
        %v3942 = vadd.f32 %v3787, %v3941
        %v3943 = vpop.f32.mrb[0].mxu0
        %3944 = vmatprep.mubr.f32.mxu0 0.0
        %3945 = vmatmul.mubr.f32.gmra.mrb[0].mxu0 %v3845
        %v3946 = vpop.f32.mrb[0].mxu0
        %v3947 = vadd.f32 %v3788, %v3946
        %v3948 = vpop.f32.mrb[0].mxu0
        %3949 = vmatprep.mubr.f32.mxu0 0.0
        %3950 = vmatmul.mubr.f32.gmra.mrb[0].mxu0 %v3847
        %v3951 = vpop.f32.mrb[0].mxu0
        %v3952 = vadd.f32 %v3789, %v3951
        %v3953 = vpop.f32.mrb[0].mxu0
        %3954 = vmatprep.mubr.f32.mxu0 0.0
        %3955 = vmatmul.mubr.f32.gmra.mrb[0].mxu0 %v3849
        %v3956 = vpop.f32.mrb[0].mxu0
        %v3957 = vadd.f32 %v3790, %v3956
        %v3958 = vpop.f32.mrb[0].mxu0
        %3959 = vmatprep.mubr.f32.mxu0 0.0
        %3960 = vmatmul.mubr.f32.gmra.mrb[0].mxu0 %v3851
        %v3961 = vpop.f32.mrb[0].mxu0
        %v3962 = vadd.f32 %v3791, %v3961
        %v3963 = vpop.f32.mrb[0].mxu0
        %3964 = vmatprep.mubr.f32.mxu0 0.0
        %3965 = vmatmul.mubr.f32.gmra.mrb[0].mxu0 %v3853
        %v3966 = vpop.f32.mrb[0].mxu0
        %v3967 = vadd.f32 %v3792, %v3966
        %v3968 = vpop.f32.mrb[0].mxu0
        %3969 = vmatprep.mubr.f32.mxu0 0.0
        %3970 = vmatmul.mubr.f32.gmra.mrb[0].mxu0 %v3855
        %v3971 = vpop.f32.mrb[0].mxu0
        %v3972 = vadd.f32 %v3793, %v3971
        %v3973 = vpop.f32.mrb[0].mxu0
        %3974 = vmatprep.mubr.f32.mxu0 0.0
        %3975 = vmatmul.mubr.f32.gmra.mrb[0].mxu0 %v3857
        %v3976 = vpop.f32.mrb[0].mxu0
        %v3977 = vadd.f32 %v3794, %v3976
        %v3978 = vpop.f32.mrb[0].mxu0
        %3979 = vdwg.mxu0
        %v3980 = vsel %vm535, %v3942, -inf
        %3981 = vmax.xlane.f32.xlu0 %v3980
        %v3982 = vpop.xlane.xlu0 %3981
        %v3983 = vsel %vm535, %v3947, -inf
        %3984 = vmax.xlane.f32.xlu0 %v3983
        %v3985 = vpop.xlane.xlu0 %3984
        %v3986 = vsel %vm535, %v3952, -inf
        %3987 = vmax.xlane.f32.xlu0 %v3986
        %v3988 = vpop.xlane.xlu0 %3987
        %v3989 = vsel %vm535, %v3957, -inf
        %3990 = vmax.xlane.f32.xlu0 %v3989
        %v3991 = vpop.xlane.xlu0 %3990
        %v3992 = vsel %vm535, %v3962, -inf
        %3993 = vmax.xlane.f32.xlu0 %v3992
        %v3994 = vpop.xlane.xlu0 %3993
        %v3995 = vsel %vm535, %v3967, -inf
        %3996 = vmax.xlane.f32.xlu0 %v3995
        %v3997 = vpop.xlane.xlu0 %3996
        %v3998 = vsel %vm535, %v3972, -inf
        %3999 = vmax.xlane.f32.xlu0 %v3998
        %v4000 = vpop.xlane.xlu0 %3999
        %v4001 = vsel %vm535, %v3977, -inf
        %4002 = vmax.xlane.f32.xlu0 %v4001
        %v4003 = vpop.xlane.xlu0 %4002
        %v4004 = vsub.f32 %v3942, %v3982
        %v4005 = vsub.f32 %v3947, %v3985
        %v4006 = vsub.f32 %v3952, %v3988
        %v4007 = vsub.f32 %v3957, %v3991
        %v4008 = vsub.f32 %v3962, %v3994
        %v4009 = vsub.f32 %v3967, %v3997
        %v4010 = vsub.f32 %v3972, %v4000
        %v4011 = vsub.f32 %v3977, %v4003
        %v4012 = vmul.f32 %v4004, 1.442695
        %v4013 = vpow.pop %v4012
        %v4014 = vmul.f32 %v4005, 1.442695
        %v4015 = vpow.pop %v4014
        %v4016 = vmul.f32 %v4006, 1.442695
        %v4017 = vpow.pop %v4016
        %v4018 = vmul.f32 %v4007, 1.442695
        %v4019 = vpow.pop %v4018
        %v4020 = vmul.f32 %v4008, 1.442695
        %v4021 = vpow.pop %v4020
        %v4022 = vmul.f32 %v4009, 1.442695
        %v4023 = vpow.pop %v4022
        %v4024 = vmul.f32 %v4010, 1.442695
        %v4025 = vpow.pop %v4024
        %v4026 = vmul.f32 %v4011, 1.442695
        %v4027 = vpow.pop %v4026
        %v4028 = vsel %vm535, %v4013, 0.0
        %4029 = vadd.xlane.f32.xlu0 %v4028
        %v4030 = vpop.xlane.xlu0 %4029
        %v4031 = vsel %vm535, %v4015, 0.0
        %4032 = vadd.xlane.f32.xlu0 %v4031
        %v4033 = vpop.xlane.xlu0 %4032
        %v4034 = vsel %vm535, %v4017, 0.0
        %4035 = vadd.xlane.f32.xlu0 %v4034
        %v4036 = vpop.xlane.xlu0 %4035
        %v4037 = vsel %vm535, %v4019, 0.0
        %4038 = vadd.xlane.f32.xlu0 %v4037
        %v4039 = vpop.xlane.xlu0 %4038
        %v4040 = vsel %vm535, %v4021, 0.0
        %4041 = vadd.xlane.f32.xlu0 %v4040
        %v4042 = vpop.xlane.xlu0 %4041
        %v4043 = vsel %vm535, %v4023, 0.0
        %4044 = vadd.xlane.f32.xlu0 %v4043
        %v4045 = vpop.xlane.xlu0 %4044
        %v4046 = vsel %vm535, %v4025, 0.0
        %4047 = vadd.xlane.f32.xlu0 %v4046
        %v4048 = vpop.xlane.xlu0 %4047
        %v4049 = vsel %vm535, %v4027, 0.0
        %4050 = vadd.xlane.f32.xlu0 %v4049
        %v4051 = vpop.xlane.xlu0 %4050
        %4060 = vrot.lane.b32.xlu0 %v3779, 104
        %v4061 = vpop.permute.xlu0 %4060
        %4062 = vrot.lane.b32.xlu0 %v3780, 104
        %v4063 = vpop.permute.xlu0 %4062
        %4064 = vrot.lane.b32.xlu0 %v3781, 104
        %v4065 = vpop.permute.xlu0 %4064
        %4066 = vrot.lane.b32.xlu0 %v3782, 104
        %v4067 = vpop.permute.xlu0 %4066
        %4068 = vrot.lane.b32.xlu0 %v3783, 104
        %v4069 = vpop.permute.xlu0 %4068
        %4070 = vrot.lane.b32.xlu0 %v3784, 104
        %v4071 = vpop.permute.xlu0 %4070
        %4072 = vrot.lane.b32.xlu0 %v3785, 104
        %v4073 = vpop.permute.xlu0 %4072
        %4074 = vrot.lane.b32.xlu0 %v3786, 104
        %v4075 = vpop.permute.xlu0 %4074
        %v4085 = vsel %vm535, %v4013, 0
        %v4088 = vsel %vm535, %v4015, 0
        %v4091 = vsel %vm535, %v4017, 0
        %v4094 = vsel %vm535, %v4019, 0
        %v4097 = vsel %vm535, %v4021, 0
        %v4100 = vsel %vm535, %v4023, 0
        %v4103 = vsel %vm535, %v4025, 0
        %v4106 = vsel %vm535, %v4027, 0
        %4108 = vmatprep.subr.mxu0 0.0
        %4109 = vmatpush1.msra.mxu0 %v4061
        %4110 = vmatprep.subr.mxu0 0.0
        %4111 = vmatpush1.msra.mxu0 %v4063
        %4112 = vmatprep.subr.mxu0 0.0
        %4113 = vmatpush1.msra.mxu0 %v4065
        %4114 = vmatprep.subr.mxu0 0.0
        %4115 = vmatpush1.msra.mxu0 %v4067
        %4116 = vmatprep.subr.mxu0 0.0
        %4117 = vmatpush1.msra.mxu0 %v4069
        %4118 = vmatprep.subr.mxu0 0.0
        %4119 = vmatpush1.msra.mxu0 %v4071
        %4120 = vmatprep.subr.mxu0 0.0
        %4121 = vmatpush1.msra.mxu0 %v4073
        %4122 = vmatprep.subr.mxu0 0.0
        %4123 = vmatpush1.msra.mxu0 %v4075
        %4124 = vmatprep.subr.mxu0 0.0
        %4125 = vmatpush1.msra.mxu0 0.0
        %4126 = vmatprep.subr.mxu0 0.0
        %4127 = vmatpush1.msra.mxu0 0.0
        %4128 = vmatprep.subr.mxu0 0.0
        %4129 = vmatpush1.msra.mxu0 0.0
        %4130 = vmatprep.subr.mxu0 0.0
        %4131 = vmatpush1.msra.mxu0 0.0
        %4132 = vmatprep.subr.mxu0 0.0
        %4133 = vmatpush1.msra.mxu0 0.0
        %4134 = vmatprep.subr.mxu0 0.0
        %4135 = vmatpush1.msra.mxu0 0.0
        %4136 = vmatprep.subr.mxu0 0.0
        %4137 = vmatpush1.msra.mxu0 0.0
        %4138 = vmatprep.subr.mxu0 0.0
        %4139 = vmatpush1.msra.mxu0 0.0
        %4140 = vmatprep.subr.mxu0 0.0
        %4141 = vmatpush1.msra.mxu0 0.0
        %4142 = vmatprep.subr.mxu0 0.0
        %4143 = vmatpush1.msra.mxu0 0.0
        %4144 = vmatprep.subr.mxu0 0.0
        %4145 = vmatpush1.msra.mxu0 0.0
        %4146 = vmatprep.subr.mxu0 0.0
        %4147 = vmatpush1.msra.mxu0 0.0
        %4148 = vmatprep.subr.mxu0 0.0
        %4149 = vmatpush1.msra.mxu0 0.0
        %4150 = vmatprep.subr.mxu0 0.0
        %4151 = vmatpush1.msra.mxu0 0.0
        %4152 = vmatprep.subr.mxu0 0.0
        %4153 = vmatpush1.msra.mxu0 0.0
        %4154 = vmatprep.subr.mxu0 0.0
        %4155 = vmatpush1.msra.mxu0 0.0
        %4156 = vmatprep.subr.mxu0 0.0
        %4157 = vmatpush1.msra.mxu0 0.0
        %4158 = vmatprep.subr.mxu0 0.0
        %4159 = vmatpush1.msra.mxu0 0.0
        %4160 = vmatprep.subr.mxu0 0.0
        %4161 = vmatpush1.msra.mxu0 0.0
        %4162 = vmatprep.subr.mxu0 0.0
        %4163 = vmatpush1.msra.mxu0 0.0
        %4164 = vmatprep.subr.mxu0 0.0
        %4165 = vmatpush1.msra.mxu0 0.0
        %4166 = vmatprep.subr.mxu0 0.0
        %4167 = vmatpush1.msra.mxu0 0.0
        %4168 = vmatprep.subr.mxu0 0.0
        %4169 = vmatpush1.msra.mxu0 0.0
        %4170 = vmatprep.subr.mxu0 0.0
        %4171 = vmatpush1.msra.mxu0 0.0
        %4172 = vmatprep.mubr.f32.mxu0 0.0
        %4173 = vmatmul.mubr.f32.gmra.mrb[0].mxu0 %v4085
        %v4174 = vpop.f32.mrb[0].mxu0
        %v4175 = vadd.f32 0.0, %v4174
        %v4176 = vpop.f32.mrb[0].mxu0
        %4177 = vmatprep.mubr.f32.mxu0 0.0
        %4178 = vmatmul.mubr.f32.gmra.mrb[0].mxu0 %v4088
        %v4179 = vpop.f32.mrb[0].mxu0
        %v4180 = vadd.f32 0.0, %v4179
        %v4181 = vpop.f32.mrb[0].mxu0
        %4182 = vmatprep.mubr.f32.mxu0 0.0
        %4183 = vmatmul.mubr.f32.gmra.mrb[0].mxu0 %v4091
        %v4184 = vpop.f32.mrb[0].mxu0
        %v4185 = vadd.f32 0.0, %v4184
        %v4186 = vpop.f32.mrb[0].mxu0
        %4187 = vmatprep.mubr.f32.mxu0 0.0
        %4188 = vmatmul.mubr.f32.gmra.mrb[0].mxu0 %v4094
        %v4189 = vpop.f32.mrb[0].mxu0
        %v4190 = vadd.f32 0.0, %v4189
        %v4191 = vpop.f32.mrb[0].mxu0
        %4192 = vmatprep.mubr.f32.mxu0 0.0
        %4193 = vmatmul.mubr.f32.gmra.mrb[0].mxu0 %v4097
        %v4194 = vpop.f32.mrb[0].mxu0
        %v4195 = vadd.f32 0.0, %v4194
        %v4196 = vpop.f32.mrb[0].mxu0
        %4197 = vmatprep.mubr.f32.mxu0 0.0
        %4198 = vmatmul.mubr.f32.gmra.mrb[0].mxu0 %v4100
        %v4199 = vpop.f32.mrb[0].mxu0
        %v4200 = vadd.f32 0.0, %v4199
        %v4201 = vpop.f32.mrb[0].mxu0
        %4202 = vmatprep.mubr.f32.mxu0 0.0
        %4203 = vmatmul.mubr.f32.gmra.mrb[0].mxu0 %v4103
        %v4204 = vpop.f32.mrb[0].mxu0
        %v4205 = vadd.f32 0.0, %v4204
        %v4206 = vpop.f32.mrb[0].mxu0
        %4207 = vmatprep.mubr.f32.mxu0 0.0
        %4208 = vmatmul.mubr.f32.gmra.mrb[0].mxu0 %v4106
        %v4209 = vpop.f32.mrb[0].mxu0
        %v4210 = vadd.f32 0.0, %v4209
        %v4211 = vpop.f32.mrb[0].mxu0
        %4212 = vdwg.mxu0
        %v4213 = vrcp.pop %v4030
        %v4214 = vmul.f32 %v4175, %v4213
        %v4215 = vrcp.pop %v4033
        %v4216 = vmul.f32 %v4180, %v4215
        %v4217 = vrcp.pop %v4036
        %v4218 = vmul.f32 %v4185, %v4217
        %v4219 = vrcp.pop %v4039
        %v4220 = vmul.f32 %v4190, %v4219
        %v4221 = vrcp.pop %v4042
        %v4222 = vmul.f32 %v4195, %v4221
        %v4223 = vrcp.pop %v4045
        %v4224 = vmul.f32 %v4200, %v4223
        %v4225 = vrcp.pop %v4048
        %v4226 = vmul.f32 %v4205, %v4225
        %v4227 = vrcp.pop %v4051
        %v4228 = vmul.f32 %v4210, %v4227
        %4237 = vrot.lane.b32.xlu0 %v4214, 24
        %v4238 = vpop.permute.xlu0 %4237
        %4239 = vrot.lane.b32.xlu0 %v4216, 24
        %v4240 = vpop.permute.xlu0 %4239
        %4241 = vrot.lane.b32.xlu0 %v4218, 24
        %v4242 = vpop.permute.xlu0 %4241
        %4243 = vrot.lane.b32.xlu0 %v4220, 24
        %v4244 = vpop.permute.xlu0 %4243
        %4245 = vrot.lane.b32.xlu0 %v4222, 24
        %v4246 = vpop.permute.xlu0 %4245
        %4247 = vrot.lane.b32.xlu0 %v4224, 24
        %v4248 = vpop.permute.xlu0 %4247
        %4249 = vrot.lane.b32.xlu0 %v4226, 24
        %v4250 = vpop.permute.xlu0 %4249
        %4251 = vrot.lane.b32.xlu0 %v4228, 24
        %v4252 = vpop.permute.xlu0 %4251
        %4261 = vst.msk [vmem:[%s336 + $0x8] sm:$0xff] %vm2300, %v4238
        %4262 = vst.msk [vmem:[%s336 + $0x18] sm:$0xff] %vm2300, %v4240
        %4263 = vst.msk [vmem:[%s336 + $0x28] sm:$0xff] %vm2300, %v4242
        %4264 = vst.msk [vmem:[%s336 + $0x38] sm:$0xff] %vm2300, %v4244
        %4265 = vst.msk [vmem:[%s336 + $0x48] sm:$0xff] %vm2300, %v4246
        %4266 = vst.msk [vmem:[%s336 + $0x58] sm:$0xff] %vm2300, %v4248
        %4267 = vst.msk [vmem:[%s336 + $0x68] sm:$0xff] %vm2300, %v4250
        %4268 = vst.msk [vmem:[%s336 + $0x78] sm:$0xff] %vm2300, %v4252
        %s4269 = sand.u32 %s152, 1
        %s4270 = scalar_lea.sflag [#allocation4], %s4269
        %s4271 = sand.u32 %s152, 1
        %s4272 = smul.addr %s4271, 128
        %s4273 = scalar_lea.vmem [#allocation10], %s4272
        // Predicated region
        $region53: #{tpu_custom_call.1} parent=35 // pred_check
          %p4274 = pneg %p162
        $region54: #{tpu_custom_call.1} parent=35 // pred_check_branch
          %4276 = sbr.rel (%p4274) target = $region56
        $region55: #{tpu_custom_call.1} parent=35 // pred_region
          %s4277 = smul.u32 8, %s30
          %s4279 = ssub.s32 2048, 2048
          %4280 = vsyncadd %s4270, %s4279
          %s4281 = smul.addr %s4277, 2
          %s4282 = smul.addr %s29, 32
          %s4283 = sadd.s32 %s4281, %s4282
          %s4284 = smul.addr %s4283, 128
          %s4285 = scalar_lea.hbm %s4, %s4284
          %s4286 = sshll.u32 %s4273, 4
          %s4287 = int_to_ptr.vmem [resolvable:$true] %s4286
          %4292 = dma.vmem_to_hbm [thread:$0]  %s4287, 2048, %s4285, %s4270, 128, 128, 8
        $region56: #{tpu_custom_call.1} parent=35 // pred_fallthru
          _
      $region36: #{tpu_custom_call.1} parent=5 // pred_fallthru
        _
      %p4293 = scmp.le.s32.totalorder 2, %s20
      // Predicated region
      $region57: #{tpu_custom_call.1} parent=5 // pred_check
        %p4294 = pneg %p4293
      $region58: #{tpu_custom_call.1} parent=5 // pred_check_branch
        %4296 = sbr.rel (%p4294) target = $region60
      $region59: #{tpu_custom_call.1} parent=5 // pred_region
        %s4297 = ssub.s32 %s20, 2
        // Predicated region
        $region61: #{tpu_custom_call.1} parent=59 // pred_check
          %p4298 = pneg %p168
        $region62: #{tpu_custom_call.1} parent=59 // pred_check_branch
          %4300 = sbr.rel (%p4298) target = $region64
        $region63: #{tpu_custom_call.1} parent=59 // pred_region
          %s4301 = sand.u32 %s153, 1
          %s4302 = scalar_lea.sflag [#allocation4], %s4301
          %s4303 = sand.u32 %s153, 1
          %s4304 = smul.addr %s4303, 128
          %s4305 = scalar_lea.vmem [#allocation10], %s4304
          %4306 = dma.done %s4302, 2048
        $region64: #{tpu_custom_call.1} parent=59 // pred_fallthru
          _
      $region60: #{tpu_custom_call.1} parent=5 // pred_fallthru
        _
    $region6: #{tpu_custom_call.1} parent=1 // loop_footer
      %s24 = sadd.s32 1, %s20
    $region7: #{tpu_custom_call.1} parent=1 // loop_footer_branch
      %19 = sbr.rel target = $region3
    $region8: #{tpu_custom_call.1} parent=1 // loop_exit
      _
    %4307 = vsyncpa [#allocation3], 1
    %s4308 = scalar_lea.sflag [#allocation3], 1
    %4309 = vsyncpa %s4308, 1
    %4310 = vsyncpa [#allocation6], 1
    %s4311 = scalar_lea.sflag [#allocation6], 1
    %4312 = vsyncpa %s4311, 1
    %4313 = vsyncpa [#allocation9], 1
    %4314 = vsyncpa [#allocation4], 1
    %s4315 = scalar_lea.sflag [#allocation4], 1
    %4316 = vsyncpa %s4315, 1

</llo_original>
